<compile_context>
chip_gen: v7x
topology: tpu7x:2x2x1
jax: 0.10.0
libtpu: 0.0.40
codegen_flags: <defaults>
</compile_context>

<pallas_src>
import numpy as np
import jax
import jax.numpy as jnp
from jax.experimental import pallas as pl
from jax.experimental.pallas import tpu as pltpu

KSIZE, STRIDE, PAD = 3, 2, 1


def _conv_out(n):
    return (n + 2 * PAD - KSIZE) // STRIDE + 1


def init_params(key, input_channels, num_features=64):
    """Deterministic Kaiming-uniform-style init matching nn.Conv2d shapes."""
    layer_shapes = [(32, input_channels), (64, 32), (num_features, 64)]
    params = []
    for i, (oc, ic) in enumerate(layer_shapes):
        kw, kb = jax.random.split(jax.random.fold_in(key, i))
        fan_in = ic * KSIZE * KSIZE
        bound = 1.0 / (fan_in ** 0.5)
        w = jax.random.uniform(kw, (oc, ic, KSIZE, KSIZE), jnp.float32, -bound, bound)
        b = jax.random.uniform(kb, (oc,), jnp.float32, -bound, bound)
        params.append((w, b))
    return params


def pack_params(params, in_hw, batch):
    """One-time re-layout of PyTorch (O,C,3,3)/(O,) params for the fused kernel.

    In-kernel activation layout: rows = (image, channel) on sublanes,
    cols = zero-padded flat spatial positions py*(W+2)+px on lanes
    (+2 guard columns so every tap slice stays in bounds).  Per layer:
      wf : (n*O, 9*n*C)  block-diagonal folded tap weights (one matmul/layer),
      bf : (n*O, 1)      bias, broadcast over lanes,
      S  : (M, next_buf_width) 0/1 matrix that applies the stride-2 subsample
           and scatters straight into the NEXT layer's zero-padded flat buffer
           (all-zero columns == free zero padding); the last layer's S maps to
           the OH*OW output positions in NCHW order.
    P  : (H*W, padded_buf_width) 0/1 matrix that zero-pads the raw (n*C, H*W)
         input into the first padded buffer on the MXU (no in-kernel scatters).
    """
    n = batch
    H = W = in_hw
    n_layers = len(params)

    Wp = W + 2
    P = np.zeros((H * W, (H + 2) * Wp + 2), np.float32)
    for y in range(H):
        for x in range(W):
            P[y * W + x, (y + 1) * Wp + (x + 1)] = 1.0

    weights, biases, sels, geom = [], [], [], []
    for li, (w, b) in enumerate(params):
        w_np = np.asarray(w, np.float32)
        b_np = np.asarray(b, np.float32)
        O, C, KH, KW = w_np.shape
        Wp = W + 2
        M = H * Wp  # stride-1 conv anchors over the padded width (junk cols never selected)
        offs = tuple(ky * Wp + kx for ky in range(KH) for kx in range(KW))

        wf = np.zeros((n * O, KH * KW * n * C), np.float32)
        taps = [(ky, kx) for ky in range(KH) for kx in range(KW)]
        for t, (ky, kx) in enumerate(taps):
            for i in range(n):
                wf[i * O:(i + 1) * O,
                   t * n * C + i * C: t * n * C + (i + 1) * C] = w_np[:, :, ky, kx]

        bf = np.tile(b_np, n).reshape(n * O, 1)

        OH, OW = _conv_out(H), _conv_out(W)
        if li + 1 < n_layers:
            OWp = OW + 2
            S = np.zeros((M, (OH + 2) * OWp + 2), np.float32)
            for oy in range(OH):
                for ox in range(OW):
                    S[(2 * oy) * Wp + 2 * ox, (oy + 1) * OWp + (ox + 1)] = 1.0
        else:
            S = np.zeros((M, OH * OW), np.float32)
            for oy in range(OH):
                for ox in range(OW):
                    S[(2 * oy) * Wp + 2 * ox, oy * OW + ox] = 1.0

        weights.append(jnp.asarray(wf))
        biases.append(jnp.asarray(bf))
        sels.append(jnp.asarray(S))
        geom.append((offs, M))
        H, W = OH, OW

    out_channels = params[-1][0].shape[0]
    return (jnp.asarray(P), tuple(weights), tuple(biases), tuple(sels),
            tuple(geom), out_channels, (H, W))


def _make_kernel(geom):
    n_layers = len(geom)

    def kernel(*refs):
        x_ref, p_ref = refs[0], refs[1]
        layer_refs = refs[2:2 + 3 * n_layers]
        o_ref = refs[2 + 3 * n_layers]

        # Zero-pad the raw NCHW-flat input into the padded flat buffer (MXU).
        buf = jnp.dot(x_ref[...], p_ref[...], preferred_element_type=jnp.float32)
        for li, (offs, m) in enumerate(geom):
            w_ref, b_ref, s_ref = layer_refs[3 * li: 3 * li + 3]
            # Fold all 9 taps into one matmul: im2col slab from 9 contiguous
            # shifted slices of the padded buffer, concatenated along K.
            slab = jnp.concatenate([buf[:, off:off + m] for off in offs], axis=0)
            conv = jnp.dot(w_ref[...], slab, preferred_element_type=jnp.float32)
            act = jnp.maximum(conv + b_ref[...], 0.0)
            # Stride-2 subsample + scatter into the next layer's zero-padded
            # buffer (or, for the last layer, straight into NCHW output order).
            buf = jnp.dot(act, s_ref[...], preferred_element_type=jnp.float32)
        o_ref[...] = buf

    return kernel


def make_forward(P, weights, biases, sels, geom, batch, in_channels, in_hw,
                 out_channels, out_hw):
    n_layers = len(weights)
    OH, OW = out_hw

    flops = 2 * (batch * in_channels) * P.shape[0] * P.shape[1]
    for li in range(n_layers):
        rows = weights[li].shape[0]
        flops += 2 * rows * weights[li].shape[1] * geom[li][1]
        flops += 2 * rows * sels[li].shape[0] * sels[li].shape[1]
    param_bytes = sum(int(np.prod(a.shape)) * a.dtype.itemsize
                      for a in (P,) + weights + biases + sels)
    bytes_accessed = (param_bytes
                      + batch * in_channels * in_hw * in_hw * 4
                      + batch * out_channels * OH * OW * 4)

    fused = pl.pallas_call(
        _make_kernel(geom),
        out_shape=jax.ShapeDtypeStruct((batch * out_channels, OH * OW), jnp.float32),
        compiler_params=pltpu.CompilerParams(vmem_limit_bytes=32 * 1024 * 1024),
        cost_estimate=pl.CostEstimate(flops=int(flops), transcendentals=0,
                                      bytes_accessed=int(bytes_accessed)),
    )

    @jax.jit
    def forward(x_nchw, p, pw, pb, ps):
        n = x_nchw.shape[0]
        # Free contiguous views only -- no transpose / pad / slice on the hot path.
        xf = x_nchw.reshape(n * in_channels, in_hw * in_hw)
        args = [xf, p]
        for li in range(n_layers):
            args += [pw[li], pb[li], ps[li]]
        out = fused(*args)                       # (n*C_out, OH*OW), already NCHW order
        return out.reshape(n, out_channels, OH, OW)

    return forward


def reference_forward(x, params):
    """Plain-JAX reference matching the PyTorch module semantics."""
    out = x
    for (w, b) in params:
        out = jax.lax.conv_general_dilated(
            out, w, window_strides=(STRIDE, STRIDE),
            padding=((PAD, PAD), (PAD, PAD)),
            dimension_numbers=("NCHW", "OIHW", "NCHW"),
            precision=jax.lax.Precision.HIGHEST)
        out = jax.nn.relu(out + b[None, :, None, None])
    return out


if __name__ == "__main__":
    key = jax.random.PRNGKey(0)
    kx, kp = jax.random.split(key)

    batch, in_channels, in_hw, num_features = 2, 4, 16, 64
    x = jax.random.normal(kx, (batch, in_channels, in_hw, in_hw), jnp.float32)
    params = init_params(kp, in_channels, num_features)

    P, weights, biases, sels, geom, out_channels, out_hw = pack_params(
        params, in_hw, batch)
    forward = make_forward(P, weights, biases, sels, geom, batch, in_channels,
                           in_hw, out_channels, out_hw)

    out = forward(x, P, weights, biases, sels)
    jax.block_until_ready(out)

    # 16 -> 8 -> 4 -> 2 spatial (k=3, s=2, p=1), num_features channels, NCHW
    assert out.shape == (batch, num_features, 2, 2), out.shape
    assert bool(jnp.all(out >= 0.0))                     # ReLU applied

    ref = reference_forward(x, params)
    max_err = float(jnp.max(jnp.abs(out - ref)))
    assert jnp.allclose(out, ref, atol=1e-3, rtol=1e-3), max_err

    print("KERNEL_OK")
</pallas_src>

<mosaic_0001>
module attributes {stable_mosaic.version = 11 : i64} {
  func.func @kernel(%arg0: memref<8x256xf32, #tpu.memory_space<vmem>>, %arg1: memref<256x326xf32, #tpu.memory_space<vmem>>, %arg2: memref<64x72xf32, #tpu.memory_space<vmem>>, %arg3: memref<64x1xf32, #tpu.memory_space<vmem>>, %arg4: memref<288x102xf32, #tpu.memory_space<vmem>>, %arg5: memref<128x576xf32, #tpu.memory_space<vmem>>, %arg6: memref<128x1xf32, #tpu.memory_space<vmem>>, %arg7: memref<80x38xf32, #tpu.memory_space<vmem>>, %arg8: memref<128x1152xf32, #tpu.memory_space<vmem>>, %arg9: memref<128x1xf32, #tpu.memory_space<vmem>>, %arg10: memref<24x4xf32, #tpu.memory_space<vmem>>, %arg11: memref<128x4xf32, #tpu.memory_space<vmem>>) attributes {dimension_semantics = [], scalar_prefetch = 0 : i64, scratch_operands = 0 : i64, tpu.core_type = #tpu.core_type<tc>} {
    %c0 = arith.constant 0 : index
    %c0_0 = arith.constant 0 : index
    %0 = vector.load %arg0[%c0, %c0_0] : memref<8x256xf32, #tpu.memory_space<vmem>>, vector<8x256xf32>
    %c0_1 = arith.constant 0 : index
    %c0_2 = arith.constant 0 : index
    %1 = vector.load %arg1[%c0_1, %c0_2] : memref<256x326xf32, #tpu.memory_space<vmem>>, vector<256x326xf32>
    %cst = arith.constant dense<0.000000e+00> : vector<8x326xf32>
    %2 = tpu.matmul %0, %1, %cst {dimension_numbers = #tpu.dot_dimension_numbers<[1], [0], [0], [1], [0, 0, 1, 1], [], []>} : vector<8x256xf32>, vector<256x326xf32>, vector<8x326xf32> -> vector<8x326xf32>
    %3 = vector.extract_strided_slice %2 {offsets = [0, 0], sizes = [8, 288], strides = [1, 1]} : vector<8x326xf32> to vector<8x288xf32>
    %4 = vector.extract_strided_slice %2 {offsets = [0, 1], sizes = [8, 288], strides = [1, 1]} : vector<8x326xf32> to vector<8x288xf32>
    %5 = vector.extract_strided_slice %2 {offsets = [0, 2], sizes = [8, 288], strides = [1, 1]} : vector<8x326xf32> to vector<8x288xf32>
    %6 = vector.extract_strided_slice %2 {offsets = [0, 18], sizes = [8, 288], strides = [1, 1]} : vector<8x326xf32> to vector<8x288xf32>
    %7 = vector.extract_strided_slice %2 {offsets = [0, 19], sizes = [8, 288], strides = [1, 1]} : vector<8x326xf32> to vector<8x288xf32>
    %8 = vector.extract_strided_slice %2 {offsets = [0, 20], sizes = [8, 288], strides = [1, 1]} : vector<8x326xf32> to vector<8x288xf32>
    %9 = vector.extract_strided_slice %2 {offsets = [0, 36], sizes = [8, 288], strides = [1, 1]} : vector<8x326xf32> to vector<8x288xf32>
    %10 = vector.extract_strided_slice %2 {offsets = [0, 37], sizes = [8, 288], strides = [1, 1]} : vector<8x326xf32> to vector<8x288xf32>
    %11 = vector.extract_strided_slice %2 {offsets = [0, 38], sizes = [8, 288], strides = [1, 1]} : vector<8x326xf32> to vector<8x288xf32>
    %12 = tpu.concatenate %3, %4, %5, %6, %7, %8, %9, %10, %11 in 0 : vector<8x288xf32>, vector<8x288xf32>, vector<8x288xf32>, vector<8x288xf32>, vector<8x288xf32>, vector<8x288xf32>, vector<8x288xf32>, vector<8x288xf32>, vector<8x288xf32> -> vector<72x288xf32>
    %c0_3 = arith.constant 0 : index
    %c0_4 = arith.constant 0 : index
    %13 = vector.load %arg2[%c0_3, %c0_4] : memref<64x72xf32, #tpu.memory_space<vmem>>, vector<64x72xf32>
    %cst_5 = arith.constant dense<0.000000e+00> : vector<64x288xf32>
    %14 = tpu.matmul %13, %12, %cst_5 {dimension_numbers = #tpu.dot_dimension_numbers<[1], [0], [0], [1], [0, 0, 1, 1], [], []>} : vector<64x72xf32>, vector<72x288xf32>, vector<64x288xf32> -> vector<64x288xf32>
    %c0_6 = arith.constant 0 : index
    %c0_7 = arith.constant 0 : index
    %15 = vector.load %arg3[%c0_6, %c0_7] : memref<64x1xf32, #tpu.memory_space<vmem>>, vector<64x1xf32>
    %16 = vector.broadcast %15 : vector<64x1xf32> to vector<64x288xf32>
    %17 = arith.addf %14, %16 : vector<64x288xf32>
    %cst_8 = arith.constant 0.000000e+00 : f32
    %18 = vector.broadcast %cst_8 : f32 to vector<64x288xf32>
    %19 = arith.maximumf %17, %18 : vector<64x288xf32>
    %c0_9 = arith.constant 0 : index
    %c0_10 = arith.constant 0 : index
    %20 = vector.load %arg4[%c0_9, %c0_10] : memref<288x102xf32, #tpu.memory_space<vmem>>, vector<288x102xf32>
    %cst_11 = arith.constant dense<0.000000e+00> : vector<64x102xf32>
    %21 = tpu.matmul %19, %20, %cst_11 {dimension_numbers = #tpu.dot_dimension_numbers<[1], [0], [0], [1], [0, 0, 1, 1], [], []>} : vector<64x288xf32>, vector<288x102xf32>, vector<64x102xf32> -> vector<64x102xf32>
    %22 = vector.extract_strided_slice %21 {offsets = [0, 0], sizes = [64, 80], strides = [1, 1]} : vector<64x102xf32> to vector<64x80xf32>
    %23 = vector.extract_strided_slice %21 {offsets = [0, 1], sizes = [64, 80], strides = [1, 1]} : vector<64x102xf32> to vector<64x80xf32>
    %24 = vector.extract_strided_slice %21 {offsets = [0, 2], sizes = [64, 80], strides = [1, 1]} : vector<64x102xf32> to vector<64x80xf32>
    %25 = vector.extract_strided_slice %21 {offsets = [0, 10], sizes = [64, 80], strides = [1, 1]} : vector<64x102xf32> to vector<64x80xf32>
    %26 = vector.extract_strided_slice %21 {offsets = [0, 11], sizes = [64, 80], strides = [1, 1]} : vector<64x102xf32> to vector<64x80xf32>
    %27 = vector.extract_strided_slice %21 {offsets = [0, 12], sizes = [64, 80], strides = [1, 1]} : vector<64x102xf32> to vector<64x80xf32>
    %28 = vector.extract_strided_slice %21 {offsets = [0, 20], sizes = [64, 80], strides = [1, 1]} : vector<64x102xf32> to vector<64x80xf32>
    %29 = vector.extract_strided_slice %21 {offsets = [0, 21], sizes = [64, 80], strides = [1, 1]} : vector<64x102xf32> to vector<64x80xf32>
    %30 = vector.extract_strided_slice %21 {offsets = [0, 22], sizes = [64, 80], strides = [1, 1]} : vector<64x102xf32> to vector<64x80xf32>
    %31 = tpu.concatenate %22, %23, %24, %25, %26, %27, %28, %29, %30 in 0 : vector<64x80xf32>, vector<64x80xf32>, vector<64x80xf32>, vector<64x80xf32>, vector<64x80xf32>, vector<64x80xf32>, vector<64x80xf32>, vector<64x80xf32>, vector<64x80xf32> -> vector<576x80xf32>
    %c0_12 = arith.constant 0 : index
    %c0_13 = arith.constant 0 : index
    %32 = vector.load %arg5[%c0_12, %c0_13] : memref<128x576xf32, #tpu.memory_space<vmem>>, vector<128x576xf32>
    %cst_14 = arith.constant dense<0.000000e+00> : vector<128x80xf32>
    %33 = tpu.matmul %32, %31, %cst_14 {dimension_numbers = #tpu.dot_dimension_numbers<[1], [0], [0], [1], [0, 0, 1, 1], [], []>} : vector<128x576xf32>, vector<576x80xf32>, vector<128x80xf32> -> vector<128x80xf32>
    %c0_15 = arith.constant 0 : index
    %c0_16 = arith.constant 0 : index
    %34 = vector.load %arg6[%c0_15, %c0_16] : memref<128x1xf32, #tpu.memory_space<vmem>>, vector<128x1xf32>
    %35 = vector.broadcast %34 : vector<128x1xf32> to vector<128x80xf32>
    %36 = arith.addf %33, %35 : vector<128x80xf32>
    %cst_17 = arith.constant 0.000000e+00 : f32
    %37 = vector.broadcast %cst_17 : f32 to vector<128x80xf32>
    %38 = arith.maximumf %36, %37 : vector<128x80xf32>
    %c0_18 = arith.constant 0 : index
    %c0_19 = arith.constant 0 : index
    %39 = vector.load %arg7[%c0_18, %c0_19] : memref<80x38xf32, #tpu.memory_space<vmem>>, vector<80x38xf32>
    %cst_20 = arith.constant dense<0.000000e+00> : vector<128x38xf32>
    %40 = tpu.matmul %38, %39, %cst_20 {dimension_numbers = #tpu.dot_dimension_numbers<[1], [0], [0], [1], [0, 0, 1, 1], [], []>} : vector<128x80xf32>, vector<80x38xf32>, vector<128x38xf32> -> vector<128x38xf32>
    %41 = vector.extract_strided_slice %40 {offsets = [0, 0], sizes = [128, 24], strides = [1, 1]} : vector<128x38xf32> to vector<128x24xf32>
    %42 = vector.extract_strided_slice %40 {offsets = [0, 1], sizes = [128, 24], strides = [1, 1]} : vector<128x38xf32> to vector<128x24xf32>
    %43 = vector.extract_strided_slice %40 {offsets = [0, 2], sizes = [128, 24], strides = [1, 1]} : vector<128x38xf32> to vector<128x24xf32>
    %44 = vector.extract_strided_slice %40 {offsets = [0, 6], sizes = [128, 24], strides = [1, 1]} : vector<128x38xf32> to vector<128x24xf32>
    %45 = vector.extract_strided_slice %40 {offsets = [0, 7], sizes = [128, 24], strides = [1, 1]} : vector<128x38xf32> to vector<128x24xf32>
    %46 = vector.extract_strided_slice %40 {offsets = [0, 8], sizes = [128, 24], strides = [1, 1]} : vector<128x38xf32> to vector<128x24xf32>
    %47 = vector.extract_strided_slice %40 {offsets = [0, 12], sizes = [128, 24], strides = [1, 1]} : vector<128x38xf32> to vector<128x24xf32>
    %48 = vector.extract_strided_slice %40 {offsets = [0, 13], sizes = [128, 24], strides = [1, 1]} : vector<128x38xf32> to vector<128x24xf32>
    %49 = vector.extract_strided_slice %40 {offsets = [0, 14], sizes = [128, 24], strides = [1, 1]} : vector<128x38xf32> to vector<128x24xf32>
    %50 = tpu.concatenate %41, %42, %43, %44, %45, %46, %47, %48, %49 in 0 : vector<128x24xf32>, vector<128x24xf32>, vector<128x24xf32>, vector<128x24xf32>, vector<128x24xf32>, vector<128x24xf32>, vector<128x24xf32>, vector<128x24xf32>, vector<128x24xf32> -> vector<1152x24xf32>
    %c0_21 = arith.constant 0 : index
    %c0_22 = arith.constant 0 : index
    %51 = vector.load %arg8[%c0_21, %c0_22] : memref<128x1152xf32, #tpu.memory_space<vmem>>, vector<128x1152xf32>
    %cst_23 = arith.constant dense<0.000000e+00> : vector<128x24xf32>
    %52 = tpu.matmul %51, %50, %cst_23 {dimension_numbers = #tpu.dot_dimension_numbers<[1], [0], [0], [1], [0, 0, 1, 1], [], []>} : vector<128x1152xf32>, vector<1152x24xf32>, vector<128x24xf32> -> vector<128x24xf32>
    %c0_24 = arith.constant 0 : index
    %c0_25 = arith.constant 0 : index
    %53 = vector.load %arg9[%c0_24, %c0_25] : memref<128x1xf32, #tpu.memory_space<vmem>>, vector<128x1xf32>
    %54 = vector.broadcast %53 : vector<128x1xf32> to vector<128x24xf32>
    %55 = arith.addf %52, %54 : vector<128x24xf32>
    %cst_26 = arith.constant 0.000000e+00 : f32
    %56 = vector.broadcast %cst_26 : f32 to vector<128x24xf32>
    %57 = arith.maximumf %55, %56 : vector<128x24xf32>
    %c0_27 = arith.constant 0 : index
    %c0_28 = arith.constant 0 : index
    %58 = vector.load %arg10[%c0_27, %c0_28] : memref<24x4xf32, #tpu.memory_space<vmem>>, vector<24x4xf32>
    %cst_29 = arith.constant dense<0.000000e+00> : vector<128x4xf32>
    %59 = tpu.matmul %57, %58, %cst_29 {dimension_numbers = #tpu.dot_dimension_numbers<[1], [0], [0], [1], [0, 0, 1, 1], [], []>} : vector<128x24xf32>, vector<24x4xf32>, vector<128x4xf32> -> vector<128x4xf32>
    %c0_30 = arith.constant 0 : index
    %c0_31 = arith.constant 0 : index
    %60 = vector.load %arg11[%c0_30, %c0_31] : memref<128x4xf32, #tpu.memory_space<vmem>>, vector<128x4xf32>
    tpu.vector_store %arg11[%c0_30, %c0_31], %59 {strides = array<i32>} : memref<128x4xf32, #tpu.memory_space<vmem>>, vector<128x4xf32>,
    return
  }
}

</mosaic_0001>

<llo_original>
// kernel: forward.1
$region0: #{forward.1}
  #allocation0 [shape = 'u32[]', space=smem, size = 0x4, offset = 0x4, fixed_abs, tag = 'smem constant byte address 0x4 - core index']
  #allocation1 [shape = 'u32[144,128]{1,0:T(1,128)}', space=vmem, size = 0x12000, scoped, tag = 'internal scratch']
  %s0 = inlined_call_operand.vmem [shape: f32[8,256], index: 0, kind: input, shape index: {}]
  %s1 = inlined_call_operand.vmem [shape: f32[256,326], index: 1, kind: input, shape index: {}]
  %s2 = inlined_call_operand.vmem [shape: f32[64,72], index: 2, kind: input, shape index: {}]
  %s3 = inlined_call_operand.vmem [shape: f32[64,1], index: 3, kind: input, shape index: {}]
  %s4 = inlined_call_operand.vmem [shape: f32[288,102], index: 4, kind: input, shape index: {}]
  %s5 = inlined_call_operand.vmem [shape: f32[128,576], index: 5, kind: input, shape index: {}]
  %s6 = inlined_call_operand.vmem [shape: f32[128,1], index: 6, kind: input, shape index: {}]
  %s7 = inlined_call_operand.vmem [shape: f32[80,38], index: 7, kind: input, shape index: {}]
  %s8 = inlined_call_operand.vmem [shape: f32[128,1152], index: 8, kind: input, shape index: {}]
  %s9 = inlined_call_operand.vmem [shape: f32[128,1], index: 9, kind: input, shape index: {}]
  %s10 = inlined_call_operand.vmem [shape: f32[24,4], index: 10, kind: input, shape index: {}]
  %s11 = inlined_call_operand.vmem [shape: f32[128,4], index: 11, kind: output, shape index: {}]
  %s12 = sld [smem:[#allocation0]]
  $region54: #{forward.1} parent=0
    _
  %s14 = ssub.s32 1, %s12
  %s15 = scalar_select 0, %s14, %s12
  // Predicated region
  $region2: #{forward.1} parent=0 // pred_check
    _
  $region3: #{forward.1} parent=0 // pred_check_branch
    %17 = sbr.rel (0) target = $region5
  $region4: #{forward.1} parent=0 // pred_region
    _
  $region5: #{forward.1} parent=0 // pred_fallthru
    _
  // Predicated region
  $region6: #{forward.1} parent=0 // pred_check
    _
  $region7: #{forward.1} parent=0 // pred_check_branch
    %19 = sbr.rel (0) target = $region9
  $region8: #{forward.1} parent=0 // pred_region
    _
  $region9: #{forward.1} parent=0 // pred_fallthru
    _
  // Predicated region
  $region10: #{forward.1} parent=0 // pred_check
    _
  $region11: #{forward.1} parent=0 // pred_check_branch
    %21 = sbr.rel (0) target = $region13
  $region12: #{forward.1} parent=0 // pred_region
    _
  $region13: #{forward.1} parent=0 // pred_fallthru
    _
  // Predicated region
  $region14: #{forward.1} parent=0 // pred_check
    _
  $region15: #{forward.1} parent=0 // pred_check_branch
    %23 = sbr.rel (0) target = $region17
  $region16: #{forward.1} parent=0 // pred_region
    _
  $region17: #{forward.1} parent=0 // pred_fallthru
    _
  // Predicated region
  $region18: #{forward.1} parent=0 // pred_check
    _
  $region19: #{forward.1} parent=0 // pred_check_branch
    %25 = sbr.rel (0) target = $region21
  $region20: #{forward.1} parent=0 // pred_region
    _
  $region21: #{forward.1} parent=0 // pred_fallthru
    _
  // Predicated region
  $region22: #{forward.1} parent=0 // pred_check
    _
  $region23: #{forward.1} parent=0 // pred_check_branch
    %27 = sbr.rel (0) target = $region25
  $region24: #{forward.1} parent=0 // pred_region
    _
  $region25: #{forward.1} parent=0 // pred_fallthru
    _
  // Predicated region
  $region26: #{forward.1} parent=0 // pred_check
    _
  $region27: #{forward.1} parent=0 // pred_check_branch
    %29 = sbr.rel (0) target = $region29
  $region28: #{forward.1} parent=0 // pred_region
    _
  $region29: #{forward.1} parent=0 // pred_fallthru
    _
  // Predicated region
  $region30: #{forward.1} parent=0 // pred_check
    _
  $region31: #{forward.1} parent=0 // pred_check_branch
    %31 = sbr.rel (0) target = $region33
  $region32: #{forward.1} parent=0 // pred_region
    _
  $region33: #{forward.1} parent=0 // pred_fallthru
    _
  // Predicated region
  $region34: #{forward.1} parent=0 // pred_check
    _
  $region35: #{forward.1} parent=0 // pred_check_branch
    %33 = sbr.rel (0) target = $region37
  $region36: #{forward.1} parent=0 // pred_region
    _
  $region37: #{forward.1} parent=0 // pred_fallthru
    _
  // Predicated region
  $region38: #{forward.1} parent=0 // pred_check
    _
  $region39: #{forward.1} parent=0 // pred_check_branch
    %35 = sbr.rel (0) target = $region41
  $region40: #{forward.1} parent=0 // pred_region
    _
  $region41: #{forward.1} parent=0 // pred_fallthru
    _
  // Predicated region
  $region42: #{forward.1} parent=0 // pred_check
    _
  $region43: #{forward.1} parent=0 // pred_check_branch
    %37 = sbr.rel (0) target = $region45
  $region44: #{forward.1} parent=0 // pred_region
    _
  $region45: #{forward.1} parent=0 // pred_fallthru
    _
  %v38 = vld [vmem:[%s0] sm:$0xff]
  %v39 = vld [vmem:[%s0 + $0x8] sm:$0xff]
  %v40 = vld [vmem:[%s1] sm:$0xff]
  %v41 = vld [vmem:[%s1 + $0x8] sm:$0xff]
  %v42 = vld [vmem:[%s1 + $0x10] sm:$0xff]
  %v43 = vld [vmem:[%s1 + $0x18] sm:$0xff]
  %v44 = vld [vmem:[%s1 + $0x20] sm:$0xff]
  %v45 = vld [vmem:[%s1 + $0x28] sm:$0xff]
  %v46 = vld [vmem:[%s1 + $0x30] sm:$0xff]
  %v47 = vld [vmem:[%s1 + $0x38] sm:$0xff]
  %v48 = vld [vmem:[%s1 + $0x40] sm:$0xff]
  %v49 = vld [vmem:[%s1 + $0x48] sm:$0xff]
  %v50 = vld [vmem:[%s1 + $0x50] sm:$0xff]
  %v51 = vld [vmem:[%s1 + $0x58] sm:$0xff]
  %v52 = vld [vmem:[%s1 + $0x60] sm:$0xff]
  %v53 = vld [vmem:[%s1 + $0x68] sm:$0xff]
  %v54 = vld [vmem:[%s1 + $0x70] sm:$0xff]
  %v55 = vld [vmem:[%s1 + $0x78] sm:$0xff]
  %v56 = vld [vmem:[%s1 + $0x80] sm:$0xff]
  %v57 = vld [vmem:[%s1 + $0x88] sm:$0xff]
  %v58 = vld [vmem:[%s1 + $0x90] sm:$0xff]
  %v59 = vld [vmem:[%s1 + $0x98] sm:$0xff]
  %v60 = vld [vmem:[%s1 + $0xa0] sm:$0xff]
  %v61 = vld [vmem:[%s1 + $0xa8] sm:$0xff]
  %v62 = vld [vmem:[%s1 + $0xb0] sm:$0xff]
  %v63 = vld [vmem:[%s1 + $0xb8] sm:$0xff]
  %v64 = vld [vmem:[%s1 + $0xc0] sm:$0xff]
  %v65 = vld [vmem:[%s1 + $0xc8] sm:$0xff]
  %v66 = vld [vmem:[%s1 + $0xd0] sm:$0xff]
  %v67 = vld [vmem:[%s1 + $0xd8] sm:$0xff]
  %v68 = vld [vmem:[%s1 + $0xe0] sm:$0xff]
  %v69 = vld [vmem:[%s1 + $0xe8] sm:$0xff]
  %v70 = vld [vmem:[%s1 + $0xf0] sm:$0xff]
  %v71 = vld [vmem:[%s1 + $0xf8] sm:$0xff]
  %v72 = vld [vmem:[%s1 + $0x100] sm:$0xff]
  %v73 = vld [vmem:[%s1 + $0x108] sm:$0xff]
  %v74 = vld [vmem:[%s1 + $0x110] sm:$0xff]
  %v75 = vld [vmem:[%s1 + $0x118] sm:$0xff]
  %v76 = vld [vmem:[%s1 + $0x120] sm:$0xff]
  %v77 = vld [vmem:[%s1 + $0x128] sm:$0xff]
  %v78 = vld [vmem:[%s1 + $0x130] sm:$0xff]
  %v79 = vld [vmem:[%s1 + $0x138] sm:$0xff]
  %v80 = vld [vmem:[%s1 + $0x140] sm:$0xff]
  %v81 = vld [vmem:[%s1 + $0x148] sm:$0xff]
  %v82 = vld [vmem:[%s1 + $0x150] sm:$0xff]
  %v83 = vld [vmem:[%s1 + $0x158] sm:$0xff]
  %v84 = vld [vmem:[%s1 + $0x160] sm:$0xff]
  %v85 = vld [vmem:[%s1 + $0x168] sm:$0xff]
  %v86 = vld [vmem:[%s1 + $0x170] sm:$0xff]
  %v87 = vld [vmem:[%s1 + $0x178] sm:$0xff]
  %v88 = vld [vmem:[%s1 + $0x180] sm:$0xff]
  %v89 = vld [vmem:[%s1 + $0x188] sm:$0xff]
  %v90 = vld [vmem:[%s1 + $0x190] sm:$0xff]
  %v91 = vld [vmem:[%s1 + $0x198] sm:$0xff]
  %v92 = vld [vmem:[%s1 + $0x1a0] sm:$0xff]
  %v93 = vld [vmem:[%s1 + $0x1a8] sm:$0xff]
  %v94 = vld [vmem:[%s1 + $0x1b0] sm:$0xff]
  %v95 = vld [vmem:[%s1 + $0x1b8] sm:$0xff]
  %v96 = vld [vmem:[%s1 + $0x1c0] sm:$0xff]
  %v97 = vld [vmem:[%s1 + $0x1c8] sm:$0xff]
  %v98 = vld [vmem:[%s1 + $0x1d0] sm:$0xff]
  %v99 = vld [vmem:[%s1 + $0x1d8] sm:$0xff]
  %v100 = vld [vmem:[%s1 + $0x1e0] sm:$0xff]
  %v101 = vld [vmem:[%s1 + $0x1e8] sm:$0xff]
  %v102 = vld [vmem:[%s1 + $0x1f0] sm:$0xff]
  %v103 = vld [vmem:[%s1 + $0x1f8] sm:$0xff]
  %v104 = vld [vmem:[%s1 + $0x200] sm:$0xff]
  %v105 = vld [vmem:[%s1 + $0x208] sm:$0xff]
  %v106 = vld [vmem:[%s1 + $0x210] sm:$0xff]
  %v107 = vld [vmem:[%s1 + $0x218] sm:$0xff]
  %v108 = vld [vmem:[%s1 + $0x220] sm:$0xff]
  %v109 = vld [vmem:[%s1 + $0x228] sm:$0xff]
  %v110 = vld [vmem:[%s1 + $0x230] sm:$0xff]
  %v111 = vld [vmem:[%s1 + $0x238] sm:$0xff]
  %v112 = vld [vmem:[%s1 + $0x240] sm:$0xff]
  %v113 = vld [vmem:[%s1 + $0x248] sm:$0xff]
  %v114 = vld [vmem:[%s1 + $0x250] sm:$0xff]
  %v115 = vld [vmem:[%s1 + $0x258] sm:$0xff]
  %v116 = vld [vmem:[%s1 + $0x260] sm:$0xff]
  %v117 = vld [vmem:[%s1 + $0x268] sm:$0xff]
  %v118 = vld [vmem:[%s1 + $0x270] sm:$0xff]
  %v119 = vld [vmem:[%s1 + $0x278] sm:$0xff]
  %v120 = vld [vmem:[%s1 + $0x280] sm:$0xff]
  %v121 = vld [vmem:[%s1 + $0x288] sm:$0xff]
  %v122 = vld [vmem:[%s1 + $0x290] sm:$0xff]
  %v123 = vld [vmem:[%s1 + $0x298] sm:$0xff]
  %v124 = vld [vmem:[%s1 + $0x2a0] sm:$0xff]
  %v125 = vld [vmem:[%s1 + $0x2a8] sm:$0xff]
  %v126 = vld [vmem:[%s1 + $0x2b0] sm:$0xff]
  %v127 = vld [vmem:[%s1 + $0x2b8] sm:$0xff]
  %v128 = vld [vmem:[%s1 + $0x2c0] sm:$0xff]
  %v129 = vld [vmem:[%s1 + $0x2c8] sm:$0xff]
  %v130 = vld [vmem:[%s1 + $0x2d0] sm:$0xff]
  %v131 = vld [vmem:[%s1 + $0x2d8] sm:$0xff]
  %v132 = vld [vmem:[%s1 + $0x2e0] sm:$0xff]
  %v133 = vld [vmem:[%s1 + $0x2e8] sm:$0xff]
  %v134 = vld [vmem:[%s1 + $0x2f0] sm:$0xff]
  %v135 = vld [vmem:[%s1 + $0x2f8] sm:$0xff]
  %136 = vmatprep.subr.mxu0 %v41
  %137 = vmatpush1.msra.mxu0 %v40
  %138 = vmatprep.subr.mxu0 %v44
  %139 = vmatpush1.msra.mxu0 %v43
  %140 = vmatprep.subr.mxu0 %v47
  %141 = vmatpush1.msra.mxu0 %v46
  %142 = vmatprep.subr.mxu0 %v50
  %143 = vmatpush1.msra.mxu0 %v49
  %144 = vmatprep.subr.mxu0 %v53
  %145 = vmatpush1.msra.mxu0 %v52
  %146 = vmatprep.subr.mxu0 %v56
  %147 = vmatpush1.msra.mxu0 %v55
  %148 = vmatprep.subr.mxu0 %v59
  %149 = vmatpush1.msra.mxu0 %v58
  %150 = vmatprep.subr.mxu0 %v62
  %151 = vmatpush1.msra.mxu0 %v61
  %152 = vmatprep.subr.mxu0 %v65
  %153 = vmatpush1.msra.mxu0 %v64
  %154 = vmatprep.subr.mxu0 %v68
  %155 = vmatpush1.msra.mxu0 %v67
  %156 = vmatprep.subr.mxu0 %v71
  %157 = vmatpush1.msra.mxu0 %v70
  %158 = vmatprep.subr.mxu0 %v74
  %159 = vmatpush1.msra.mxu0 %v73
  %160 = vmatprep.subr.mxu0 %v77
  %161 = vmatpush1.msra.mxu0 %v76
  %162 = vmatprep.subr.mxu0 %v80
  %163 = vmatpush1.msra.mxu0 %v79
  %164 = vmatprep.subr.mxu0 %v83
  %165 = vmatpush1.msra.mxu0 %v82
  %166 = vmatprep.subr.mxu0 %v86
  %167 = vmatpush1.msra.mxu0 %v85
  %168 = vmatprep.subr.mxu0 %v89
  %169 = vmatpush1.msra.mxu0 %v88
  %170 = vmatprep.subr.mxu0 %v92
  %171 = vmatpush1.msra.mxu0 %v91
  %172 = vmatprep.subr.mxu0 %v95
  %173 = vmatpush1.msra.mxu0 %v94
  %174 = vmatprep.subr.mxu0 %v98
  %175 = vmatpush1.msra.mxu0 %v97
  %176 = vmatprep.subr.mxu0 %v101
  %177 = vmatpush1.msra.mxu0 %v100
  %178 = vmatprep.subr.mxu0 %v104
  %179 = vmatpush1.msra.mxu0 %v103
  %180 = vmatprep.subr.mxu0 %v107
  %181 = vmatpush1.msra.mxu0 %v106
  %182 = vmatprep.subr.mxu0 %v110
  %183 = vmatpush1.msra.mxu0 %v109
  %184 = vmatprep.subr.mxu0 %v113
  %185 = vmatpush1.msra.mxu0 %v112
  %186 = vmatprep.subr.mxu0 %v116
  %187 = vmatpush1.msra.mxu0 %v115
  %188 = vmatprep.subr.mxu0 %v119
  %189 = vmatpush1.msra.mxu0 %v118
  %190 = vmatprep.subr.mxu0 %v122
  %191 = vmatpush1.msra.mxu0 %v121
  %192 = vmatprep.subr.mxu0 %v125
  %193 = vmatpush1.msra.mxu0 %v124
  %194 = vmatprep.subr.mxu0 %v128
  %195 = vmatpush1.msra.mxu0 %v127
  %196 = vmatprep.subr.mxu0 %v131
  %197 = vmatpush1.msra.mxu0 %v130
  %198 = vmatprep.subr.mxu0 %v134
  %199 = vmatpush1.msra.mxu0 %v133
  %200 = vmatprep.mubr.f32.mxu0 %v39
  %201 = vmatmul.mubr.f32.gmra.mrb[0].mxu0 %v38
  %v202 = vpop.f32.mrb[0].mxu0
  %v203 = vadd.f32 0.0, %v202
  %v204 = vpop.f32.mrb[0].mxu0
  %v205 = vadd.f32 0.0, %v204
  %206 = vdwg.mxu0
  %207 = vmatprep.subr.mxu0 0.0
  %208 = vmatpush1.msra.mxu0 %v42
  %209 = vmatprep.subr.mxu0 0.0
  %210 = vmatpush1.msra.mxu0 %v45
  %211 = vmatprep.subr.mxu0 0.0
  %212 = vmatpush1.msra.mxu0 %v48
  %213 = vmatprep.subr.mxu0 0.0
  %214 = vmatpush1.msra.mxu0 %v51
  %215 = vmatprep.subr.mxu0 0.0
  %216 = vmatpush1.msra.mxu0 %v54
  %217 = vmatprep.subr.mxu0 0.0
  %218 = vmatpush1.msra.mxu0 %v57
  %219 = vmatprep.subr.mxu0 0.0
  %220 = vmatpush1.msra.mxu0 %v60
  %221 = vmatprep.subr.mxu0 0.0
  %222 = vmatpush1.msra.mxu0 %v63
  %223 = vmatprep.subr.mxu0 0.0
  %224 = vmatpush1.msra.mxu0 %v66
  %225 = vmatprep.subr.mxu0 0.0
  %226 = vmatpush1.msra.mxu0 %v69
  %227 = vmatprep.subr.mxu0 0.0
  %228 = vmatpush1.msra.mxu0 %v72
  %229 = vmatprep.subr.mxu0 0.0
  %230 = vmatpush1.msra.mxu0 %v75
  %231 = vmatprep.subr.mxu0 0.0
  %232 = vmatpush1.msra.mxu0 %v78
  %233 = vmatprep.subr.mxu0 0.0
  %234 = vmatpush1.msra.mxu0 %v81
  %235 = vmatprep.subr.mxu0 0.0
  %236 = vmatpush1.msra.mxu0 %v84
  %237 = vmatprep.subr.mxu0 0.0
  %238 = vmatpush1.msra.mxu0 %v87
  %239 = vmatprep.subr.mxu0 0.0
  %240 = vmatpush1.msra.mxu0 %v90
  %241 = vmatprep.subr.mxu0 0.0
  %242 = vmatpush1.msra.mxu0 %v93
  %243 = vmatprep.subr.mxu0 0.0
  %244 = vmatpush1.msra.mxu0 %v96
  %245 = vmatprep.subr.mxu0 0.0
  %246 = vmatpush1.msra.mxu0 %v99
  %247 = vmatprep.subr.mxu0 0.0
  %248 = vmatpush1.msra.mxu0 %v102
  %249 = vmatprep.subr.mxu0 0.0
  %250 = vmatpush1.msra.mxu0 %v105
  %251 = vmatprep.subr.mxu0 0.0
  %252 = vmatpush1.msra.mxu0 %v108
  %253 = vmatprep.subr.mxu0 0.0
  %254 = vmatpush1.msra.mxu0 %v111
  %255 = vmatprep.subr.mxu0 0.0
  %256 = vmatpush1.msra.mxu0 %v114
  %257 = vmatprep.subr.mxu0 0.0
  %258 = vmatpush1.msra.mxu0 %v117
  %259 = vmatprep.subr.mxu0 0.0
  %260 = vmatpush1.msra.mxu0 %v120
  %261 = vmatprep.subr.mxu0 0.0
  %262 = vmatpush1.msra.mxu0 %v123
  %263 = vmatprep.subr.mxu0 0.0
  %264 = vmatpush1.msra.mxu0 %v126
  %265 = vmatprep.subr.mxu0 0.0
  %266 = vmatpush1.msra.mxu0 %v129
  %267 = vmatprep.subr.mxu0 0.0
  %268 = vmatpush1.msra.mxu0 %v132
  %269 = vmatprep.subr.mxu0 0.0
  %270 = vmatpush1.msra.mxu0 %v135
  %271 = vmatprep.mubr.f32.mxu0 %v39
  %272 = vmatmul.mubr.f32.gmra.mrb[0].mxu0 %v38
  %v273 = vpop.f32.mrb[0].mxu0
  %v274 = vadd.f32 0.0, %v273
  %v275 = vpop.f32.mrb[0].mxu0
  %276 = vdwg.mxu0
  %280 = vrot.lane.b32.xlu0 %v203, 127
  %v281 = vpop.permute.xlu0 %280
  %282 = vrot.lane.b32.xlu0 %v205, 127
  %v283 = vpop.permute.xlu0 %282
  %284 = vrot.lane.b32.xlu0 %v274, 127
  %v285 = vpop.permute.xlu0 %284
  %vm286 = vcmask 1039360
  %v287 = vsel %vm286, %v281, %v283
  %v288 = vsel %vm286, %v283, %v285
  %292 = vrot.lane.b32.xlu0 %v203, 126
  %v293 = vpop.permute.xlu0 %292
  %294 = vrot.lane.b32.xlu0 %v205, 126
  %v295 = vpop.permute.xlu0 %294
  %296 = vrot.lane.b32.xlu0 %v274, 126
  %v297 = vpop.permute.xlu0 %296
  %vm298 = vcmask 1031168
  %v299 = vsel %vm298, %v293, %v295
  %v300 = vsel %vm298, %v295, %v297
  %304 = vrot.lane.b32.xlu0 %v203, 110
  %v305 = vpop.permute.xlu0 %304
  %306 = vrot.lane.b32.xlu0 %v205, 110
  %v307 = vpop.permute.xlu0 %306
  %308 = vrot.lane.b32.xlu0 %v274, 110
  %v309 = vpop.permute.xlu0 %308
  %vm310 = vcmask 900096
  %v311 = vsel %vm310, %v305, %v307
  %v312 = vsel %vm310, %v307, %v309
  %316 = vrot.lane.b32.xlu0 %v203, 109
  %v317 = vpop.permute.xlu0 %316
  %318 = vrot.lane.b32.xlu0 %v205, 109
  %v319 = vpop.permute.xlu0 %318
  %320 = vrot.lane.b32.xlu0 %v274, 109
  %v321 = vpop.permute.xlu0 %320
  %vm322 = vcmask 891904
  %v323 = vsel %vm322, %v317, %v319
  %v324 = vsel %vm322, %v319, %v321
  %328 = vrot.lane.b32.xlu0 %v203, 108
  %v329 = vpop.permute.xlu0 %328
  %330 = vrot.lane.b32.xlu0 %v205, 108
  %v331 = vpop.permute.xlu0 %330
  %332 = vrot.lane.b32.xlu0 %v274, 108
  %v333 = vpop.permute.xlu0 %332
  %vm334 = vcmask 883712
  %v335 = vsel %vm334, %v329, %v331
  %v336 = vsel %vm334, %v331, %v333
  %340 = vrot.lane.b32.xlu0 %v203, 92
  %v341 = vpop.permute.xlu0 %340
  %342 = vrot.lane.b32.xlu0 %v205, 92
  %v343 = vpop.permute.xlu0 %342
  %344 = vrot.lane.b32.xlu0 %v274, 92
  %v345 = vpop.permute.xlu0 %344
  %vm346 = vcmask 752640
  %v347 = vsel %vm346, %v341, %v343
  %v348 = vsel %vm346, %v343, %v345
  %352 = vrot.lane.b32.xlu0 %v203, 91
  %v353 = vpop.permute.xlu0 %352
  %354 = vrot.lane.b32.xlu0 %v205, 91
  %v355 = vpop.permute.xlu0 %354
  %356 = vrot.lane.b32.xlu0 %v274, 91
  %v357 = vpop.permute.xlu0 %356
  %vm358 = vcmask 744448
  %v359 = vsel %vm358, %v353, %v355
  %v360 = vsel %vm358, %v355, %v357
  %364 = vrot.lane.b32.xlu0 %v203, 90
  %v365 = vpop.permute.xlu0 %364
  %366 = vrot.lane.b32.xlu0 %v205, 90
  %v367 = vpop.permute.xlu0 %366
  %368 = vrot.lane.b32.xlu0 %v274, 90
  %v369 = vpop.permute.xlu0 %368
  %vm370 = vcmask 736256
  %v371 = vsel %vm370, %v365, %v367
  %v372 = vsel %vm370, %v367, %v369
  %v376 = vld [vmem:[%s2] sm:$0xff]
  %v377 = vld [vmem:[%s2 + $0x8] sm:$0xff]
  %v378 = vld [vmem:[%s2 + $0x10] sm:$0xff]
  %v379 = vld [vmem:[%s2 + $0x18] sm:$0xff]
  %v380 = vld [vmem:[%s2 + $0x20] sm:$0xff]
  %v381 = vld [vmem:[%s2 + $0x28] sm:$0xff]
  %v382 = vld [vmem:[%s2 + $0x30] sm:$0xff]
  %v383 = vld [vmem:[%s2 + $0x38] sm:$0xff]
  %v384 = vld [vmem:[%s3] sm:$0xff]
  %v385 = vld [vmem:[%s3 + $0x8] sm:$0xff]
  %v386 = vld [vmem:[%s3 + $0x10] sm:$0xff]
  %v387 = vld [vmem:[%s3 + $0x18] sm:$0xff]
  %v388 = vld [vmem:[%s3 + $0x20] sm:$0xff]
  %v389 = vld [vmem:[%s3 + $0x28] sm:$0xff]
  %v390 = vld [vmem:[%s3 + $0x30] sm:$0xff]
  %v391 = vld [vmem:[%s3 + $0x38] sm:$0xff]
  %393 = vset.pattern.permute.xlu0 0
  %394 = vperm.xlu0 %393, %v384
  %v395 = vpop.permute.xlu0 %394
  %398 = vset.pattern.permute.xlu0 0
  %399 = vperm.xlu0 %398, %v385
  %v400 = vpop.permute.xlu0 %399
  %403 = vset.pattern.permute.xlu0 0
  %404 = vperm.xlu0 %403, %v386
  %v405 = vpop.permute.xlu0 %404
  %408 = vset.pattern.permute.xlu0 0
  %409 = vperm.xlu0 %408, %v387
  %v410 = vpop.permute.xlu0 %409
  %413 = vset.pattern.permute.xlu0 0
  %414 = vperm.xlu0 %413, %v388
  %v415 = vpop.permute.xlu0 %414
  %418 = vset.pattern.permute.xlu0 0
  %419 = vperm.xlu0 %418, %v389
  %v420 = vpop.permute.xlu0 %419
  %423 = vset.pattern.permute.xlu0 0
  %424 = vperm.xlu0 %423, %v390
  %v425 = vpop.permute.xlu0 %424
  %428 = vset.pattern.permute.xlu0 0
  %429 = vperm.xlu0 %428, %v391
  %v430 = vpop.permute.xlu0 %429
  %vm432 = vcmask 588800
  %v434 = vsel %vm432, %v376, 0
  %v437 = vsel %vm432, %v377, 0
  %v440 = vsel %vm432, %v378, 0
  %v443 = vsel %vm432, %v379, 0
  %v446 = vsel %vm432, %v380, 0
  %v449 = vsel %vm432, %v381, 0
  %v452 = vsel %vm432, %v382, 0
  %v455 = vsel %vm432, %v383, 0
  %457 = vmatprep.subr.mxu0 %v205
  %458 = vmatpush1.msra.mxu0 %v203
  %459 = vmatprep.subr.mxu0 %v288
  %460 = vmatpush1.msra.mxu0 %v287
  %461 = vmatprep.subr.mxu0 %v300
  %462 = vmatpush1.msra.mxu0 %v299
  %463 = vmatprep.subr.mxu0 %v312
  %464 = vmatpush1.msra.mxu0 %v311
  %465 = vmatprep.subr.mxu0 %v324
  %466 = vmatpush1.msra.mxu0 %v323
  %467 = vmatprep.subr.mxu0 %v336
  %468 = vmatpush1.msra.mxu0 %v335
  %469 = vmatprep.subr.mxu0 %v348
  %470 = vmatpush1.msra.mxu0 %v347
  %471 = vmatprep.subr.mxu0 %v360
  %472 = vmatpush1.msra.mxu0 %v359
  %473 = vmatprep.subr.mxu0 %v372
  %474 = vmatpush1.msra.mxu0 %v371
  %475 = vmatprep.subr.mxu0 0.0
  %476 = vmatpush1.msra.mxu0 0.0
  %477 = vmatprep.subr.mxu0 0.0
  %478 = vmatpush1.msra.mxu0 0.0
  %479 = vmatprep.subr.mxu0 0.0
  %480 = vmatpush1.msra.mxu0 0.0
  %481 = vmatprep.subr.mxu0 0.0
  %482 = vmatpush1.msra.mxu0 0.0
  %483 = vmatprep.subr.mxu0 0.0
  %484 = vmatpush1.msra.mxu0 0.0
  %485 = vmatprep.subr.mxu0 0.0
  %486 = vmatpush1.msra.mxu0 0.0
  %487 = vmatprep.subr.mxu0 0.0
  %488 = vmatpush1.msra.mxu0 0.0
  %489 = vmatprep.subr.mxu0 0.0
  %490 = vmatpush1.msra.mxu0 0.0
  %491 = vmatprep.subr.mxu0 0.0
  %492 = vmatpush1.msra.mxu0 0.0
  %493 = vmatprep.subr.mxu0 0.0
  %494 = vmatpush1.msra.mxu0 0.0
  %495 = vmatprep.subr.mxu0 0.0
  %496 = vmatpush1.msra.mxu0 0.0
  %497 = vmatprep.subr.mxu0 0.0
  %498 = vmatpush1.msra.mxu0 0.0
  %499 = vmatprep.subr.mxu0 0.0
  %500 = vmatpush1.msra.mxu0 0.0
  %501 = vmatprep.subr.mxu0 0.0
  %502 = vmatpush1.msra.mxu0 0.0
  %503 = vmatprep.subr.mxu0 0.0
  %504 = vmatpush1.msra.mxu0 0.0
  %505 = vmatprep.subr.mxu0 0.0
  %506 = vmatpush1.msra.mxu0 0.0
  %507 = vmatprep.subr.mxu0 0.0
  %508 = vmatpush1.msra.mxu0 0.0
  %509 = vmatprep.subr.mxu0 0.0
  %510 = vmatpush1.msra.mxu0 0.0
  %511 = vmatprep.subr.mxu0 0.0
  %512 = vmatpush1.msra.mxu0 0.0
  %513 = vmatprep.subr.mxu0 0.0
  %514 = vmatpush1.msra.mxu0 0.0
  %515 = vmatprep.subr.mxu0 0.0
  %516 = vmatpush1.msra.mxu0 0.0
  %517 = vmatprep.subr.mxu0 0.0
  %518 = vmatpush1.msra.mxu0 0.0
  %519 = vmatprep.subr.mxu0 0.0
  %520 = vmatpush1.msra.mxu0 0.0
  %521 = vmatprep.mubr.f32.mxu0 0.0
  %522 = vmatmul.mubr.f32.gmra.mrb[0].mxu0 %v434
  %v523 = vpop.f32.mrb[0].mxu0
  %v524 = vadd.f32 %v395, %v523
  %v525 = vpop.f32.mrb[0].mxu0
  %v526 = vadd.f32 %v395, %v525
  %527 = vmatprep.mubr.f32.mxu0 0.0
  %528 = vmatmul.mubr.f32.gmra.mrb[0].mxu0 %v437
  %v529 = vpop.f32.mrb[0].mxu0
  %v530 = vadd.f32 %v400, %v529
  %v531 = vpop.f32.mrb[0].mxu0
  %v532 = vadd.f32 %v400, %v531
  %533 = vmatprep.mubr.f32.mxu0 0.0
  %534 = vmatmul.mubr.f32.gmra.mrb[0].mxu0 %v440
  %v535 = vpop.f32.mrb[0].mxu0
  %v536 = vadd.f32 %v405, %v535
  %v537 = vpop.f32.mrb[0].mxu0
  %v538 = vadd.f32 %v405, %v537
  %539 = vmatprep.mubr.f32.mxu0 0.0
  %540 = vmatmul.mubr.f32.gmra.mrb[0].mxu0 %v443
  %v541 = vpop.f32.mrb[0].mxu0
  %v542 = vadd.f32 %v410, %v541
  %v543 = vpop.f32.mrb[0].mxu0
  %v544 = vadd.f32 %v410, %v543
  %545 = vmatprep.mubr.f32.mxu0 0.0
  %546 = vmatmul.mubr.f32.gmra.mrb[0].mxu0 %v446
  %v547 = vpop.f32.mrb[0].mxu0
  %v548 = vadd.f32 %v415, %v547
  %v549 = vpop.f32.mrb[0].mxu0
  %v550 = vadd.f32 %v415, %v549
  %551 = vmatprep.mubr.f32.mxu0 0.0
  %552 = vmatmul.mubr.f32.gmra.mrb[0].mxu0 %v449
  %v553 = vpop.f32.mrb[0].mxu0
  %v554 = vadd.f32 %v420, %v553
  %v555 = vpop.f32.mrb[0].mxu0
  %v556 = vadd.f32 %v420, %v555
  %557 = vmatprep.mubr.f32.mxu0 0.0
  %558 = vmatmul.mubr.f32.gmra.mrb[0].mxu0 %v452
  %v559 = vpop.f32.mrb[0].mxu0
  %v560 = vadd.f32 %v425, %v559
  %v561 = vpop.f32.mrb[0].mxu0
  %v562 = vadd.f32 %v425, %v561
  %563 = vmatprep.mubr.f32.mxu0 0.0
  %564 = vmatmul.mubr.f32.gmra.mrb[0].mxu0 %v455
  %v565 = vpop.f32.mrb[0].mxu0
  %v566 = vadd.f32 %v430, %v565
  %v567 = vpop.f32.mrb[0].mxu0
  %v568 = vadd.f32 %v430, %v567
  %569 = vdwg.mxu0
  %570 = vmatprep.subr.mxu0 0.0
  %571 = vmatpush1.msra.mxu0 %v274
  %572 = vmatprep.subr.mxu0 0.0
  %573 = vmatpush1.msra.mxu0 %v285
  %574 = vmatprep.subr.mxu0 0.0
  %575 = vmatpush1.msra.mxu0 %v297
  %576 = vmatprep.subr.mxu0 0.0
  %577 = vmatpush1.msra.mxu0 %v309
  %578 = vmatprep.subr.mxu0 0.0
  %579 = vmatpush1.msra.mxu0 %v321
  %580 = vmatprep.subr.mxu0 0.0
  %581 = vmatpush1.msra.mxu0 %v333
  %582 = vmatprep.subr.mxu0 0.0
  %583 = vmatpush1.msra.mxu0 %v345
  %584 = vmatprep.subr.mxu0 0.0
  %585 = vmatpush1.msra.mxu0 %v357
  %586 = vmatprep.subr.mxu0 0.0
  %587 = vmatpush1.msra.mxu0 %v369
  %588 = vmatprep.subr.mxu0 0.0
  %589 = vmatpush1.msra.mxu0 0.0
  %590 = vmatprep.subr.mxu0 0.0
  %591 = vmatpush1.msra.mxu0 0.0
  %592 = vmatprep.subr.mxu0 0.0
  %593 = vmatpush1.msra.mxu0 0.0
  %594 = vmatprep.subr.mxu0 0.0
  %595 = vmatpush1.msra.mxu0 0.0
  %596 = vmatprep.subr.mxu0 0.0
  %597 = vmatpush1.msra.mxu0 0.0
  %598 = vmatprep.subr.mxu0 0.0
  %599 = vmatpush1.msra.mxu0 0.0
  %600 = vmatprep.subr.mxu0 0.0
  %601 = vmatpush1.msra.mxu0 0.0
  %602 = vmatprep.subr.mxu0 0.0
  %603 = vmatpush1.msra.mxu0 0.0
  %604 = vmatprep.subr.mxu0 0.0
  %605 = vmatpush1.msra.mxu0 0.0
  %606 = vmatprep.subr.mxu0 0.0
  %607 = vmatpush1.msra.mxu0 0.0
  %608 = vmatprep.subr.mxu0 0.0
  %609 = vmatpush1.msra.mxu0 0.0
  %610 = vmatprep.subr.mxu0 0.0
  %611 = vmatpush1.msra.mxu0 0.0
  %612 = vmatprep.subr.mxu0 0.0
  %613 = vmatpush1.msra.mxu0 0.0
  %614 = vmatprep.subr.mxu0 0.0
  %615 = vmatpush1.msra.mxu0 0.0
  %616 = vmatprep.subr.mxu0 0.0
  %617 = vmatpush1.msra.mxu0 0.0
  %618 = vmatprep.subr.mxu0 0.0
  %619 = vmatpush1.msra.mxu0 0.0
  %620 = vmatprep.subr.mxu0 0.0
  %621 = vmatpush1.msra.mxu0 0.0
  %622 = vmatprep.subr.mxu0 0.0
  %623 = vmatpush1.msra.mxu0 0.0
  %624 = vmatprep.subr.mxu0 0.0
  %625 = vmatpush1.msra.mxu0 0.0
  %626 = vmatprep.subr.mxu0 0.0
  %627 = vmatpush1.msra.mxu0 0.0
  %628 = vmatprep.subr.mxu0 0.0
  %629 = vmatpush1.msra.mxu0 0.0
  %630 = vmatprep.subr.mxu0 0.0
  %631 = vmatpush1.msra.mxu0 0.0
  %632 = vmatprep.subr.mxu0 0.0
  %633 = vmatpush1.msra.mxu0 0.0
  %634 = vmatprep.mubr.f32.mxu0 0.0
  %635 = vmatmul.mubr.f32.gmra.mrb[0].mxu0 %v434
  %v636 = vpop.f32.mrb[0].mxu0
  %v637 = vadd.f32 %v395, %v636
  %v638 = vpop.f32.mrb[0].mxu0
  %639 = vmatprep.mubr.f32.mxu0 0.0
  %640 = vmatmul.mubr.f32.gmra.mrb[0].mxu0 %v437
  %v641 = vpop.f32.mrb[0].mxu0
  %v642 = vadd.f32 %v400, %v641
  %v643 = vpop.f32.mrb[0].mxu0
  %644 = vmatprep.mubr.f32.mxu0 0.0
  %645 = vmatmul.mubr.f32.gmra.mrb[0].mxu0 %v440
  %v646 = vpop.f32.mrb[0].mxu0
  %v647 = vadd.f32 %v405, %v646
  %v648 = vpop.f32.mrb[0].mxu0
  %649 = vmatprep.mubr.f32.mxu0 0.0
  %650 = vmatmul.mubr.f32.gmra.mrb[0].mxu0 %v443
  %v651 = vpop.f32.mrb[0].mxu0
  %v652 = vadd.f32 %v410, %v651
  %v653 = vpop.f32.mrb[0].mxu0
  %654 = vmatprep.mubr.f32.mxu0 0.0
  %655 = vmatmul.mubr.f32.gmra.mrb[0].mxu0 %v446
  %v656 = vpop.f32.mrb[0].mxu0
  %v657 = vadd.f32 %v415, %v656
  %v658 = vpop.f32.mrb[0].mxu0
  %659 = vmatprep.mubr.f32.mxu0 0.0
  %660 = vmatmul.mubr.f32.gmra.mrb[0].mxu0 %v449
  %v661 = vpop.f32.mrb[0].mxu0
  %v662 = vadd.f32 %v420, %v661
  %v663 = vpop.f32.mrb[0].mxu0
  %664 = vmatprep.mubr.f32.mxu0 0.0
  %665 = vmatmul.mubr.f32.gmra.mrb[0].mxu0 %v452
  %v666 = vpop.f32.mrb[0].mxu0
  %v667 = vadd.f32 %v425, %v666
  %v668 = vpop.f32.mrb[0].mxu0
  %669 = vmatprep.mubr.f32.mxu0 0.0
  %670 = vmatmul.mubr.f32.gmra.mrb[0].mxu0 %v455
  %v671 = vpop.f32.mrb[0].mxu0
  %v672 = vadd.f32 %v430, %v671
  %v673 = vpop.f32.mrb[0].mxu0
  %674 = vdwg.mxu0
  %v675 = vmax.f32 %v524, 0.0
  %v676 = vmax.f32 %v526, 0.0
  %v677 = vmax.f32 %v637, 0.0
  %v678 = vmax.f32 %v530, 0.0
  %v679 = vmax.f32 %v532, 0.0
  %v680 = vmax.f32 %v642, 0.0
  %v681 = vmax.f32 %v536, 0.0
  %v682 = vmax.f32 %v538, 0.0
  %v683 = vmax.f32 %v647, 0.0
  %v684 = vmax.f32 %v542, 0.0
  %v685 = vmax.f32 %v544, 0.0
  %v686 = vmax.f32 %v652, 0.0
  %v687 = vmax.f32 %v548, 0.0
  %v688 = vmax.f32 %v550, 0.0
  %v689 = vmax.f32 %v657, 0.0
  %v690 = vmax.f32 %v554, 0.0
  %v691 = vmax.f32 %v556, 0.0
  %v692 = vmax.f32 %v662, 0.0
  %v693 = vmax.f32 %v560, 0.0
  %v694 = vmax.f32 %v562, 0.0
  %v695 = vmax.f32 %v667, 0.0
  %v696 = vmax.f32 %v566, 0.0
  %v697 = vmax.f32 %v568, 0.0
  %v698 = vmax.f32 %v672, 0.0
  %v699 = vld [vmem:[%s4] sm:$0xff]
  %v700 = vld [vmem:[%s4 + $0x8] sm:$0xff]
  %v701 = vld [vmem:[%s4 + $0x10] sm:$0xff]
  %v702 = vld [vmem:[%s4 + $0x18] sm:$0xff]
  %v703 = vld [vmem:[%s4 + $0x20] sm:$0xff]
  %v704 = vld [vmem:[%s4 + $0x28] sm:$0xff]
  %v705 = vld [vmem:[%s4 + $0x30] sm:$0xff]
  %v706 = vld [vmem:[%s4 + $0x38] sm:$0xff]
  %v707 = vld [vmem:[%s4 + $0x40] sm:$0xff]
  %v708 = vld [vmem:[%s4 + $0x48] sm:$0xff]
  %v709 = vld [vmem:[%s4 + $0x50] sm:$0xff]
  %v710 = vld [vmem:[%s4 + $0x58] sm:$0xff]
  %v711 = vld [vmem:[%s4 + $0x60] sm:$0xff]
  %v712 = vld [vmem:[%s4 + $0x68] sm:$0xff]
  %v713 = vld [vmem:[%s4 + $0x70] sm:$0xff]
  %v714 = vld [vmem:[%s4 + $0x78] sm:$0xff]
  %v715 = vld [vmem:[%s4 + $0x80] sm:$0xff]
  %v716 = vld [vmem:[%s4 + $0x88] sm:$0xff]
  %v717 = vld [vmem:[%s4 + $0x90] sm:$0xff]
  %v718 = vld [vmem:[%s4 + $0x98] sm:$0xff]
  %v719 = vld [vmem:[%s4 + $0xa0] sm:$0xff]
  %v720 = vld [vmem:[%s4 + $0xa8] sm:$0xff]
  %v721 = vld [vmem:[%s4 + $0xb0] sm:$0xff]
  %v722 = vld [vmem:[%s4 + $0xb8] sm:$0xff]
  %v723 = vld [vmem:[%s4 + $0xc0] sm:$0xff]
  %v724 = vld [vmem:[%s4 + $0xc8] sm:$0xff]
  %v725 = vld [vmem:[%s4 + $0xd0] sm:$0xff]
  %v726 = vld [vmem:[%s4 + $0xd8] sm:$0xff]
  %v727 = vld [vmem:[%s4 + $0xe0] sm:$0xff]
  %v728 = vld [vmem:[%s4 + $0xe8] sm:$0xff]
  %v729 = vld [vmem:[%s4 + $0xf0] sm:$0xff]
  %v730 = vld [vmem:[%s4 + $0xf8] sm:$0xff]
  %v731 = vld [vmem:[%s4 + $0x100] sm:$0xff]
  %v732 = vld [vmem:[%s4 + $0x108] sm:$0xff]
  %v733 = vld [vmem:[%s4 + $0x110] sm:$0xff]
  %v734 = vld [vmem:[%s4 + $0x118] sm:$0xff]
  %vm735 = vcmask 261120
  %v737 = vsel %vm735, %v677, 0
  %v740 = vsel %vm735, %v680, 0
  %v743 = vsel %vm735, %v683, 0
  %v746 = vsel %vm735, %v686, 0
  %v749 = vsel %vm735, %v689, 0
  %v752 = vsel %vm735, %v692, 0
  %v755 = vsel %vm735, %v695, 0
  %v758 = vsel %vm735, %v698, 0
  %760 = vmatprep.subr.mxu0 0.0
  %761 = vmatpush1.msra.mxu0 %v699
  %762 = vmatprep.subr.mxu0 0.0
  %763 = vmatpush1.msra.mxu0 %v700
  %764 = vmatprep.subr.mxu0 0.0
  %765 = vmatpush1.msra.mxu0 %v701
  %766 = vmatprep.subr.mxu0 0.0
  %767 = vmatpush1.msra.mxu0 %v702
  %768 = vmatprep.subr.mxu0 0.0
  %769 = vmatpush1.msra.mxu0 %v703
  %770 = vmatprep.subr.mxu0 0.0
  %771 = vmatpush1.msra.mxu0 %v704
  %772 = vmatprep.subr.mxu0 0.0
  %773 = vmatpush1.msra.mxu0 %v705
  %774 = vmatprep.subr.mxu0 0.0
  %775 = vmatpush1.msra.mxu0 %v706
  %776 = vmatprep.subr.mxu0 0.0
  %777 = vmatpush1.msra.mxu0 %v707
  %778 = vmatprep.subr.mxu0 0.0
  %779 = vmatpush1.msra.mxu0 %v708
  %780 = vmatprep.subr.mxu0 0.0
  %781 = vmatpush1.msra.mxu0 %v709
  %782 = vmatprep.subr.mxu0 0.0
  %783 = vmatpush1.msra.mxu0 %v710
  %784 = vmatprep.subr.mxu0 0.0
  %785 = vmatpush1.msra.mxu0 %v711
  %786 = vmatprep.subr.mxu0 0.0
  %787 = vmatpush1.msra.mxu0 %v712
  %788 = vmatprep.subr.mxu0 0.0
  %789 = vmatpush1.msra.mxu0 %v713
  %790 = vmatprep.subr.mxu0 0.0
  %791 = vmatpush1.msra.mxu0 %v714
  %792 = vmatprep.subr.mxu0 0.0
  %793 = vmatpush1.msra.mxu0 %v715
  %794 = vmatprep.subr.mxu0 0.0
  %795 = vmatpush1.msra.mxu0 %v716
  %796 = vmatprep.subr.mxu0 0.0
  %797 = vmatpush1.msra.mxu0 %v717
  %798 = vmatprep.subr.mxu0 0.0
  %799 = vmatpush1.msra.mxu0 %v718
  %800 = vmatprep.subr.mxu0 0.0
  %801 = vmatpush1.msra.mxu0 %v719
  %802 = vmatprep.subr.mxu0 0.0
  %803 = vmatpush1.msra.mxu0 %v720
  %804 = vmatprep.subr.mxu0 0.0
  %805 = vmatpush1.msra.mxu0 %v721
  %806 = vmatprep.subr.mxu0 0.0
  %807 = vmatpush1.msra.mxu0 %v722
  %808 = vmatprep.subr.mxu0 0.0
  %809 = vmatpush1.msra.mxu0 %v723
  %810 = vmatprep.subr.mxu0 0.0
  %811 = vmatpush1.msra.mxu0 %v724
  %812 = vmatprep.subr.mxu0 0.0
  %813 = vmatpush1.msra.mxu0 %v725
  %814 = vmatprep.subr.mxu0 0.0
  %815 = vmatpush1.msra.mxu0 %v726
  %816 = vmatprep.subr.mxu0 0.0
  %817 = vmatpush1.msra.mxu0 %v727
  %818 = vmatprep.subr.mxu0 0.0
  %819 = vmatpush1.msra.mxu0 %v728
  %820 = vmatprep.subr.mxu0 0.0
  %821 = vmatpush1.msra.mxu0 %v729
  %822 = vmatprep.subr.mxu0 0.0
  %823 = vmatpush1.msra.mxu0 %v730
  %824 = vmatprep.mubr.f32.mxu0 %v676
  %825 = vmatmul.mubr.f32.gmra.mrb[0].mxu0 %v675
  %v826 = vpop.f32.mrb[0].mxu0
  %v827 = vadd.f32 0.0, %v826
  %v828 = vpop.f32.mrb[0].mxu0
  %829 = vmatprep.mubr.f32.mxu0 %v679
  %830 = vmatmul.mubr.f32.gmra.mrb[0].mxu0 %v678
  %v831 = vpop.f32.mrb[0].mxu0
  %v832 = vadd.f32 0.0, %v831
  %v833 = vpop.f32.mrb[0].mxu0
  %834 = vmatprep.mubr.f32.mxu0 %v682
  %835 = vmatmul.mubr.f32.gmra.mrb[0].mxu0 %v681
  %v836 = vpop.f32.mrb[0].mxu0
  %v837 = vadd.f32 0.0, %v836
  %v838 = vpop.f32.mrb[0].mxu0
  %839 = vmatprep.mubr.f32.mxu0 %v685
  %840 = vmatmul.mubr.f32.gmra.mrb[0].mxu0 %v684
  %v841 = vpop.f32.mrb[0].mxu0
  %v842 = vadd.f32 0.0, %v841
  %v843 = vpop.f32.mrb[0].mxu0
  %844 = vmatprep.mubr.f32.mxu0 %v688
  %845 = vmatmul.mubr.f32.gmra.mrb[0].mxu0 %v687
  %v846 = vpop.f32.mrb[0].mxu0
  %v847 = vadd.f32 0.0, %v846
  %v848 = vpop.f32.mrb[0].mxu0
  %849 = vmatprep.mubr.f32.mxu0 %v691
  %850 = vmatmul.mubr.f32.gmra.mrb[0].mxu0 %v690
  %v851 = vpop.f32.mrb[0].mxu0
  %v852 = vadd.f32 0.0, %v851
  %v853 = vpop.f32.mrb[0].mxu0
  %854 = vmatprep.mubr.f32.mxu0 %v694
  %855 = vmatmul.mubr.f32.gmra.mrb[0].mxu0 %v693
  %v856 = vpop.f32.mrb[0].mxu0
  %v857 = vadd.f32 0.0, %v856
  %v858 = vpop.f32.mrb[0].mxu0
  %859 = vmatprep.mubr.f32.mxu0 %v697
  %860 = vmatmul.mubr.f32.gmra.mrb[0].mxu0 %v696
  %v861 = vpop.f32.mrb[0].mxu0
  %v862 = vadd.f32 0.0, %v861
  %v863 = vpop.f32.mrb[0].mxu0
  %864 = vdwg.mxu0
  %865 = vmatprep.subr.mxu0 0.0
  %866 = vmatpush1.msra.mxu0 %v731
  %867 = vmatprep.subr.mxu0 0.0
  %868 = vmatpush1.msra.mxu0 %v732
  %869 = vmatprep.subr.mxu0 0.0
  %870 = vmatpush1.msra.mxu0 %v733
  %871 = vmatprep.subr.mxu0 0.0
  %872 = vmatpush1.msra.mxu0 %v734
  %873 = vmatprep.subr.mxu0 0.0
  %874 = vmatpush1.msra.mxu0 0.0
  %875 = vmatprep.subr.mxu0 0.0
  %876 = vmatpush1.msra.mxu0 0.0
  %877 = vmatprep.subr.mxu0 0.0
  %878 = vmatpush1.msra.mxu0 0.0
  %879 = vmatprep.subr.mxu0 0.0
  %880 = vmatpush1.msra.mxu0 0.0
  %881 = vmatprep.subr.mxu0 0.0
  %882 = vmatpush1.msra.mxu0 0.0
  %883 = vmatprep.subr.mxu0 0.0
  %884 = vmatpush1.msra.mxu0 0.0
  %885 = vmatprep.subr.mxu0 0.0
  %886 = vmatpush1.msra.mxu0 0.0
  %887 = vmatprep.subr.mxu0 0.0
  %888 = vmatpush1.msra.mxu0 0.0
  %889 = vmatprep.subr.mxu0 0.0
  %890 = vmatpush1.msra.mxu0 0.0
  %891 = vmatprep.subr.mxu0 0.0
  %892 = vmatpush1.msra.mxu0 0.0
  %893 = vmatprep.subr.mxu0 0.0
  %894 = vmatpush1.msra.mxu0 0.0
  %895 = vmatprep.subr.mxu0 0.0
  %896 = vmatpush1.msra.mxu0 0.0
  %897 = vmatprep.subr.mxu0 0.0
  %898 = vmatpush1.msra.mxu0 0.0
  %899 = vmatprep.subr.mxu0 0.0
  %900 = vmatpush1.msra.mxu0 0.0
  %901 = vmatprep.subr.mxu0 0.0
  %902 = vmatpush1.msra.mxu0 0.0
  %903 = vmatprep.subr.mxu0 0.0
  %904 = vmatpush1.msra.mxu0 0.0
  %905 = vmatprep.subr.mxu0 0.0
  %906 = vmatpush1.msra.mxu0 0.0
  %907 = vmatprep.subr.mxu0 0.0
  %908 = vmatpush1.msra.mxu0 0.0
  %909 = vmatprep.subr.mxu0 0.0
  %910 = vmatpush1.msra.mxu0 0.0
  %911 = vmatprep.subr.mxu0 0.0
  %912 = vmatpush1.msra.mxu0 0.0
  %913 = vmatprep.subr.mxu0 0.0
  %914 = vmatpush1.msra.mxu0 0.0
  %915 = vmatprep.subr.mxu0 0.0
  %916 = vmatpush1.msra.mxu0 0.0
  %917 = vmatprep.subr.mxu0 0.0
  %918 = vmatpush1.msra.mxu0 0.0
  %919 = vmatprep.subr.mxu0 0.0
  %920 = vmatpush1.msra.mxu0 0.0
  %921 = vmatprep.subr.mxu0 0.0
  %922 = vmatpush1.msra.mxu0 0.0
  %923 = vmatprep.subr.mxu0 0.0
  %924 = vmatpush1.msra.mxu0 0.0
  %925 = vmatprep.subr.mxu0 0.0
  %926 = vmatpush1.msra.mxu0 0.0
  %927 = vmatprep.subr.mxu0 0.0
  %928 = vmatpush1.msra.mxu0 0.0
  %929 = vmatprep.mubr.f32.mxu0 0.0
  %930 = vmatmul.mubr.f32.gmra.mrb[0].mxu0 %v737
  %v931 = vpop.f32.mrb[0].mxu0
  %v932 = vadd.f32 %v827, %v931
  %v933 = vpop.f32.mrb[0].mxu0
  %934 = vmatprep.mubr.f32.mxu0 0.0
  %935 = vmatmul.mubr.f32.gmra.mrb[0].mxu0 %v740
  %v936 = vpop.f32.mrb[0].mxu0
  %v937 = vadd.f32 %v832, %v936
  %v938 = vpop.f32.mrb[0].mxu0
  %939 = vmatprep.mubr.f32.mxu0 0.0
  %940 = vmatmul.mubr.f32.gmra.mrb[0].mxu0 %v743
  %v941 = vpop.f32.mrb[0].mxu0
  %v942 = vadd.f32 %v837, %v941
  %v943 = vpop.f32.mrb[0].mxu0
  %944 = vmatprep.mubr.f32.mxu0 0.0
  %945 = vmatmul.mubr.f32.gmra.mrb[0].mxu0 %v746
  %v946 = vpop.f32.mrb[0].mxu0
  %v947 = vadd.f32 %v842, %v946
  %v948 = vpop.f32.mrb[0].mxu0
  %949 = vmatprep.mubr.f32.mxu0 0.0
  %950 = vmatmul.mubr.f32.gmra.mrb[0].mxu0 %v749
  %v951 = vpop.f32.mrb[0].mxu0
  %v952 = vadd.f32 %v847, %v951
  %v953 = vpop.f32.mrb[0].mxu0
  %954 = vmatprep.mubr.f32.mxu0 0.0
  %955 = vmatmul.mubr.f32.gmra.mrb[0].mxu0 %v752
  %v956 = vpop.f32.mrb[0].mxu0
  %v957 = vadd.f32 %v852, %v956
  %v958 = vpop.f32.mrb[0].mxu0
  %959 = vmatprep.mubr.f32.mxu0 0.0
  %960 = vmatmul.mubr.f32.gmra.mrb[0].mxu0 %v755
  %v961 = vpop.f32.mrb[0].mxu0
  %v962 = vadd.f32 %v857, %v961
  %v963 = vpop.f32.mrb[0].mxu0
  %964 = vmatprep.mubr.f32.mxu0 0.0
  %965 = vmatmul.mubr.f32.gmra.mrb[0].mxu0 %v758
  %v966 = vpop.f32.mrb[0].mxu0
  %v967 = vadd.f32 %v862, %v966
  %v968 = vpop.f32.mrb[0].mxu0
  %969 = vdwg.mxu0
  %978 = vrot.lane.b32.xlu0 %v932, 127
  %v979 = vpop.permute.xlu0 %978
  %980 = vrot.lane.b32.xlu0 %v937, 127
  %v981 = vpop.permute.xlu0 %980
  %982 = vrot.lane.b32.xlu0 %v942, 127
  %v983 = vpop.permute.xlu0 %982
  %984 = vrot.lane.b32.xlu0 %v947, 127
  %v985 = vpop.permute.xlu0 %984
  %986 = vrot.lane.b32.xlu0 %v952, 127
  %v987 = vpop.permute.xlu0 %986
  %988 = vrot.lane.b32.xlu0 %v957, 127
  %v989 = vpop.permute.xlu0 %988
  %990 = vrot.lane.b32.xlu0 %v962, 127
  %v991 = vpop.permute.xlu0 %990
  %992 = vrot.lane.b32.xlu0 %v967, 127
  %v993 = vpop.permute.xlu0 %992
  %1002 = vrot.lane.b32.xlu0 %v932, 126
  %v1003 = vpop.permute.xlu0 %1002
  %1004 = vrot.lane.b32.xlu0 %v937, 126
  %v1005 = vpop.permute.xlu0 %1004
  %1006 = vrot.lane.b32.xlu0 %v942, 126
  %v1007 = vpop.permute.xlu0 %1006
  %1008 = vrot.lane.b32.xlu0 %v947, 126
  %v1009 = vpop.permute.xlu0 %1008
  %1010 = vrot.lane.b32.xlu0 %v952, 126
  %v1011 = vpop.permute.xlu0 %1010
  %1012 = vrot.lane.b32.xlu0 %v957, 126
  %v1013 = vpop.permute.xlu0 %1012
  %1014 = vrot.lane.b32.xlu0 %v962, 126
  %v1015 = vpop.permute.xlu0 %1014
  %1016 = vrot.lane.b32.xlu0 %v967, 126
  %v1017 = vpop.permute.xlu0 %1016
  %1026 = vrot.lane.b32.xlu0 %v932, 118
  %v1027 = vpop.permute.xlu0 %1026
  %1028 = vrot.lane.b32.xlu0 %v937, 118
  %v1029 = vpop.permute.xlu0 %1028
  %1030 = vrot.lane.b32.xlu0 %v942, 118
  %v1031 = vpop.permute.xlu0 %1030
  %1032 = vrot.lane.b32.xlu0 %v947, 118
  %v1033 = vpop.permute.xlu0 %1032
  %1034 = vrot.lane.b32.xlu0 %v952, 118
  %v1035 = vpop.permute.xlu0 %1034
  %1036 = vrot.lane.b32.xlu0 %v957, 118
  %v1037 = vpop.permute.xlu0 %1036
  %1038 = vrot.lane.b32.xlu0 %v962, 118
  %v1039 = vpop.permute.xlu0 %1038
  %1040 = vrot.lane.b32.xlu0 %v967, 118
  %v1041 = vpop.permute.xlu0 %1040
  %1050 = vrot.lane.b32.xlu0 %v932, 117
  %v1051 = vpop.permute.xlu0 %1050
  %1052 = vrot.lane.b32.xlu0 %v937, 117
  %v1053 = vpop.permute.xlu0 %1052
  %1054 = vrot.lane.b32.xlu0 %v942, 117
  %v1055 = vpop.permute.xlu0 %1054
  %1056 = vrot.lane.b32.xlu0 %v947, 117
  %v1057 = vpop.permute.xlu0 %1056
  %1058 = vrot.lane.b32.xlu0 %v952, 117
  %v1059 = vpop.permute.xlu0 %1058
  %1060 = vrot.lane.b32.xlu0 %v957, 117
  %v1061 = vpop.permute.xlu0 %1060
  %1062 = vrot.lane.b32.xlu0 %v962, 117
  %v1063 = vpop.permute.xlu0 %1062
  %1064 = vrot.lane.b32.xlu0 %v967, 117
  %v1065 = vpop.permute.xlu0 %1064
  %1074 = vrot.lane.b32.xlu0 %v932, 116
  %v1075 = vpop.permute.xlu0 %1074
  %1076 = vrot.lane.b32.xlu0 %v937, 116
  %v1077 = vpop.permute.xlu0 %1076
  %1078 = vrot.lane.b32.xlu0 %v942, 116
  %v1079 = vpop.permute.xlu0 %1078
  %1080 = vrot.lane.b32.xlu0 %v947, 116
  %v1081 = vpop.permute.xlu0 %1080
  %1082 = vrot.lane.b32.xlu0 %v952, 116
  %v1083 = vpop.permute.xlu0 %1082
  %1084 = vrot.lane.b32.xlu0 %v957, 116
  %v1085 = vpop.permute.xlu0 %1084
  %1086 = vrot.lane.b32.xlu0 %v962, 116
  %v1087 = vpop.permute.xlu0 %1086
  %1088 = vrot.lane.b32.xlu0 %v967, 116
  %v1089 = vpop.permute.xlu0 %1088
  %1098 = vrot.lane.b32.xlu0 %v932, 108
  %v1099 = vpop.permute.xlu0 %1098
  %1100 = vrot.lane.b32.xlu0 %v937, 108
  %v1101 = vpop.permute.xlu0 %1100
  %1102 = vrot.lane.b32.xlu0 %v942, 108
  %v1103 = vpop.permute.xlu0 %1102
  %1104 = vrot.lane.b32.xlu0 %v947, 108
  %v1105 = vpop.permute.xlu0 %1104
  %1106 = vrot.lane.b32.xlu0 %v952, 108
  %v1107 = vpop.permute.xlu0 %1106
  %1108 = vrot.lane.b32.xlu0 %v957, 108
  %v1109 = vpop.permute.xlu0 %1108
  %1110 = vrot.lane.b32.xlu0 %v962, 108
  %v1111 = vpop.permute.xlu0 %1110
  %1112 = vrot.lane.b32.xlu0 %v967, 108
  %v1113 = vpop.permute.xlu0 %1112
  %1122 = vrot.lane.b32.xlu0 %v932, 107
  %v1123 = vpop.permute.xlu0 %1122
  %1124 = vrot.lane.b32.xlu0 %v937, 107
  %v1125 = vpop.permute.xlu0 %1124
  %1126 = vrot.lane.b32.xlu0 %v942, 107
  %v1127 = vpop.permute.xlu0 %1126
  %1128 = vrot.lane.b32.xlu0 %v947, 107
  %v1129 = vpop.permute.xlu0 %1128
  %1130 = vrot.lane.b32.xlu0 %v952, 107
  %v1131 = vpop.permute.xlu0 %1130
  %1132 = vrot.lane.b32.xlu0 %v957, 107
  %v1133 = vpop.permute.xlu0 %1132
  %1134 = vrot.lane.b32.xlu0 %v962, 107
  %v1135 = vpop.permute.xlu0 %1134
  %1136 = vrot.lane.b32.xlu0 %v967, 107
  %v1137 = vpop.permute.xlu0 %1136
  %1146 = vrot.lane.b32.xlu0 %v932, 106
  %v1147 = vpop.permute.xlu0 %1146
  %1148 = vrot.lane.b32.xlu0 %v937, 106
  %v1149 = vpop.permute.xlu0 %1148
  %1150 = vrot.lane.b32.xlu0 %v942, 106
  %v1151 = vpop.permute.xlu0 %1150
  %1152 = vrot.lane.b32.xlu0 %v947, 106
  %v1153 = vpop.permute.xlu0 %1152
  %1154 = vrot.lane.b32.xlu0 %v952, 106
  %v1155 = vpop.permute.xlu0 %1154
  %1156 = vrot.lane.b32.xlu0 %v957, 106
  %v1157 = vpop.permute.xlu0 %1156
  %1158 = vrot.lane.b32.xlu0 %v962, 106
  %v1159 = vpop.permute.xlu0 %1158
  %1160 = vrot.lane.b32.xlu0 %v967, 106
  %v1161 = vpop.permute.xlu0 %1160
  %v1170 = vld [vmem:[%s5] sm:$0xff]
  %v1171 = vld [vmem:[%s5 + $0x8] sm:$0xff]
  %v1172 = vld [vmem:[%s5 + $0x10] sm:$0xff]
  %v1173 = vld [vmem:[%s5 + $0x18] sm:$0xff]
  %v1174 = vld [vmem:[%s5 + $0x20] sm:$0xff]
  %v1175 = vld [vmem:[%s5 + $0x28] sm:$0xff]
  %v1176 = vld [vmem:[%s5 + $0x30] sm:$0xff]
  %v1177 = vld [vmem:[%s5 + $0x38] sm:$0xff]
  %v1178 = vld [vmem:[%s5 + $0x40] sm:$0xff]
  %v1179 = vld [vmem:[%s5 + $0x48] sm:$0xff]
  %v1180 = vld [vmem:[%s5 + $0x50] sm:$0xff]
  %v1181 = vld [vmem:[%s5 + $0x58] sm:$0xff]
  %v1182 = vld [vmem:[%s5 + $0x60] sm:$0xff]
  %v1183 = vld [vmem:[%s5 + $0x68] sm:$0xff]
  %v1184 = vld [vmem:[%s5 + $0x70] sm:$0xff]
  %v1185 = vld [vmem:[%s5 + $0x78] sm:$0xff]
  %v1186 = vld [vmem:[%s5 + $0x80] sm:$0xff]
  %v1187 = vld [vmem:[%s5 + $0x88] sm:$0xff]
  %v1188 = vld [vmem:[%s5 + $0x90] sm:$0xff]
  %v1189 = vld [vmem:[%s5 + $0x98] sm:$0xff]
  %v1190 = vld [vmem:[%s5 + $0xa0] sm:$0xff]
  %v1191 = vld [vmem:[%s5 + $0xa8] sm:$0xff]
  %v1192 = vld [vmem:[%s5 + $0xb0] sm:$0xff]
  %v1193 = vld [vmem:[%s5 + $0xb8] sm:$0xff]
  %v1194 = vld [vmem:[%s5 + $0xc0] sm:$0xff]
  %v1195 = vld [vmem:[%s5 + $0xc8] sm:$0xff]
  %v1196 = vld [vmem:[%s5 + $0xd0] sm:$0xff]
  %v1197 = vld [vmem:[%s5 + $0xd8] sm:$0xff]
  %v1198 = vld [vmem:[%s5 + $0xe0] sm:$0xff]
  %v1199 = vld [vmem:[%s5 + $0xe8] sm:$0xff]
  %v1200 = vld [vmem:[%s5 + $0xf0] sm:$0xff]
  %v1201 = vld [vmem:[%s5 + $0xf8] sm:$0xff]
  %v1202 = vld [vmem:[%s5 + $0x100] sm:$0xff]
  %v1203 = vld [vmem:[%s5 + $0x108] sm:$0xff]
  %v1204 = vld [vmem:[%s5 + $0x110] sm:$0xff]
  %v1205 = vld [vmem:[%s5 + $0x118] sm:$0xff]
  %v1206 = vld [vmem:[%s5 + $0x120] sm:$0xff]
  %v1207 = vld [vmem:[%s5 + $0x128] sm:$0xff]
  %v1208 = vld [vmem:[%s5 + $0x130] sm:$0xff]
  %v1209 = vld [vmem:[%s5 + $0x138] sm:$0xff]
  %v1210 = vld [vmem:[%s5 + $0x140] sm:$0xff]
  %v1211 = vld [vmem:[%s5 + $0x148] sm:$0xff]
  %v1212 = vld [vmem:[%s5 + $0x150] sm:$0xff]
  %v1213 = vld [vmem:[%s5 + $0x158] sm:$0xff]
  %v1214 = vld [vmem:[%s5 + $0x160] sm:$0xff]
  %v1215 = vld [vmem:[%s5 + $0x168] sm:$0xff]
  %v1216 = vld [vmem:[%s5 + $0x170] sm:$0xff]
  %v1217 = vld [vmem:[%s5 + $0x178] sm:$0xff]
  %v1218 = vld [vmem:[%s5 + $0x180] sm:$0xff]
  %v1219 = vld [vmem:[%s5 + $0x188] sm:$0xff]
  %v1220 = vld [vmem:[%s5 + $0x190] sm:$0xff]
  %v1221 = vld [vmem:[%s5 + $0x198] sm:$0xff]
  %v1222 = vld [vmem:[%s5 + $0x1a0] sm:$0xff]
  %v1223 = vld [vmem:[%s5 + $0x1a8] sm:$0xff]
  %v1224 = vld [vmem:[%s5 + $0x1b0] sm:$0xff]
  %v1225 = vld [vmem:[%s5 + $0x1b8] sm:$0xff]
  %v1226 = vld [vmem:[%s5 + $0x1c0] sm:$0xff]
  %v1227 = vld [vmem:[%s5 + $0x1c8] sm:$0xff]
  %v1228 = vld [vmem:[%s5 + $0x1d0] sm:$0xff]
  %v1229 = vld [vmem:[%s5 + $0x1d8] sm:$0xff]
  %v1230 = vld [vmem:[%s5 + $0x1e0] sm:$0xff]
  %v1231 = vld [vmem:[%s5 + $0x1e8] sm:$0xff]
  %v1232 = vld [vmem:[%s5 + $0x1f0] sm:$0xff]
  %v1233 = vld [vmem:[%s5 + $0x1f8] sm:$0xff]
  %v1234 = vld [vmem:[%s5 + $0x200] sm:$0xff]
  %v1235 = vld [vmem:[%s5 + $0x208] sm:$0xff]
  %v1236 = vld [vmem:[%s5 + $0x210] sm:$0xff]
  %v1237 = vld [vmem:[%s5 + $0x218] sm:$0xff]
  %v1238 = vld [vmem:[%s5 + $0x220] sm:$0xff]
  %v1239 = vld [vmem:[%s5 + $0x228] sm:$0xff]
  %v1240 = vld [vmem:[%s5 + $0x230] sm:$0xff]
  %v1241 = vld [vmem:[%s5 + $0x238] sm:$0xff]
  %v1242 = vld [vmem:[%s5 + $0x240] sm:$0xff]
  %v1243 = vld [vmem:[%s5 + $0x248] sm:$0xff]
  %v1244 = vld [vmem:[%s5 + $0x250] sm:$0xff]
  %v1245 = vld [vmem:[%s5 + $0x258] sm:$0xff]
  %v1246 = vld [vmem:[%s5 + $0x260] sm:$0xff]
  %v1247 = vld [vmem:[%s5 + $0x268] sm:$0xff]
  %v1248 = vld [vmem:[%s5 + $0x270] sm:$0xff]
  %v1249 = vld [vmem:[%s5 + $0x278] sm:$0xff]
  %v1250 = vld [vmem:[%s6] sm:$0xff]
  %v1251 = vld [vmem:[%s6 + $0x8] sm:$0xff]
  %v1252 = vld [vmem:[%s6 + $0x10] sm:$0xff]
  %v1253 = vld [vmem:[%s6 + $0x18] sm:$0xff]
  %v1254 = vld [vmem:[%s6 + $0x20] sm:$0xff]
  %v1255 = vld [vmem:[%s6 + $0x28] sm:$0xff]
  %v1256 = vld [vmem:[%s6 + $0x30] sm:$0xff]
  %v1257 = vld [vmem:[%s6 + $0x38] sm:$0xff]
  %v1258 = vld [vmem:[%s6 + $0x40] sm:$0xff]
  %v1259 = vld [vmem:[%s6 + $0x48] sm:$0xff]
  %v1260 = vld [vmem:[%s6 + $0x50] sm:$0xff]
  %v1261 = vld [vmem:[%s6 + $0x58] sm:$0xff]
  %v1262 = vld [vmem:[%s6 + $0x60] sm:$0xff]
  %v1263 = vld [vmem:[%s6 + $0x68] sm:$0xff]
  %v1264 = vld [vmem:[%s6 + $0x70] sm:$0xff]
  %v1265 = vld [vmem:[%s6 + $0x78] sm:$0xff]
  %1267 = vset.pattern.permute.xlu0 0
  %1268 = vperm.xlu0 %1267, %v1250
  %v1269 = vpop.permute.xlu0 %1268
  %1272 = vset.pattern.permute.xlu0 0
  %1273 = vperm.xlu0 %1272, %v1251
  %v1274 = vpop.permute.xlu0 %1273
  %1277 = vset.pattern.permute.xlu0 0
  %1278 = vperm.xlu0 %1277, %v1252
  %v1279 = vpop.permute.xlu0 %1278
  %1282 = vset.pattern.permute.xlu0 0
  %1283 = vperm.xlu0 %1282, %v1253
  %v1284 = vpop.permute.xlu0 %1283
  %1287 = vset.pattern.permute.xlu0 0
  %1288 = vperm.xlu0 %1287, %v1254
  %v1289 = vpop.permute.xlu0 %1288
  %1292 = vset.pattern.permute.xlu0 0
  %1293 = vperm.xlu0 %1292, %v1255
  %v1294 = vpop.permute.xlu0 %1293
  %1297 = vset.pattern.permute.xlu0 0
  %1298 = vperm.xlu0 %1297, %v1256
  %v1299 = vpop.permute.xlu0 %1298
  %1302 = vset.pattern.permute.xlu0 0
  %1303 = vperm.xlu0 %1302, %v1257
  %v1304 = vpop.permute.xlu0 %1303
  %1307 = vset.pattern.permute.xlu0 0
  %1308 = vperm.xlu0 %1307, %v1258
  %v1309 = vpop.permute.xlu0 %1308
  %1312 = vset.pattern.permute.xlu0 0
  %1313 = vperm.xlu0 %1312, %v1259
  %v1314 = vpop.permute.xlu0 %1313
  %1317 = vset.pattern.permute.xlu0 0
  %1318 = vperm.xlu0 %1317, %v1260
  %v1319 = vpop.permute.xlu0 %1318
  %1322 = vset.pattern.permute.xlu0 0
  %1323 = vperm.xlu0 %1322, %v1261
  %v1324 = vpop.permute.xlu0 %1323
  %1327 = vset.pattern.permute.xlu0 0
  %1328 = vperm.xlu0 %1327, %v1262
  %v1329 = vpop.permute.xlu0 %1328
  %1332 = vset.pattern.permute.xlu0 0
  %1333 = vperm.xlu0 %1332, %v1263
  %v1334 = vpop.permute.xlu0 %1333
  %1337 = vset.pattern.permute.xlu0 0
  %1338 = vperm.xlu0 %1337, %v1264
  %v1339 = vpop.permute.xlu0 %1338
  %1342 = vset.pattern.permute.xlu0 0
  %1343 = vperm.xlu0 %1342, %v1265
  %v1344 = vpop.permute.xlu0 %1343
  %vm1346 = vcmask 523264
  %v1348 = vsel %vm1346, %v1174, 0
  %v1351 = vsel %vm1346, %v1179, 0
  %v1354 = vsel %vm1346, %v1184, 0
  %v1357 = vsel %vm1346, %v1189, 0
  %v1360 = vsel %vm1346, %v1194, 0
  %v1363 = vsel %vm1346, %v1199, 0
  %v1366 = vsel %vm1346, %v1204, 0
  %v1369 = vsel %vm1346, %v1209, 0
  %v1372 = vsel %vm1346, %v1214, 0
  %v1375 = vsel %vm1346, %v1219, 0
  %v1378 = vsel %vm1346, %v1224, 0
  %v1381 = vsel %vm1346, %v1229, 0
  %v1384 = vsel %vm1346, %v1234, 0
  %v1387 = vsel %vm1346, %v1239, 0
  %v1390 = vsel %vm1346, %v1244, 0
  %v1393 = vsel %vm1346, %v1249, 0
  %1395 = vmatprep.subr.mxu0 0.0
  %1396 = vmatpush1.msra.mxu0 %v932
  %1397 = vmatprep.subr.mxu0 0.0
  %1398 = vmatpush1.msra.mxu0 %v937
  %1399 = vmatprep.subr.mxu0 0.0
  %1400 = vmatpush1.msra.mxu0 %v942
  %1401 = vmatprep.subr.mxu0 0.0
  %1402 = vmatpush1.msra.mxu0 %v947
  %1403 = vmatprep.subr.mxu0 0.0
  %1404 = vmatpush1.msra.mxu0 %v952
  %1405 = vmatprep.subr.mxu0 0.0
  %1406 = vmatpush1.msra.mxu0 %v957
  %1407 = vmatprep.subr.mxu0 0.0
  %1408 = vmatpush1.msra.mxu0 %v962
  %1409 = vmatprep.subr.mxu0 0.0
  %1410 = vmatpush1.msra.mxu0 %v967
  %1411 = vmatprep.subr.mxu0 0.0
  %1412 = vmatpush1.msra.mxu0 %v979
  %1413 = vmatprep.subr.mxu0 0.0
  %1414 = vmatpush1.msra.mxu0 %v981
  %1415 = vmatprep.subr.mxu0 0.0
  %1416 = vmatpush1.msra.mxu0 %v983
  %1417 = vmatprep.subr.mxu0 0.0
  %1418 = vmatpush1.msra.mxu0 %v985
  %1419 = vmatprep.subr.mxu0 0.0
  %1420 = vmatpush1.msra.mxu0 %v987
  %1421 = vmatprep.subr.mxu0 0.0
  %1422 = vmatpush1.msra.mxu0 %v989
  %1423 = vmatprep.subr.mxu0 0.0
  %1424 = vmatpush1.msra.mxu0 %v991
  %1425 = vmatprep.subr.mxu0 0.0
  %1426 = vmatpush1.msra.mxu0 %v993
  %1427 = vmatprep.subr.mxu0 0.0
  %1428 = vmatpush1.msra.mxu0 %v1003
  %1429 = vmatprep.subr.mxu0 0.0
  %1430 = vmatpush1.msra.mxu0 %v1005
  %1431 = vmatprep.subr.mxu0 0.0
  %1432 = vmatpush1.msra.mxu0 %v1007
  %1433 = vmatprep.subr.mxu0 0.0
  %1434 = vmatpush1.msra.mxu0 %v1009
  %1435 = vmatprep.subr.mxu0 0.0
  %1436 = vmatpush1.msra.mxu0 %v1011
  %1437 = vmatprep.subr.mxu0 0.0
  %1438 = vmatpush1.msra.mxu0 %v1013
  %1439 = vmatprep.subr.mxu0 0.0
  %1440 = vmatpush1.msra.mxu0 %v1015
  %1441 = vmatprep.subr.mxu0 0.0
  %1442 = vmatpush1.msra.mxu0 %v1017
  %1443 = vmatprep.subr.mxu0 0.0
  %1444 = vmatpush1.msra.mxu0 %v1027
  %1445 = vmatprep.subr.mxu0 0.0
  %1446 = vmatpush1.msra.mxu0 %v1029
  %1447 = vmatprep.subr.mxu0 0.0
  %1448 = vmatpush1.msra.mxu0 %v1031
  %1449 = vmatprep.subr.mxu0 0.0
  %1450 = vmatpush1.msra.mxu0 %v1033
  %1451 = vmatprep.subr.mxu0 0.0
  %1452 = vmatpush1.msra.mxu0 %v1035
  %1453 = vmatprep.subr.mxu0 0.0
  %1454 = vmatpush1.msra.mxu0 %v1037
  %1455 = vmatprep.subr.mxu0 0.0
  %1456 = vmatpush1.msra.mxu0 %v1039
  %1457 = vmatprep.subr.mxu0 0.0
  %1458 = vmatpush1.msra.mxu0 %v1041
  %1459 = vmatprep.mubr.f32.mxu0 %v1171
  %1460 = vmatmul.mubr.f32.gmra.mrb[0].mxu0 %v1170
  %v1461 = vpop.f32.mrb[0].mxu0
  %v1462 = vadd.f32 %v1269, %v1461
  %v1463 = vpop.f32.mrb[0].mxu0
  %1464 = vmatprep.mubr.f32.mxu0 %v1176
  %1465 = vmatmul.mubr.f32.gmra.mrb[0].mxu0 %v1175
  %v1466 = vpop.f32.mrb[0].mxu0
  %v1467 = vadd.f32 %v1274, %v1466
  %v1468 = vpop.f32.mrb[0].mxu0
  %1469 = vmatprep.mubr.f32.mxu0 %v1181
  %1470 = vmatmul.mubr.f32.gmra.mrb[0].mxu0 %v1180
  %v1471 = vpop.f32.mrb[0].mxu0
  %v1472 = vadd.f32 %v1279, %v1471
  %v1473 = vpop.f32.mrb[0].mxu0
  %1474 = vmatprep.mubr.f32.mxu0 %v1186
  %1475 = vmatmul.mubr.f32.gmra.mrb[0].mxu0 %v1185
  %v1476 = vpop.f32.mrb[0].mxu0
  %v1477 = vadd.f32 %v1284, %v1476
  %v1478 = vpop.f32.mrb[0].mxu0
  %1479 = vmatprep.mubr.f32.mxu0 %v1191
  %1480 = vmatmul.mubr.f32.gmra.mrb[0].mxu0 %v1190
  %v1481 = vpop.f32.mrb[0].mxu0
  %v1482 = vadd.f32 %v1289, %v1481
  %v1483 = vpop.f32.mrb[0].mxu0
  %1484 = vmatprep.mubr.f32.mxu0 %v1196
  %1485 = vmatmul.mubr.f32.gmra.mrb[0].mxu0 %v1195
  %v1486 = vpop.f32.mrb[0].mxu0
  %v1487 = vadd.f32 %v1294, %v1486
  %v1488 = vpop.f32.mrb[0].mxu0
  %1489 = vmatprep.mubr.f32.mxu0 %v1201
  %1490 = vmatmul.mubr.f32.gmra.mrb[0].mxu0 %v1200
  %v1491 = vpop.f32.mrb[0].mxu0
  %v1492 = vadd.f32 %v1299, %v1491
  %v1493 = vpop.f32.mrb[0].mxu0
  %1494 = vmatprep.mubr.f32.mxu0 %v1206
  %1495 = vmatmul.mubr.f32.gmra.mrb[0].mxu0 %v1205
  %v1496 = vpop.f32.mrb[0].mxu0
  %v1497 = vadd.f32 %v1304, %v1496
  %v1498 = vpop.f32.mrb[0].mxu0
  %1499 = vmatprep.mubr.f32.mxu0 %v1211
  %1500 = vmatmul.mubr.f32.gmra.mrb[0].mxu0 %v1210
  %v1501 = vpop.f32.mrb[0].mxu0
  %v1502 = vadd.f32 %v1309, %v1501
  %v1503 = vpop.f32.mrb[0].mxu0
  %1504 = vmatprep.mubr.f32.mxu0 %v1216
  %1505 = vmatmul.mubr.f32.gmra.mrb[0].mxu0 %v1215
  %v1506 = vpop.f32.mrb[0].mxu0
  %v1507 = vadd.f32 %v1314, %v1506
  %v1508 = vpop.f32.mrb[0].mxu0
  %1509 = vmatprep.mubr.f32.mxu0 %v1221
  %1510 = vmatmul.mubr.f32.gmra.mrb[0].mxu0 %v1220
  %v1511 = vpop.f32.mrb[0].mxu0
  %v1512 = vadd.f32 %v1319, %v1511
  %v1513 = vpop.f32.mrb[0].mxu0
  %1514 = vmatprep.mubr.f32.mxu0 %v1226
  %1515 = vmatmul.mubr.f32.gmra.mrb[0].mxu0 %v1225
  %v1516 = vpop.f32.mrb[0].mxu0
  %v1517 = vadd.f32 %v1324, %v1516
  %v1518 = vpop.f32.mrb[0].mxu0
  %1519 = vmatprep.mubr.f32.mxu0 %v1231
  %1520 = vmatmul.mubr.f32.gmra.mrb[0].mxu0 %v1230
  %v1521 = vpop.f32.mrb[0].mxu0
  %v1522 = vadd.f32 %v1329, %v1521
  %v1523 = vpop.f32.mrb[0].mxu0
  %1524 = vmatprep.mubr.f32.mxu0 %v1236
  %1525 = vmatmul.mubr.f32.gmra.mrb[0].mxu0 %v1235
  %v1526 = vpop.f32.mrb[0].mxu0
  %v1527 = vadd.f32 %v1334, %v1526
  %v1528 = vpop.f32.mrb[0].mxu0
  %1529 = vmatprep.mubr.f32.mxu0 %v1241
  %1530 = vmatmul.mubr.f32.gmra.mrb[0].mxu0 %v1240
  %v1531 = vpop.f32.mrb[0].mxu0
  %v1532 = vadd.f32 %v1339, %v1531
  %v1533 = vpop.f32.mrb[0].mxu0
  %1534 = vmatprep.mubr.f32.mxu0 %v1246
  %1535 = vmatmul.mubr.f32.gmra.mrb[0].mxu0 %v1245
  %v1536 = vpop.f32.mrb[0].mxu0
  %v1537 = vadd.f32 %v1344, %v1536
  %v1538 = vpop.f32.mrb[0].mxu0
  %1539 = vdwg.mxu0
  %1540 = vmatprep.subr.mxu0 0.0
  %1541 = vmatpush1.msra.mxu0 %v1051
  %1542 = vmatprep.subr.mxu0 0.0
  %1543 = vmatpush1.msra.mxu0 %v1053
  %1544 = vmatprep.subr.mxu0 0.0
  %1545 = vmatpush1.msra.mxu0 %v1055
  %1546 = vmatprep.subr.mxu0 0.0
  %1547 = vmatpush1.msra.mxu0 %v1057
  %1548 = vmatprep.subr.mxu0 0.0
  %1549 = vmatpush1.msra.mxu0 %v1059
  %1550 = vmatprep.subr.mxu0 0.0
  %1551 = vmatpush1.msra.mxu0 %v1061
  %1552 = vmatprep.subr.mxu0 0.0
  %1553 = vmatpush1.msra.mxu0 %v1063
  %1554 = vmatprep.subr.mxu0 0.0
  %1555 = vmatpush1.msra.mxu0 %v1065
  %1556 = vmatprep.subr.mxu0 0.0
  %1557 = vmatpush1.msra.mxu0 %v1075
  %1558 = vmatprep.subr.mxu0 0.0
  %1559 = vmatpush1.msra.mxu0 %v1077
  %1560 = vmatprep.subr.mxu0 0.0
  %1561 = vmatpush1.msra.mxu0 %v1079
  %1562 = vmatprep.subr.mxu0 0.0
  %1563 = vmatpush1.msra.mxu0 %v1081
  %1564 = vmatprep.subr.mxu0 0.0
  %1565 = vmatpush1.msra.mxu0 %v1083
  %1566 = vmatprep.subr.mxu0 0.0
  %1567 = vmatpush1.msra.mxu0 %v1085
  %1568 = vmatprep.subr.mxu0 0.0
  %1569 = vmatpush1.msra.mxu0 %v1087
  %1570 = vmatprep.subr.mxu0 0.0
  %1571 = vmatpush1.msra.mxu0 %v1089
  %1572 = vmatprep.subr.mxu0 0.0
  %1573 = vmatpush1.msra.mxu0 %v1099
  %1574 = vmatprep.subr.mxu0 0.0
  %1575 = vmatpush1.msra.mxu0 %v1101
  %1576 = vmatprep.subr.mxu0 0.0
  %1577 = vmatpush1.msra.mxu0 %v1103
  %1578 = vmatprep.subr.mxu0 0.0
  %1579 = vmatpush1.msra.mxu0 %v1105
  %1580 = vmatprep.subr.mxu0 0.0
  %1581 = vmatpush1.msra.mxu0 %v1107
  %1582 = vmatprep.subr.mxu0 0.0
  %1583 = vmatpush1.msra.mxu0 %v1109
  %1584 = vmatprep.subr.mxu0 0.0
  %1585 = vmatpush1.msra.mxu0 %v1111
  %1586 = vmatprep.subr.mxu0 0.0
  %1587 = vmatpush1.msra.mxu0 %v1113
  %1588 = vmatprep.subr.mxu0 0.0
  %1589 = vmatpush1.msra.mxu0 %v1123
  %1590 = vmatprep.subr.mxu0 0.0
  %1591 = vmatpush1.msra.mxu0 %v1125
  %1592 = vmatprep.subr.mxu0 0.0
  %1593 = vmatpush1.msra.mxu0 %v1127
  %1594 = vmatprep.subr.mxu0 0.0
  %1595 = vmatpush1.msra.mxu0 %v1129
  %1596 = vmatprep.subr.mxu0 0.0
  %1597 = vmatpush1.msra.mxu0 %v1131
  %1598 = vmatprep.subr.mxu0 0.0
  %1599 = vmatpush1.msra.mxu0 %v1133
  %1600 = vmatprep.subr.mxu0 0.0
  %1601 = vmatpush1.msra.mxu0 %v1135
  %1602 = vmatprep.subr.mxu0 0.0
  %1603 = vmatpush1.msra.mxu0 %v1137
  %1604 = vmatprep.mubr.f32.mxu0 %v1173
  %1605 = vmatmul.mubr.f32.gmra.mrb[0].mxu0 %v1172
  %v1606 = vpop.f32.mrb[0].mxu0
  %v1607 = vadd.f32 %v1462, %v1606
  %v1608 = vpop.f32.mrb[0].mxu0
  %1609 = vmatprep.mubr.f32.mxu0 %v1178
  %1610 = vmatmul.mubr.f32.gmra.mrb[0].mxu0 %v1177
  %v1611 = vpop.f32.mrb[0].mxu0
  %v1612 = vadd.f32 %v1467, %v1611
  %v1613 = vpop.f32.mrb[0].mxu0
  %1614 = vmatprep.mubr.f32.mxu0 %v1183
  %1615 = vmatmul.mubr.f32.gmra.mrb[0].mxu0 %v1182
  %v1616 = vpop.f32.mrb[0].mxu0
  %v1617 = vadd.f32 %v1472, %v1616
  %v1618 = vpop.f32.mrb[0].mxu0
  %1619 = vmatprep.mubr.f32.mxu0 %v1188
  %1620 = vmatmul.mubr.f32.gmra.mrb[0].mxu0 %v1187
  %v1621 = vpop.f32.mrb[0].mxu0
  %v1622 = vadd.f32 %v1477, %v1621
  %v1623 = vpop.f32.mrb[0].mxu0
  %1624 = vmatprep.mubr.f32.mxu0 %v1193
  %1625 = vmatmul.mubr.f32.gmra.mrb[0].mxu0 %v1192
  %v1626 = vpop.f32.mrb[0].mxu0
  %v1627 = vadd.f32 %v1482, %v1626
  %v1628 = vpop.f32.mrb[0].mxu0
  %1629 = vmatprep.mubr.f32.mxu0 %v1198
  %1630 = vmatmul.mubr.f32.gmra.mrb[0].mxu0 %v1197
  %v1631 = vpop.f32.mrb[0].mxu0
  %v1632 = vadd.f32 %v1487, %v1631
  %v1633 = vpop.f32.mrb[0].mxu0
  %1634 = vmatprep.mubr.f32.mxu0 %v1203
  %1635 = vmatmul.mubr.f32.gmra.mrb[0].mxu0 %v1202
  %v1636 = vpop.f32.mrb[0].mxu0
  %v1637 = vadd.f32 %v1492, %v1636
  %v1638 = vpop.f32.mrb[0].mxu0
  %1639 = vmatprep.mubr.f32.mxu0 %v1208
  %1640 = vmatmul.mubr.f32.gmra.mrb[0].mxu0 %v1207
  %v1641 = vpop.f32.mrb[0].mxu0
  %v1642 = vadd.f32 %v1497, %v1641
  %v1643 = vpop.f32.mrb[0].mxu0
  %1644 = vmatprep.mubr.f32.mxu0 %v1213
  %1645 = vmatmul.mubr.f32.gmra.mrb[0].mxu0 %v1212
  %v1646 = vpop.f32.mrb[0].mxu0
  %v1647 = vadd.f32 %v1502, %v1646
  %v1648 = vpop.f32.mrb[0].mxu0
  %1649 = vmatprep.mubr.f32.mxu0 %v1218
  %1650 = vmatmul.mubr.f32.gmra.mrb[0].mxu0 %v1217
  %v1651 = vpop.f32.mrb[0].mxu0
  %v1652 = vadd.f32 %v1507, %v1651
  %v1653 = vpop.f32.mrb[0].mxu0
  %1654 = vmatprep.mubr.f32.mxu0 %v1223
  %1655 = vmatmul.mubr.f32.gmra.mrb[0].mxu0 %v1222
  %v1656 = vpop.f32.mrb[0].mxu0
  %v1657 = vadd.f32 %v1512, %v1656
  %v1658 = vpop.f32.mrb[0].mxu0
  %1659 = vmatprep.mubr.f32.mxu0 %v1228
  %1660 = vmatmul.mubr.f32.gmra.mrb[0].mxu0 %v1227
  %v1661 = vpop.f32.mrb[0].mxu0
  %v1662 = vadd.f32 %v1517, %v1661
  %v1663 = vpop.f32.mrb[0].mxu0
  %1664 = vmatprep.mubr.f32.mxu0 %v1233
  %1665 = vmatmul.mubr.f32.gmra.mrb[0].mxu0 %v1232
  %v1666 = vpop.f32.mrb[0].mxu0
  %v1667 = vadd.f32 %v1522, %v1666
  %v1668 = vpop.f32.mrb[0].mxu0
  %1669 = vmatprep.mubr.f32.mxu0 %v1238
  %1670 = vmatmul.mubr.f32.gmra.mrb[0].mxu0 %v1237
  %v1671 = vpop.f32.mrb[0].mxu0
  %v1672 = vadd.f32 %v1527, %v1671
  %v1673 = vpop.f32.mrb[0].mxu0
  %1674 = vmatprep.mubr.f32.mxu0 %v1243
  %1675 = vmatmul.mubr.f32.gmra.mrb[0].mxu0 %v1242
  %v1676 = vpop.f32.mrb[0].mxu0
  %v1677 = vadd.f32 %v1532, %v1676
  %v1678 = vpop.f32.mrb[0].mxu0
  %1679 = vmatprep.mubr.f32.mxu0 %v1248
  %1680 = vmatmul.mubr.f32.gmra.mrb[0].mxu0 %v1247
  %v1681 = vpop.f32.mrb[0].mxu0
  %v1682 = vadd.f32 %v1537, %v1681
  %v1683 = vpop.f32.mrb[0].mxu0
  %1684 = vdwg.mxu0
  %1685 = vmatprep.subr.mxu0 0.0
  %1686 = vmatpush1.msra.mxu0 %v1147
  %1687 = vmatprep.subr.mxu0 0.0
  %1688 = vmatpush1.msra.mxu0 %v1149
  %1689 = vmatprep.subr.mxu0 0.0
  %1690 = vmatpush1.msra.mxu0 %v1151
  %1691 = vmatprep.subr.mxu0 0.0
  %1692 = vmatpush1.msra.mxu0 %v1153
  %1693 = vmatprep.subr.mxu0 0.0
  %1694 = vmatpush1.msra.mxu0 %v1155
  %1695 = vmatprep.subr.mxu0 0.0
  %1696 = vmatpush1.msra.mxu0 %v1157
  %1697 = vmatprep.subr.mxu0 0.0
  %1698 = vmatpush1.msra.mxu0 %v1159
  %1699 = vmatprep.subr.mxu0 0.0
  %1700 = vmatpush1.msra.mxu0 %v1161
  %1701 = vmatprep.subr.mxu0 0.0
  %1702 = vmatpush1.msra.mxu0 0.0
  %1703 = vmatprep.subr.mxu0 0.0
  %1704 = vmatpush1.msra.mxu0 0.0
  %1705 = vmatprep.subr.mxu0 0.0
  %1706 = vmatpush1.msra.mxu0 0.0
  %1707 = vmatprep.subr.mxu0 0.0
  %1708 = vmatpush1.msra.mxu0 0.0
  %1709 = vmatprep.subr.mxu0 0.0
  %1710 = vmatpush1.msra.mxu0 0.0
  %1711 = vmatprep.subr.mxu0 0.0
  %1712 = vmatpush1.msra.mxu0 0.0
  %1713 = vmatprep.subr.mxu0 0.0
  %1714 = vmatpush1.msra.mxu0 0.0
  %1715 = vmatprep.subr.mxu0 0.0
  %1716 = vmatpush1.msra.mxu0 0.0
  %1717 = vmatprep.subr.mxu0 0.0
  %1718 = vmatpush1.msra.mxu0 0.0
  %1719 = vmatprep.subr.mxu0 0.0
  %1720 = vmatpush1.msra.mxu0 0.0
  %1721 = vmatprep.subr.mxu0 0.0
  %1722 = vmatpush1.msra.mxu0 0.0
  %1723 = vmatprep.subr.mxu0 0.0
  %1724 = vmatpush1.msra.mxu0 0.0
  %1725 = vmatprep.subr.mxu0 0.0
  %1726 = vmatpush1.msra.mxu0 0.0
  %1727 = vmatprep.subr.mxu0 0.0
  %1728 = vmatpush1.msra.mxu0 0.0
  %1729 = vmatprep.subr.mxu0 0.0
  %1730 = vmatpush1.msra.mxu0 0.0
  %1731 = vmatprep.subr.mxu0 0.0
  %1732 = vmatpush1.msra.mxu0 0.0
  %1733 = vmatprep.subr.mxu0 0.0
  %1734 = vmatpush1.msra.mxu0 0.0
  %1735 = vmatprep.subr.mxu0 0.0
  %1736 = vmatpush1.msra.mxu0 0.0
  %1737 = vmatprep.subr.mxu0 0.0
  %1738 = vmatpush1.msra.mxu0 0.0
  %1739 = vmatprep.subr.mxu0 0.0
  %1740 = vmatpush1.msra.mxu0 0.0
  %1741 = vmatprep.subr.mxu0 0.0
  %1742 = vmatpush1.msra.mxu0 0.0
  %1743 = vmatprep.subr.mxu0 0.0
  %1744 = vmatpush1.msra.mxu0 0.0
  %1745 = vmatprep.subr.mxu0 0.0
  %1746 = vmatpush1.msra.mxu0 0.0
  %1747 = vmatprep.subr.mxu0 0.0
  %1748 = vmatpush1.msra.mxu0 0.0
  %1749 = vmatprep.mubr.f32.mxu0 0.0
  %1750 = vmatmul.mubr.f32.gmra.mrb[0].mxu0 %v1348
  %v1751 = vpop.f32.mrb[0].mxu0
  %v1752 = vadd.f32 %v1607, %v1751
  %v1753 = vpop.f32.mrb[0].mxu0
  %1754 = vmatprep.mubr.f32.mxu0 0.0
  %1755 = vmatmul.mubr.f32.gmra.mrb[0].mxu0 %v1351
  %v1756 = vpop.f32.mrb[0].mxu0
  %v1757 = vadd.f32 %v1612, %v1756
  %v1758 = vpop.f32.mrb[0].mxu0
  %1759 = vmatprep.mubr.f32.mxu0 0.0
  %1760 = vmatmul.mubr.f32.gmra.mrb[0].mxu0 %v1354
  %v1761 = vpop.f32.mrb[0].mxu0
  %v1762 = vadd.f32 %v1617, %v1761
  %v1763 = vpop.f32.mrb[0].mxu0
  %1764 = vmatprep.mubr.f32.mxu0 0.0
  %1765 = vmatmul.mubr.f32.gmra.mrb[0].mxu0 %v1357
  %v1766 = vpop.f32.mrb[0].mxu0
  %v1767 = vadd.f32 %v1622, %v1766
  %v1768 = vpop.f32.mrb[0].mxu0
  %1769 = vmatprep.mubr.f32.mxu0 0.0
  %1770 = vmatmul.mubr.f32.gmra.mrb[0].mxu0 %v1360
  %v1771 = vpop.f32.mrb[0].mxu0
  %v1772 = vadd.f32 %v1627, %v1771
  %v1773 = vpop.f32.mrb[0].mxu0
  %1774 = vmatprep.mubr.f32.mxu0 0.0
  %1775 = vmatmul.mubr.f32.gmra.mrb[0].mxu0 %v1363
  %v1776 = vpop.f32.mrb[0].mxu0
  %v1777 = vadd.f32 %v1632, %v1776
  %v1778 = vpop.f32.mrb[0].mxu0
  %1779 = vmatprep.mubr.f32.mxu0 0.0
  %1780 = vmatmul.mubr.f32.gmra.mrb[0].mxu0 %v1366
  %v1781 = vpop.f32.mrb[0].mxu0
  %v1782 = vadd.f32 %v1637, %v1781
  %v1783 = vpop.f32.mrb[0].mxu0
  %1784 = vmatprep.mubr.f32.mxu0 0.0
  %1785 = vmatmul.mubr.f32.gmra.mrb[0].mxu0 %v1369
  %v1786 = vpop.f32.mrb[0].mxu0
  %v1787 = vadd.f32 %v1642, %v1786
  %v1788 = vpop.f32.mrb[0].mxu0
  %1789 = vmatprep.mubr.f32.mxu0 0.0
  %1790 = vmatmul.mubr.f32.gmra.mrb[0].mxu0 %v1372
  %v1791 = vpop.f32.mrb[0].mxu0
  %v1792 = vadd.f32 %v1647, %v1791
  %v1793 = vpop.f32.mrb[0].mxu0
  %1794 = vmatprep.mubr.f32.mxu0 0.0
  %1795 = vmatmul.mubr.f32.gmra.mrb[0].mxu0 %v1375
  %v1796 = vpop.f32.mrb[0].mxu0
  %v1797 = vadd.f32 %v1652, %v1796
  %v1798 = vpop.f32.mrb[0].mxu0
  %1799 = vmatprep.mubr.f32.mxu0 0.0
  %1800 = vmatmul.mubr.f32.gmra.mrb[0].mxu0 %v1378
  %v1801 = vpop.f32.mrb[0].mxu0
  %v1802 = vadd.f32 %v1657, %v1801
  %v1803 = vpop.f32.mrb[0].mxu0
  %1804 = vmatprep.mubr.f32.mxu0 0.0
  %1805 = vmatmul.mubr.f32.gmra.mrb[0].mxu0 %v1381
  %v1806 = vpop.f32.mrb[0].mxu0
  %v1807 = vadd.f32 %v1662, %v1806
  %v1808 = vpop.f32.mrb[0].mxu0
  %1809 = vmatprep.mubr.f32.mxu0 0.0
  %1810 = vmatmul.mubr.f32.gmra.mrb[0].mxu0 %v1384
  %v1811 = vpop.f32.mrb[0].mxu0
  %v1812 = vadd.f32 %v1667, %v1811
  %v1813 = vpop.f32.mrb[0].mxu0
  %1814 = vmatprep.mubr.f32.mxu0 0.0
  %1815 = vmatmul.mubr.f32.gmra.mrb[0].mxu0 %v1387
  %v1816 = vpop.f32.mrb[0].mxu0
  %v1817 = vadd.f32 %v1672, %v1816
  %v1818 = vpop.f32.mrb[0].mxu0
  %1819 = vmatprep.mubr.f32.mxu0 0.0
  %1820 = vmatmul.mubr.f32.gmra.mrb[0].mxu0 %v1390
  %v1821 = vpop.f32.mrb[0].mxu0
  %v1822 = vadd.f32 %v1677, %v1821
  %v1823 = vpop.f32.mrb[0].mxu0
  %1824 = vmatprep.mubr.f32.mxu0 0.0
  %1825 = vmatmul.mubr.f32.gmra.mrb[0].mxu0 %v1393
  %v1826 = vpop.f32.mrb[0].mxu0
  %v1827 = vadd.f32 %v1682, %v1826
  %v1828 = vpop.f32.mrb[0].mxu0
  %1829 = vdwg.mxu0
  %v1830 = vmax.f32 %v1752, 0.0
  %v1831 = vmax.f32 %v1757, 0.0
  %v1832 = vmax.f32 %v1762, 0.0
  %v1833 = vmax.f32 %v1767, 0.0
  %v1834 = vmax.f32 %v1772, 0.0
  %v1835 = vmax.f32 %v1777, 0.0
  %v1836 = vmax.f32 %v1782, 0.0
  %v1837 = vmax.f32 %v1787, 0.0
  %v1838 = vmax.f32 %v1792, 0.0
  %v1839 = vmax.f32 %v1797, 0.0
  %v1840 = vmax.f32 %v1802, 0.0
  %v1841 = vmax.f32 %v1807, 0.0
  %v1842 = vmax.f32 %v1812, 0.0
  %v1843 = vmax.f32 %v1817, 0.0
  %v1844 = vmax.f32 %v1822, 0.0
  %v1845 = vmax.f32 %v1827, 0.0
  %v1846 = vld [vmem:[%s7] sm:$0xff]
  %v1847 = vld [vmem:[%s7 + $0x8] sm:$0xff]
  %v1848 = vld [vmem:[%s7 + $0x10] sm:$0xff]
  %v1849 = vld [vmem:[%s7 + $0x18] sm:$0xff]
  %v1850 = vld [vmem:[%s7 + $0x20] sm:$0xff]
  %v1851 = vld [vmem:[%s7 + $0x28] sm:$0xff]
  %v1852 = vld [vmem:[%s7 + $0x30] sm:$0xff]
  %v1853 = vld [vmem:[%s7 + $0x38] sm:$0xff]
  %v1854 = vld [vmem:[%s7 + $0x40] sm:$0xff]
  %v1855 = vld [vmem:[%s7 + $0x48] sm:$0xff]
  %vm1856 = vcmask 654336
  %v1858 = vsel %vm1856, %v1830, 0
  %v1861 = vsel %vm1856, %v1831, 0
  %v1864 = vsel %vm1856, %v1832, 0
  %v1867 = vsel %vm1856, %v1833, 0
  %v1870 = vsel %vm1856, %v1834, 0
  %v1873 = vsel %vm1856, %v1835, 0
  %v1876 = vsel %vm1856, %v1836, 0
  %v1879 = vsel %vm1856, %v1837, 0
  %v1882 = vsel %vm1856, %v1838, 0
  %v1885 = vsel %vm1856, %v1839, 0
  %v1888 = vsel %vm1856, %v1840, 0
  %v1891 = vsel %vm1856, %v1841, 0
  %v1894 = vsel %vm1856, %v1842, 0
  %v1897 = vsel %vm1856, %v1843, 0
  %v1900 = vsel %vm1856, %v1844, 0
  %v1903 = vsel %vm1856, %v1845, 0
  %1905 = vmatprep.subr.mxu0 0.0
  %1906 = vmatpush1.msra.mxu0 %v1846
  %1907 = vmatprep.subr.mxu0 0.0
  %1908 = vmatpush1.msra.mxu0 %v1847
  %1909 = vmatprep.subr.mxu0 0.0
  %1910 = vmatpush1.msra.mxu0 %v1848
  %1911 = vmatprep.subr.mxu0 0.0
  %1912 = vmatpush1.msra.mxu0 %v1849
  %1913 = vmatprep.subr.mxu0 0.0
  %1914 = vmatpush1.msra.mxu0 %v1850
  %1915 = vmatprep.subr.mxu0 0.0
  %1916 = vmatpush1.msra.mxu0 %v1851
  %1917 = vmatprep.subr.mxu0 0.0
  %1918 = vmatpush1.msra.mxu0 %v1852
  %1919 = vmatprep.subr.mxu0 0.0
  %1920 = vmatpush1.msra.mxu0 %v1853
  %1921 = vmatprep.subr.mxu0 0.0
  %1922 = vmatpush1.msra.mxu0 %v1854
  %1923 = vmatprep.subr.mxu0 0.0
  %1924 = vmatpush1.msra.mxu0 %v1855
  %1925 = vmatprep.subr.mxu0 0.0
  %1926 = vmatpush1.msra.mxu0 0.0
  %1927 = vmatprep.subr.mxu0 0.0
  %1928 = vmatpush1.msra.mxu0 0.0
  %1929 = vmatprep.subr.mxu0 0.0
  %1930 = vmatpush1.msra.mxu0 0.0
  %1931 = vmatprep.subr.mxu0 0.0
  %1932 = vmatpush1.msra.mxu0 0.0
  %1933 = vmatprep.subr.mxu0 0.0
  %1934 = vmatpush1.msra.mxu0 0.0
  %1935 = vmatprep.subr.mxu0 0.0
  %1936 = vmatpush1.msra.mxu0 0.0
  %1937 = vmatprep.subr.mxu0 0.0
  %1938 = vmatpush1.msra.mxu0 0.0
  %1939 = vmatprep.subr.mxu0 0.0
  %1940 = vmatpush1.msra.mxu0 0.0
  %1941 = vmatprep.subr.mxu0 0.0
  %1942 = vmatpush1.msra.mxu0 0.0
  %1943 = vmatprep.subr.mxu0 0.0
  %1944 = vmatpush1.msra.mxu0 0.0
  %1945 = vmatprep.subr.mxu0 0.0
  %1946 = vmatpush1.msra.mxu0 0.0
  %1947 = vmatprep.subr.mxu0 0.0
  %1948 = vmatpush1.msra.mxu0 0.0
  %1949 = vmatprep.subr.mxu0 0.0
  %1950 = vmatpush1.msra.mxu0 0.0
  %1951 = vmatprep.subr.mxu0 0.0
  %1952 = vmatpush1.msra.mxu0 0.0
  %1953 = vmatprep.subr.mxu0 0.0
  %1954 = vmatpush1.msra.mxu0 0.0
  %1955 = vmatprep.subr.mxu0 0.0
  %1956 = vmatpush1.msra.mxu0 0.0
  %1957 = vmatprep.subr.mxu0 0.0
  %1958 = vmatpush1.msra.mxu0 0.0
  %1959 = vmatprep.subr.mxu0 0.0
  %1960 = vmatpush1.msra.mxu0 0.0
  %1961 = vmatprep.subr.mxu0 0.0
  %1962 = vmatpush1.msra.mxu0 0.0
  %1963 = vmatprep.subr.mxu0 0.0
  %1964 = vmatpush1.msra.mxu0 0.0
  %1965 = vmatprep.subr.mxu0 0.0
  %1966 = vmatpush1.msra.mxu0 0.0
  %1967 = vmatprep.subr.mxu0 0.0
  %1968 = vmatpush1.msra.mxu0 0.0
  %1969 = vmatprep.mubr.f32.mxu0 0.0
  %1970 = vmatmul.mubr.f32.gmra.mrb[0].mxu0 %v1858
  %v1971 = vpop.f32.mrb[0].mxu0
  %v1972 = vadd.f32 0.0, %v1971
  %v1973 = vpop.f32.mrb[0].mxu0
  %1974 = vmatprep.mubr.f32.mxu0 0.0
  %1975 = vmatmul.mubr.f32.gmra.mrb[0].mxu0 %v1861
  %v1976 = vpop.f32.mrb[0].mxu0
  %v1977 = vadd.f32 0.0, %v1976
  %v1978 = vpop.f32.mrb[0].mxu0
  %1979 = vmatprep.mubr.f32.mxu0 0.0
  %1980 = vmatmul.mubr.f32.gmra.mrb[0].mxu0 %v1864
  %v1981 = vpop.f32.mrb[0].mxu0
  %v1982 = vadd.f32 0.0, %v1981
  %v1983 = vpop.f32.mrb[0].mxu0
  %1984 = vmatprep.mubr.f32.mxu0 0.0
  %1985 = vmatmul.mubr.f32.gmra.mrb[0].mxu0 %v1867
  %v1986 = vpop.f32.mrb[0].mxu0
  %v1987 = vadd.f32 0.0, %v1986
  %v1988 = vpop.f32.mrb[0].mxu0
  %1989 = vmatprep.mubr.f32.mxu0 0.0
  %1990 = vmatmul.mubr.f32.gmra.mrb[0].mxu0 %v1870
  %v1991 = vpop.f32.mrb[0].mxu0
  %v1992 = vadd.f32 0.0, %v1991
  %v1993 = vpop.f32.mrb[0].mxu0
  %1994 = vmatprep.mubr.f32.mxu0 0.0
  %1995 = vmatmul.mubr.f32.gmra.mrb[0].mxu0 %v1873
  %v1996 = vpop.f32.mrb[0].mxu0
  %v1997 = vadd.f32 0.0, %v1996
  %v1998 = vpop.f32.mrb[0].mxu0
  %1999 = vmatprep.mubr.f32.mxu0 0.0
  %2000 = vmatmul.mubr.f32.gmra.mrb[0].mxu0 %v1876
  %v2001 = vpop.f32.mrb[0].mxu0
  %v2002 = vadd.f32 0.0, %v2001
  %v2003 = vpop.f32.mrb[0].mxu0
  %2004 = vmatprep.mubr.f32.mxu0 0.0
  %2005 = vmatmul.mubr.f32.gmra.mrb[0].mxu0 %v1879
  %v2006 = vpop.f32.mrb[0].mxu0
  %v2007 = vadd.f32 0.0, %v2006
  %v2008 = vpop.f32.mrb[0].mxu0
  %2009 = vmatprep.mubr.f32.mxu0 0.0
  %2010 = vmatmul.mubr.f32.gmra.mrb[0].mxu0 %v1882
  %v2011 = vpop.f32.mrb[0].mxu0
  %v2012 = vadd.f32 0.0, %v2011
  %v2013 = vpop.f32.mrb[0].mxu0
  %2014 = vmatprep.mubr.f32.mxu0 0.0
  %2015 = vmatmul.mubr.f32.gmra.mrb[0].mxu0 %v1885
  %v2016 = vpop.f32.mrb[0].mxu0
  %v2017 = vadd.f32 0.0, %v2016
  %v2018 = vpop.f32.mrb[0].mxu0
  %2019 = vmatprep.mubr.f32.mxu0 0.0
  %2020 = vmatmul.mubr.f32.gmra.mrb[0].mxu0 %v1888
  %v2021 = vpop.f32.mrb[0].mxu0
  %v2022 = vadd.f32 0.0, %v2021
  %v2023 = vpop.f32.mrb[0].mxu0
  %2024 = vmatprep.mubr.f32.mxu0 0.0
  %2025 = vmatmul.mubr.f32.gmra.mrb[0].mxu0 %v1891
  %v2026 = vpop.f32.mrb[0].mxu0
  %v2027 = vadd.f32 0.0, %v2026
  %v2028 = vpop.f32.mrb[0].mxu0
  %2029 = vmatprep.mubr.f32.mxu0 0.0
  %2030 = vmatmul.mubr.f32.gmra.mrb[0].mxu0 %v1894
  %v2031 = vpop.f32.mrb[0].mxu0
  %v2032 = vadd.f32 0.0, %v2031
  %v2033 = vpop.f32.mrb[0].mxu0
  %2034 = vmatprep.mubr.f32.mxu0 0.0
  %2035 = vmatmul.mubr.f32.gmra.mrb[0].mxu0 %v1897
  %v2036 = vpop.f32.mrb[0].mxu0
  %v2037 = vadd.f32 0.0, %v2036
  %v2038 = vpop.f32.mrb[0].mxu0
  %2039 = vmatprep.mubr.f32.mxu0 0.0
  %2040 = vmatmul.mubr.f32.gmra.mrb[0].mxu0 %v1900
  %v2041 = vpop.f32.mrb[0].mxu0
  %v2042 = vadd.f32 0.0, %v2041
  %v2043 = vpop.f32.mrb[0].mxu0
  %2044 = vmatprep.mubr.f32.mxu0 0.0
  %2045 = vmatmul.mubr.f32.gmra.mrb[0].mxu0 %v1903
  %v2046 = vpop.f32.mrb[0].mxu0
  %v2047 = vadd.f32 0.0, %v2046
  %v2048 = vpop.f32.mrb[0].mxu0
  %2049 = vdwg.mxu0
  %2066 = vrot.lane.b32.xlu0 %v1972, 127
  %v2067 = vpop.permute.xlu0 %2066
  %2068 = vrot.lane.b32.xlu0 %v1977, 127
  %v2069 = vpop.permute.xlu0 %2068
  %2070 = vrot.lane.b32.xlu0 %v1982, 127
  %v2071 = vpop.permute.xlu0 %2070
  %2072 = vrot.lane.b32.xlu0 %v1987, 127
  %v2073 = vpop.permute.xlu0 %2072
  %2074 = vrot.lane.b32.xlu0 %v1992, 127
  %v2075 = vpop.permute.xlu0 %2074
  %2076 = vrot.lane.b32.xlu0 %v1997, 127
  %v2077 = vpop.permute.xlu0 %2076
  %2078 = vrot.lane.b32.xlu0 %v2002, 127
  %v2079 = vpop.permute.xlu0 %2078
  %2080 = vrot.lane.b32.xlu0 %v2007, 127
  %v2081 = vpop.permute.xlu0 %2080
  %2082 = vrot.lane.b32.xlu0 %v2012, 127
  %v2083 = vpop.permute.xlu0 %2082
  %2084 = vrot.lane.b32.xlu0 %v2017, 127
  %v2085 = vpop.permute.xlu0 %2084
  %2086 = vrot.lane.b32.xlu0 %v2022, 127
  %v2087 = vpop.permute.xlu0 %2086
  %2088 = vrot.lane.b32.xlu0 %v2027, 127
  %v2089 = vpop.permute.xlu0 %2088
  %2090 = vrot.lane.b32.xlu0 %v2032, 127
  %v2091 = vpop.permute.xlu0 %2090
  %2092 = vrot.lane.b32.xlu0 %v2037, 127
  %v2093 = vpop.permute.xlu0 %2092
  %2094 = vrot.lane.b32.xlu0 %v2042, 127
  %v2095 = vpop.permute.xlu0 %2094
  %2096 = vrot.lane.b32.xlu0 %v2047, 127
  %v2097 = vpop.permute.xlu0 %2096
  %2114 = vrot.lane.b32.xlu0 %v1972, 126
  %v2115 = vpop.permute.xlu0 %2114
  %2116 = vrot.lane.b32.xlu0 %v1977, 126
  %v2117 = vpop.permute.xlu0 %2116
  %2118 = vrot.lane.b32.xlu0 %v1982, 126
  %v2119 = vpop.permute.xlu0 %2118
  %2120 = vrot.lane.b32.xlu0 %v1987, 126
  %v2121 = vpop.permute.xlu0 %2120
  %2122 = vrot.lane.b32.xlu0 %v1992, 126
  %v2123 = vpop.permute.xlu0 %2122
  %2124 = vrot.lane.b32.xlu0 %v1997, 126
  %v2125 = vpop.permute.xlu0 %2124
  %2126 = vrot.lane.b32.xlu0 %v2002, 126
  %v2127 = vpop.permute.xlu0 %2126
  %2128 = vrot.lane.b32.xlu0 %v2007, 126
  %v2129 = vpop.permute.xlu0 %2128
  %2130 = vrot.lane.b32.xlu0 %v2012, 126
  %v2131 = vpop.permute.xlu0 %2130
  %2132 = vrot.lane.b32.xlu0 %v2017, 126
  %v2133 = vpop.permute.xlu0 %2132
  %2134 = vrot.lane.b32.xlu0 %v2022, 126
  %v2135 = vpop.permute.xlu0 %2134
  %2136 = vrot.lane.b32.xlu0 %v2027, 126
  %v2137 = vpop.permute.xlu0 %2136
  %2138 = vrot.lane.b32.xlu0 %v2032, 126
  %v2139 = vpop.permute.xlu0 %2138
  %2140 = vrot.lane.b32.xlu0 %v2037, 126
  %v2141 = vpop.permute.xlu0 %2140
  %2142 = vrot.lane.b32.xlu0 %v2042, 126
  %v2143 = vpop.permute.xlu0 %2142
  %2144 = vrot.lane.b32.xlu0 %v2047, 126
  %v2145 = vpop.permute.xlu0 %2144
  %2162 = vrot.lane.b32.xlu0 %v1972, 122
  %v2163 = vpop.permute.xlu0 %2162
  %2164 = vrot.lane.b32.xlu0 %v1977, 122
  %v2165 = vpop.permute.xlu0 %2164
  %2166 = vrot.lane.b32.xlu0 %v1982, 122
  %v2167 = vpop.permute.xlu0 %2166
  %2168 = vrot.lane.b32.xlu0 %v1987, 122
  %v2169 = vpop.permute.xlu0 %2168
  %2170 = vrot.lane.b32.xlu0 %v1992, 122
  %v2171 = vpop.permute.xlu0 %2170
  %2172 = vrot.lane.b32.xlu0 %v1997, 122
  %v2173 = vpop.permute.xlu0 %2172
  %2174 = vrot.lane.b32.xlu0 %v2002, 122
  %v2175 = vpop.permute.xlu0 %2174
  %2176 = vrot.lane.b32.xlu0 %v2007, 122
  %v2177 = vpop.permute.xlu0 %2176
  %2178 = vrot.lane.b32.xlu0 %v2012, 122
  %v2179 = vpop.permute.xlu0 %2178
  %2180 = vrot.lane.b32.xlu0 %v2017, 122
  %v2181 = vpop.permute.xlu0 %2180
  %2182 = vrot.lane.b32.xlu0 %v2022, 122
  %v2183 = vpop.permute.xlu0 %2182
  %2184 = vrot.lane.b32.xlu0 %v2027, 122
  %v2185 = vpop.permute.xlu0 %2184
  %2186 = vrot.lane.b32.xlu0 %v2032, 122
  %v2187 = vpop.permute.xlu0 %2186
  %2188 = vrot.lane.b32.xlu0 %v2037, 122
  %v2189 = vpop.permute.xlu0 %2188
  %2190 = vrot.lane.b32.xlu0 %v2042, 122
  %v2191 = vpop.permute.xlu0 %2190
  %2192 = vrot.lane.b32.xlu0 %v2047, 122
  %v2193 = vpop.permute.xlu0 %2192
  %2210 = vrot.lane.b32.xlu0 %v1972, 121
  %v2211 = vpop.permute.xlu0 %2210
  %2212 = vrot.lane.b32.xlu0 %v1977, 121
  %v2213 = vpop.permute.xlu0 %2212
  %2214 = vrot.lane.b32.xlu0 %v1982, 121
  %v2215 = vpop.permute.xlu0 %2214
  %2216 = vrot.lane.b32.xlu0 %v1987, 121
  %v2217 = vpop.permute.xlu0 %2216
  %2218 = vrot.lane.b32.xlu0 %v1992, 121
  %v2219 = vpop.permute.xlu0 %2218
  %2220 = vrot.lane.b32.xlu0 %v1997, 121
  %v2221 = vpop.permute.xlu0 %2220
  %2222 = vrot.lane.b32.xlu0 %v2002, 121
  %v2223 = vpop.permute.xlu0 %2222
  %2224 = vrot.lane.b32.xlu0 %v2007, 121
  %v2225 = vpop.permute.xlu0 %2224
  %2226 = vrot.lane.b32.xlu0 %v2012, 121
  %v2227 = vpop.permute.xlu0 %2226
  %2228 = vrot.lane.b32.xlu0 %v2017, 121
  %v2229 = vpop.permute.xlu0 %2228
  %2230 = vrot.lane.b32.xlu0 %v2022, 121
  %v2231 = vpop.permute.xlu0 %2230
  %2232 = vrot.lane.b32.xlu0 %v2027, 121
  %v2233 = vpop.permute.xlu0 %2232
  %2234 = vrot.lane.b32.xlu0 %v2032, 121
  %v2235 = vpop.permute.xlu0 %2234
  %2236 = vrot.lane.b32.xlu0 %v2037, 121
  %v2237 = vpop.permute.xlu0 %2236
  %2238 = vrot.lane.b32.xlu0 %v2042, 121
  %v2239 = vpop.permute.xlu0 %2238
  %2240 = vrot.lane.b32.xlu0 %v2047, 121
  %v2241 = vpop.permute.xlu0 %2240
  %2258 = vrot.lane.b32.xlu0 %v1972, 120
  %v2259 = vpop.permute.xlu0 %2258
  %2260 = vrot.lane.b32.xlu0 %v1977, 120
  %v2261 = vpop.permute.xlu0 %2260
  %2262 = vrot.lane.b32.xlu0 %v1982, 120
  %v2263 = vpop.permute.xlu0 %2262
  %2264 = vrot.lane.b32.xlu0 %v1987, 120
  %v2265 = vpop.permute.xlu0 %2264
  %2266 = vrot.lane.b32.xlu0 %v1992, 120
  %v2267 = vpop.permute.xlu0 %2266
  %2268 = vrot.lane.b32.xlu0 %v1997, 120
  %v2269 = vpop.permute.xlu0 %2268
  %2270 = vrot.lane.b32.xlu0 %v2002, 120
  %v2271 = vpop.permute.xlu0 %2270
  %2272 = vrot.lane.b32.xlu0 %v2007, 120
  %v2273 = vpop.permute.xlu0 %2272
  %2274 = vrot.lane.b32.xlu0 %v2012, 120
  %v2275 = vpop.permute.xlu0 %2274
  %2276 = vrot.lane.b32.xlu0 %v2017, 120
  %v2277 = vpop.permute.xlu0 %2276
  %2278 = vrot.lane.b32.xlu0 %v2022, 120
  %v2279 = vpop.permute.xlu0 %2278
  %2280 = vrot.lane.b32.xlu0 %v2027, 120
  %v2281 = vpop.permute.xlu0 %2280
  %2282 = vrot.lane.b32.xlu0 %v2032, 120
  %v2283 = vpop.permute.xlu0 %2282
  %2284 = vrot.lane.b32.xlu0 %v2037, 120
  %v2285 = vpop.permute.xlu0 %2284
  %2286 = vrot.lane.b32.xlu0 %v2042, 120
  %v2287 = vpop.permute.xlu0 %2286
  %2288 = vrot.lane.b32.xlu0 %v2047, 120
  %v2289 = vpop.permute.xlu0 %2288
  %2306 = vrot.lane.b32.xlu0 %v1972, 116
  %v2307 = vpop.permute.xlu0 %2306
  %2308 = vrot.lane.b32.xlu0 %v1977, 116
  %v2309 = vpop.permute.xlu0 %2308
  %2310 = vrot.lane.b32.xlu0 %v1982, 116
  %v2311 = vpop.permute.xlu0 %2310
  %2312 = vrot.lane.b32.xlu0 %v1987, 116
  %v2313 = vpop.permute.xlu0 %2312
  %2314 = vrot.lane.b32.xlu0 %v1992, 116
  %v2315 = vpop.permute.xlu0 %2314
  %2316 = vrot.lane.b32.xlu0 %v1997, 116
  %v2317 = vpop.permute.xlu0 %2316
  %2318 = vrot.lane.b32.xlu0 %v2002, 116
  %v2319 = vpop.permute.xlu0 %2318
  %2320 = vrot.lane.b32.xlu0 %v2007, 116
  %v2321 = vpop.permute.xlu0 %2320
  %2322 = vrot.lane.b32.xlu0 %v2012, 116
  %v2323 = vpop.permute.xlu0 %2322
  %2324 = vrot.lane.b32.xlu0 %v2017, 116
  %v2325 = vpop.permute.xlu0 %2324
  %2326 = vrot.lane.b32.xlu0 %v2022, 116
  %v2327 = vpop.permute.xlu0 %2326
  %2328 = vrot.lane.b32.xlu0 %v2027, 116
  %v2329 = vpop.permute.xlu0 %2328
  %2330 = vrot.lane.b32.xlu0 %v2032, 116
  %v2331 = vpop.permute.xlu0 %2330
  %2332 = vrot.lane.b32.xlu0 %v2037, 116
  %v2333 = vpop.permute.xlu0 %2332
  %2334 = vrot.lane.b32.xlu0 %v2042, 116
  %v2335 = vpop.permute.xlu0 %2334
  %2336 = vrot.lane.b32.xlu0 %v2047, 116
  %v2337 = vpop.permute.xlu0 %2336
  %2354 = vrot.lane.b32.xlu0 %v1972, 115
  %v2355 = vpop.permute.xlu0 %2354
  %2356 = vrot.lane.b32.xlu0 %v1977, 115
  %v2357 = vpop.permute.xlu0 %2356
  %2358 = vrot.lane.b32.xlu0 %v1982, 115
  %v2359 = vpop.permute.xlu0 %2358
  %2360 = vrot.lane.b32.xlu0 %v1987, 115
  %v2361 = vpop.permute.xlu0 %2360
  %2362 = vrot.lane.b32.xlu0 %v1992, 115
  %v2363 = vpop.permute.xlu0 %2362
  %2364 = vrot.lane.b32.xlu0 %v1997, 115
  %v2365 = vpop.permute.xlu0 %2364
  %2366 = vrot.lane.b32.xlu0 %v2002, 115
  %v2367 = vpop.permute.xlu0 %2366
  %2368 = vrot.lane.b32.xlu0 %v2007, 115
  %v2369 = vpop.permute.xlu0 %2368
  %2370 = vrot.lane.b32.xlu0 %v2012, 115
  %v2371 = vpop.permute.xlu0 %2370
  %2372 = vrot.lane.b32.xlu0 %v2017, 115
  %v2373 = vpop.permute.xlu0 %2372
  %2374 = vrot.lane.b32.xlu0 %v2022, 115
  %v2375 = vpop.permute.xlu0 %2374
  %2376 = vrot.lane.b32.xlu0 %v2027, 115
  %v2377 = vpop.permute.xlu0 %2376
  %2378 = vrot.lane.b32.xlu0 %v2032, 115
  %v2379 = vpop.permute.xlu0 %2378
  %2380 = vrot.lane.b32.xlu0 %v2037, 115
  %v2381 = vpop.permute.xlu0 %2380
  %2382 = vrot.lane.b32.xlu0 %v2042, 115
  %v2383 = vpop.permute.xlu0 %2382
  %2384 = vrot.lane.b32.xlu0 %v2047, 115
  %v2385 = vpop.permute.xlu0 %2384
  %2402 = vrot.lane.b32.xlu0 %v1972, 114
  %v2403 = vpop.permute.xlu0 %2402
  %2404 = vrot.lane.b32.xlu0 %v1977, 114
  %v2405 = vpop.permute.xlu0 %2404
  %2406 = vrot.lane.b32.xlu0 %v1982, 114
  %v2407 = vpop.permute.xlu0 %2406
  %2408 = vrot.lane.b32.xlu0 %v1987, 114
  %v2409 = vpop.permute.xlu0 %2408
  %2410 = vrot.lane.b32.xlu0 %v1992, 114
  %v2411 = vpop.permute.xlu0 %2410
  %2412 = vrot.lane.b32.xlu0 %v1997, 114
  %v2413 = vpop.permute.xlu0 %2412
  %2414 = vrot.lane.b32.xlu0 %v2002, 114
  %v2415 = vpop.permute.xlu0 %2414
  %2416 = vrot.lane.b32.xlu0 %v2007, 114
  %v2417 = vpop.permute.xlu0 %2416
  %2418 = vrot.lane.b32.xlu0 %v2012, 114
  %v2419 = vpop.permute.xlu0 %2418
  %2420 = vrot.lane.b32.xlu0 %v2017, 114
  %v2421 = vpop.permute.xlu0 %2420
  %2422 = vrot.lane.b32.xlu0 %v2022, 114
  %v2423 = vpop.permute.xlu0 %2422
  %2424 = vrot.lane.b32.xlu0 %v2027, 114
  %v2425 = vpop.permute.xlu0 %2424
  %2426 = vrot.lane.b32.xlu0 %v2032, 114
  %v2427 = vpop.permute.xlu0 %2426
  %2428 = vrot.lane.b32.xlu0 %v2037, 114
  %v2429 = vpop.permute.xlu0 %2428
  %2430 = vrot.lane.b32.xlu0 %v2042, 114
  %v2431 = vpop.permute.xlu0 %2430
  %2432 = vrot.lane.b32.xlu0 %v2047, 114
  %v2433 = vpop.permute.xlu0 %2432
  %v2450 = vld [vmem:[%s8] sm:$0xff]
  %v2451 = vld [vmem:[%s8 + $0x8] sm:$0xff]
  %v2452 = vld [vmem:[%s8 + $0x10] sm:$0xff]
  %v2453 = vld [vmem:[%s8 + $0x18] sm:$0xff]
  %v2454 = vld [vmem:[%s8 + $0x20] sm:$0xff]
  %v2455 = vld [vmem:[%s8 + $0x28] sm:$0xff]
  %v2456 = vld [vmem:[%s8 + $0x30] sm:$0xff]
  %v2457 = vld [vmem:[%s8 + $0x38] sm:$0xff]
  %v2458 = vld [vmem:[%s8 + $0x40] sm:$0xff]
  %v2459 = vld [vmem:[%s8 + $0x48] sm:$0xff]
  %v2460 = vld [vmem:[%s8 + $0x50] sm:$0xff]
  %v2461 = vld [vmem:[%s8 + $0x58] sm:$0xff]
  %v2462 = vld [vmem:[%s8 + $0x60] sm:$0xff]
  %v2463 = vld [vmem:[%s8 + $0x68] sm:$0xff]
  %v2464 = vld [vmem:[%s8 + $0x70] sm:$0xff]
  %v2465 = vld [vmem:[%s8 + $0x78] sm:$0xff]
  %v2466 = vld [vmem:[%s8 + $0x80] sm:$0xff]
  %v2467 = vld [vmem:[%s8 + $0x88] sm:$0xff]
  %v2468 = vld [vmem:[%s8 + $0x90] sm:$0xff]
  %v2469 = vld [vmem:[%s8 + $0x98] sm:$0xff]
  %v2470 = vld [vmem:[%s8 + $0xa0] sm:$0xff]
  %v2471 = vld [vmem:[%s8 + $0xa8] sm:$0xff]
  %v2472 = vld [vmem:[%s8 + $0xb0] sm:$0xff]
  %v2473 = vld [vmem:[%s8 + $0xb8] sm:$0xff]
  %v2474 = vld [vmem:[%s8 + $0xc0] sm:$0xff]
  %v2475 = vld [vmem:[%s8 + $0xc8] sm:$0xff]
  %v2476 = vld [vmem:[%s8 + $0xd0] sm:$0xff]
  %v2477 = vld [vmem:[%s8 + $0xd8] sm:$0xff]
  %v2478 = vld [vmem:[%s8 + $0xe0] sm:$0xff]
  %v2479 = vld [vmem:[%s8 + $0xe8] sm:$0xff]
  %v2480 = vld [vmem:[%s8 + $0xf0] sm:$0xff]
  %v2481 = vld [vmem:[%s8 + $0xf8] sm:$0xff]
  %v2482 = vld [vmem:[%s8 + $0x100] sm:$0xff]
  %v2483 = vld [vmem:[%s8 + $0x108] sm:$0xff]
  %v2484 = vld [vmem:[%s8 + $0x110] sm:$0xff]
  %v2485 = vld [vmem:[%s8 + $0x118] sm:$0xff]
  %v2486 = vld [vmem:[%s8 + $0x120] sm:$0xff]
  %v2487 = vld [vmem:[%s8 + $0x128] sm:$0xff]
  %v2488 = vld [vmem:[%s8 + $0x130] sm:$0xff]
  %v2489 = vld [vmem:[%s8 + $0x138] sm:$0xff]
  %v2490 = vld [vmem:[%s8 + $0x140] sm:$0xff]
  %v2491 = vld [vmem:[%s8 + $0x148] sm:$0xff]
  %v2492 = vld [vmem:[%s8 + $0x150] sm:$0xff]
  %v2493 = vld [vmem:[%s8 + $0x158] sm:$0xff]
  %v2494 = vld [vmem:[%s8 + $0x160] sm:$0xff]
  %v2495 = vld [vmem:[%s8 + $0x168] sm:$0xff]
  %v2496 = vld [vmem:[%s8 + $0x170] sm:$0xff]
  %v2497 = vld [vmem:[%s8 + $0x178] sm:$0xff]
  %v2498 = vld [vmem:[%s8 + $0x180] sm:$0xff]
  %v2499 = vld [vmem:[%s8 + $0x188] sm:$0xff]
  %v2500 = vld [vmem:[%s8 + $0x190] sm:$0xff]
  %v2501 = vld [vmem:[%s8 + $0x198] sm:$0xff]
  %v2502 = vld [vmem:[%s8 + $0x1a0] sm:$0xff]
  %v2503 = vld [vmem:[%s8 + $0x1a8] sm:$0xff]
  %v2504 = vld [vmem:[%s8 + $0x1b0] sm:$0xff]
  %v2505 = vld [vmem:[%s8 + $0x1b8] sm:$0xff]
  %v2506 = vld [vmem:[%s8 + $0x1c0] sm:$0xff]
  %v2507 = vld [vmem:[%s8 + $0x1c8] sm:$0xff]
  %v2508 = vld [vmem:[%s8 + $0x1d0] sm:$0xff]
  %v2509 = vld [vmem:[%s8 + $0x1d8] sm:$0xff]
  %v2510 = vld [vmem:[%s8 + $0x1e0] sm:$0xff]
  %v2511 = vld [vmem:[%s8 + $0x1e8] sm:$0xff]
  %v2512 = vld [vmem:[%s8 + $0x1f0] sm:$0xff]
  %v2513 = vld [vmem:[%s8 + $0x1f8] sm:$0xff]
  %v2514 = vld [vmem:[%s8 + $0x200] sm:$0xff]
  %v2515 = vld [vmem:[%s8 + $0x208] sm:$0xff]
  %v2516 = vld [vmem:[%s8 + $0x210] sm:$0xff]
  %v2517 = vld [vmem:[%s8 + $0x218] sm:$0xff]
  %v2518 = vld [vmem:[%s8 + $0x220] sm:$0xff]
  %v2519 = vld [vmem:[%s8 + $0x228] sm:$0xff]
  %v2520 = vld [vmem:[%s8 + $0x230] sm:$0xff]
  %v2521 = vld [vmem:[%s8 + $0x238] sm:$0xff]
  %v2522 = vld [vmem:[%s8 + $0x240] sm:$0xff]
  %v2523 = vld [vmem:[%s8 + $0x248] sm:$0xff]
  %v2524 = vld [vmem:[%s8 + $0x250] sm:$0xff]
  %v2525 = vld [vmem:[%s8 + $0x258] sm:$0xff]
  %v2526 = vld [vmem:[%s8 + $0x260] sm:$0xff]
  %v2527 = vld [vmem:[%s8 + $0x268] sm:$0xff]
  %v2528 = vld [vmem:[%s8 + $0x270] sm:$0xff]
  %v2529 = vld [vmem:[%s8 + $0x278] sm:$0xff]
  %v2530 = vld [vmem:[%s8 + $0x280] sm:$0xff]
  %v2531 = vld [vmem:[%s8 + $0x288] sm:$0xff]
  %v2532 = vld [vmem:[%s8 + $0x290] sm:$0xff]
  %v2533 = vld [vmem:[%s8 + $0x298] sm:$0xff]
  %v2534 = vld [vmem:[%s8 + $0x2a0] sm:$0xff]
  %v2535 = vld [vmem:[%s8 + $0x2a8] sm:$0xff]
  %v2536 = vld [vmem:[%s8 + $0x2b0] sm:$0xff]
  %v2537 = vld [vmem:[%s8 + $0x2b8] sm:$0xff]
  %v2538 = vld [vmem:[%s8 + $0x2c0] sm:$0xff]
  %v2539 = vld [vmem:[%s8 + $0x2c8] sm:$0xff]
  %v2540 = vld [vmem:[%s8 + $0x2d0] sm:$0xff]
  %v2541 = vld [vmem:[%s8 + $0x2d8] sm:$0xff]
  %v2542 = vld [vmem:[%s8 + $0x2e0] sm:$0xff]
  %v2543 = vld [vmem:[%s8 + $0x2e8] sm:$0xff]
  %v2544 = vld [vmem:[%s8 + $0x2f0] sm:$0xff]
  %v2545 = vld [vmem:[%s8 + $0x2f8] sm:$0xff]
  %v2546 = vld [vmem:[%s8 + $0x300] sm:$0xff]
  %v2547 = vld [vmem:[%s8 + $0x308] sm:$0xff]
  %v2548 = vld [vmem:[%s8 + $0x310] sm:$0xff]
  %v2549 = vld [vmem:[%s8 + $0x318] sm:$0xff]
  %v2550 = vld [vmem:[%s8 + $0x320] sm:$0xff]
  %v2551 = vld [vmem:[%s8 + $0x328] sm:$0xff]
  %v2552 = vld [vmem:[%s8 + $0x330] sm:$0xff]
  %v2553 = vld [vmem:[%s8 + $0x338] sm:$0xff]
  %v2554 = vld [vmem:[%s8 + $0x340] sm:$0xff]
  %v2555 = vld [vmem:[%s8 + $0x348] sm:$0xff]
  %v2556 = vld [vmem:[%s8 + $0x350] sm:$0xff]
  %v2557 = vld [vmem:[%s8 + $0x358] sm:$0xff]
  %v2558 = vld [vmem:[%s8 + $0x360] sm:$0xff]
  %v2559 = vld [vmem:[%s8 + $0x368] sm:$0xff]
  %v2560 = vld [vmem:[%s8 + $0x370] sm:$0xff]
  %v2561 = vld [vmem:[%s8 + $0x378] sm:$0xff]
  %v2562 = vld [vmem:[%s8 + $0x380] sm:$0xff]
  %v2563 = vld [vmem:[%s8 + $0x388] sm:$0xff]
  %v2564 = vld [vmem:[%s8 + $0x390] sm:$0xff]
  %v2565 = vld [vmem:[%s8 + $0x398] sm:$0xff]
  %v2566 = vld [vmem:[%s8 + $0x3a0] sm:$0xff]
  %v2567 = vld [vmem:[%s8 + $0x3a8] sm:$0xff]
  %v2568 = vld [vmem:[%s8 + $0x3b0] sm:$0xff]
  %v2569 = vld [vmem:[%s8 + $0x3b8] sm:$0xff]
  %v2570 = vld [vmem:[%s8 + $0x3c0] sm:$0xff]
  %v2571 = vld [vmem:[%s8 + $0x3c8] sm:$0xff]
  %v2572 = vld [vmem:[%s8 + $0x3d0] sm:$0xff]
  %v2573 = vld [vmem:[%s8 + $0x3d8] sm:$0xff]
  %v2574 = vld [vmem:[%s8 + $0x3e0] sm:$0xff]
  %v2575 = vld [vmem:[%s8 + $0x3e8] sm:$0xff]
  %v2576 = vld [vmem:[%s8 + $0x3f0] sm:$0xff]
  %v2577 = vld [vmem:[%s8 + $0x3f8] sm:$0xff]
  %v2578 = vld [vmem:[%s8 + $0x400] sm:$0xff]
  %v2579 = vld [vmem:[%s8 + $0x408] sm:$0xff]
  %v2580 = vld [vmem:[%s8 + $0x410] sm:$0xff]
  %v2581 = vld [vmem:[%s8 + $0x418] sm:$0xff]
  %v2582 = vld [vmem:[%s8 + $0x420] sm:$0xff]
  %v2583 = vld [vmem:[%s8 + $0x428] sm:$0xff]
  %v2584 = vld [vmem:[%s8 + $0x430] sm:$0xff]
  %v2585 = vld [vmem:[%s8 + $0x438] sm:$0xff]
  %v2586 = vld [vmem:[%s8 + $0x440] sm:$0xff]
  %v2587 = vld [vmem:[%s8 + $0x448] sm:$0xff]
  %v2588 = vld [vmem:[%s8 + $0x450] sm:$0xff]
  %v2589 = vld [vmem:[%s8 + $0x458] sm:$0xff]
  %v2590 = vld [vmem:[%s8 + $0x460] sm:$0xff]
  %v2591 = vld [vmem:[%s8 + $0x468] sm:$0xff]
  %v2592 = vld [vmem:[%s8 + $0x470] sm:$0xff]
  %v2593 = vld [vmem:[%s8 + $0x478] sm:$0xff]
  %v2594 = vld [vmem:[%s9] sm:$0xff]
  %v2595 = vld [vmem:[%s9 + $0x8] sm:$0xff]
  %v2596 = vld [vmem:[%s9 + $0x10] sm:$0xff]
  %v2597 = vld [vmem:[%s9 + $0x18] sm:$0xff]
  %v2598 = vld [vmem:[%s9 + $0x20] sm:$0xff]
  %v2599 = vld [vmem:[%s9 + $0x28] sm:$0xff]
  %v2600 = vld [vmem:[%s9 + $0x30] sm:$0xff]
  %v2601 = vld [vmem:[%s9 + $0x38] sm:$0xff]
  %v2602 = vld [vmem:[%s9 + $0x40] sm:$0xff]
  %v2603 = vld [vmem:[%s9 + $0x48] sm:$0xff]
  %v2604 = vld [vmem:[%s9 + $0x50] sm:$0xff]
  %v2605 = vld [vmem:[%s9 + $0x58] sm:$0xff]
  %v2606 = vld [vmem:[%s9 + $0x60] sm:$0xff]
  %v2607 = vld [vmem:[%s9 + $0x68] sm:$0xff]
  %v2608 = vld [vmem:[%s9 + $0x70] sm:$0xff]
  %v2609 = vld [vmem:[%s9 + $0x78] sm:$0xff]
  %2611 = vset.pattern.permute.xlu0 0
  %2612 = vperm.xlu0 %2611, %v2594
  %v2613 = vpop.permute.xlu0 %2612
  %2616 = vset.pattern.permute.xlu0 0
  %2617 = vperm.xlu0 %2616, %v2595
  %v2618 = vpop.permute.xlu0 %2617
  %2621 = vset.pattern.permute.xlu0 0
  %2622 = vperm.xlu0 %2621, %v2596
  %v2623 = vpop.permute.xlu0 %2622
  %2626 = vset.pattern.permute.xlu0 0
  %2627 = vperm.xlu0 %2626, %v2597
  %v2628 = vpop.permute.xlu0 %2627
  %2631 = vset.pattern.permute.xlu0 0
  %2632 = vperm.xlu0 %2631, %v2598
  %v2633 = vpop.permute.xlu0 %2632
  %2636 = vset.pattern.permute.xlu0 0
  %2637 = vperm.xlu0 %2636, %v2599
  %v2638 = vpop.permute.xlu0 %2637
  %2641 = vset.pattern.permute.xlu0 0
  %2642 = vperm.xlu0 %2641, %v2600
  %v2643 = vpop.permute.xlu0 %2642
  %2646 = vset.pattern.permute.xlu0 0
  %2647 = vperm.xlu0 %2646, %v2601
  %v2648 = vpop.permute.xlu0 %2647
  %2651 = vset.pattern.permute.xlu0 0
  %2652 = vperm.xlu0 %2651, %v2602
  %v2653 = vpop.permute.xlu0 %2652
  %2656 = vset.pattern.permute.xlu0 0
  %2657 = vperm.xlu0 %2656, %v2603
  %v2658 = vpop.permute.xlu0 %2657
  %2661 = vset.pattern.permute.xlu0 0
  %2662 = vperm.xlu0 %2661, %v2604
  %v2663 = vpop.permute.xlu0 %2662
  %2666 = vset.pattern.permute.xlu0 0
  %2667 = vperm.xlu0 %2666, %v2605
  %v2668 = vpop.permute.xlu0 %2667
  %2671 = vset.pattern.permute.xlu0 0
  %2672 = vperm.xlu0 %2671, %v2606
  %v2673 = vpop.permute.xlu0 %2672
  %2676 = vset.pattern.permute.xlu0 0
  %2677 = vperm.xlu0 %2676, %v2607
  %v2678 = vpop.permute.xlu0 %2677
  %2681 = vset.pattern.permute.xlu0 0
  %2682 = vperm.xlu0 %2681, %v2608
  %v2683 = vpop.permute.xlu0 %2682
  %2686 = vset.pattern.permute.xlu0 0
  %2687 = vperm.xlu0 %2686, %v2609
  %v2688 = vpop.permute.xlu0 %2687
  %2690 = vmatprep.subr.mxu0 0.0
  %2691 = vmatpush1.msra.mxu0 %v1972
  %2692 = vmatprep.subr.mxu0 0.0
  %2693 = vmatpush1.msra.mxu0 %v1977
  %2694 = vmatprep.subr.mxu0 0.0
  %2695 = vmatpush1.msra.mxu0 %v1982
  %2696 = vmatprep.subr.mxu0 0.0
  %2697 = vmatpush1.msra.mxu0 %v1987
  %2698 = vmatprep.subr.mxu0 0.0
  %2699 = vmatpush1.msra.mxu0 %v1992
  %2700 = vmatprep.subr.mxu0 0.0
  %2701 = vmatpush1.msra.mxu0 %v1997
  %2702 = vmatprep.subr.mxu0 0.0
  %2703 = vmatpush1.msra.mxu0 %v2002
  %2704 = vmatprep.subr.mxu0 0.0
  %2705 = vmatpush1.msra.mxu0 %v2007
  %2706 = vmatprep.subr.mxu0 0.0
  %2707 = vmatpush1.msra.mxu0 %v2012
  %2708 = vmatprep.subr.mxu0 0.0
  %2709 = vmatpush1.msra.mxu0 %v2017
  %2710 = vmatprep.subr.mxu0 0.0
  %2711 = vmatpush1.msra.mxu0 %v2022
  %2712 = vmatprep.subr.mxu0 0.0
  %2713 = vmatpush1.msra.mxu0 %v2027
  %2714 = vmatprep.subr.mxu0 0.0
  %2715 = vmatpush1.msra.mxu0 %v2032
  %2716 = vmatprep.subr.mxu0 0.0
  %2717 = vmatpush1.msra.mxu0 %v2037
  %2718 = vmatprep.subr.mxu0 0.0
  %2719 = vmatpush1.msra.mxu0 %v2042
  %2720 = vmatprep.subr.mxu0 0.0
  %2721 = vmatpush1.msra.mxu0 %v2047
  %2722 = vmatprep.subr.mxu0 0.0
  %2723 = vmatpush1.msra.mxu0 %v2067
  %2724 = vmatprep.subr.mxu0 0.0
  %2725 = vmatpush1.msra.mxu0 %v2069
  %2726 = vmatprep.subr.mxu0 0.0
  %2727 = vmatpush1.msra.mxu0 %v2071
  %2728 = vmatprep.subr.mxu0 0.0
  %2729 = vmatpush1.msra.mxu0 %v2073
  %2730 = vmatprep.subr.mxu0 0.0
  %2731 = vmatpush1.msra.mxu0 %v2075
  %2732 = vmatprep.subr.mxu0 0.0
  %2733 = vmatpush1.msra.mxu0 %v2077
  %2734 = vmatprep.subr.mxu0 0.0
  %2735 = vmatpush1.msra.mxu0 %v2079
  %2736 = vmatprep.subr.mxu0 0.0
  %2737 = vmatpush1.msra.mxu0 %v2081
  %2738 = vmatprep.subr.mxu0 0.0
  %2739 = vmatpush1.msra.mxu0 %v2083
  %2740 = vmatprep.subr.mxu0 0.0
  %2741 = vmatpush1.msra.mxu0 %v2085
  %2742 = vmatprep.subr.mxu0 0.0
  %2743 = vmatpush1.msra.mxu0 %v2087
  %2744 = vmatprep.subr.mxu0 0.0
  %2745 = vmatpush1.msra.mxu0 %v2089
  %2746 = vmatprep.subr.mxu0 0.0
  %2747 = vmatpush1.msra.mxu0 %v2091
  %2748 = vmatprep.subr.mxu0 0.0
  %2749 = vmatpush1.msra.mxu0 %v2093
  %2750 = vmatprep.subr.mxu0 0.0
  %2751 = vmatpush1.msra.mxu0 %v2095
  %2752 = vmatprep.subr.mxu0 0.0
  %2753 = vmatpush1.msra.mxu0 %v2097
  %2754 = vmatprep.mubr.f32.mxu0 %v2451
  %2755 = vmatmul.mubr.f32.gmra.mrb[0].mxu0 %v2450
  %v2756 = vpop.f32.mrb[0].mxu0
  %v2757 = vadd.f32 %v2613, %v2756
  %v2758 = vpop.f32.mrb[0].mxu0
  %2759 = vmatprep.mubr.f32.mxu0 %v2460
  %2760 = vmatmul.mubr.f32.gmra.mrb[0].mxu0 %v2459
  %v2761 = vpop.f32.mrb[0].mxu0
  %v2762 = vadd.f32 %v2618, %v2761
  %v2763 = vpop.f32.mrb[0].mxu0
  %2764 = vmatprep.mubr.f32.mxu0 %v2469
  %2765 = vmatmul.mubr.f32.gmra.mrb[0].mxu0 %v2468
  %v2766 = vpop.f32.mrb[0].mxu0
  %v2767 = vadd.f32 %v2623, %v2766
  %v2768 = vpop.f32.mrb[0].mxu0
  %2769 = vmatprep.mubr.f32.mxu0 %v2478
  %2770 = vmatmul.mubr.f32.gmra.mrb[0].mxu0 %v2477
  %v2771 = vpop.f32.mrb[0].mxu0
  %v2772 = vadd.f32 %v2628, %v2771
  %v2773 = vpop.f32.mrb[0].mxu0
  %2774 = vmatprep.mubr.f32.mxu0 %v2487
  %2775 = vmatmul.mubr.f32.gmra.mrb[0].mxu0 %v2486
  %v2776 = vpop.f32.mrb[0].mxu0
  %v2777 = vadd.f32 %v2633, %v2776
  %v2778 = vpop.f32.mrb[0].mxu0
  %2779 = vmatprep.mubr.f32.mxu0 %v2496
  %2780 = vmatmul.mubr.f32.gmra.mrb[0].mxu0 %v2495
  %v2781 = vpop.f32.mrb[0].mxu0
  %v2782 = vadd.f32 %v2638, %v2781
  %v2783 = vpop.f32.mrb[0].mxu0
  %2784 = vmatprep.mubr.f32.mxu0 %v2505
  %2785 = vmatmul.mubr.f32.gmra.mrb[0].mxu0 %v2504
  %v2786 = vpop.f32.mrb[0].mxu0
  %v2787 = vadd.f32 %v2643, %v2786
  %v2788 = vpop.f32.mrb[0].mxu0
  %2789 = vmatprep.mubr.f32.mxu0 %v2514
  %2790 = vmatmul.mubr.f32.gmra.mrb[0].mxu0 %v2513
  %v2791 = vpop.f32.mrb[0].mxu0
  %v2792 = vadd.f32 %v2648, %v2791
  %v2793 = vpop.f32.mrb[0].mxu0
  %2794 = vmatprep.mubr.f32.mxu0 %v2523
  %2795 = vmatmul.mubr.f32.gmra.mrb[0].mxu0 %v2522
  %v2796 = vpop.f32.mrb[0].mxu0
  %v2797 = vadd.f32 %v2653, %v2796
  %v2798 = vpop.f32.mrb[0].mxu0
  %2799 = vmatprep.mubr.f32.mxu0 %v2532
  %2800 = vmatmul.mubr.f32.gmra.mrb[0].mxu0 %v2531
  %v2801 = vpop.f32.mrb[0].mxu0
  %v2802 = vadd.f32 %v2658, %v2801
  %v2803 = vpop.f32.mrb[0].mxu0
  %2804 = vmatprep.mubr.f32.mxu0 %v2541
  %2805 = vmatmul.mubr.f32.gmra.mrb[0].mxu0 %v2540
  %v2806 = vpop.f32.mrb[0].mxu0
  %v2807 = vadd.f32 %v2663, %v2806
  %v2808 = vpop.f32.mrb[0].mxu0
  %2809 = vmatprep.mubr.f32.mxu0 %v2550
  %2810 = vmatmul.mubr.f32.gmra.mrb[0].mxu0 %v2549
  %v2811 = vpop.f32.mrb[0].mxu0
  %v2812 = vadd.f32 %v2668, %v2811
  %v2813 = vpop.f32.mrb[0].mxu0
  %2814 = vmatprep.mubr.f32.mxu0 %v2559
  %2815 = vmatmul.mubr.f32.gmra.mrb[0].mxu0 %v2558
  %v2816 = vpop.f32.mrb[0].mxu0
  %v2817 = vadd.f32 %v2673, %v2816
  %v2818 = vpop.f32.mrb[0].mxu0
  %2819 = vmatprep.mubr.f32.mxu0 %v2568
  %2820 = vmatmul.mubr.f32.gmra.mrb[0].mxu0 %v2567
  %v2821 = vpop.f32.mrb[0].mxu0
  %v2822 = vadd.f32 %v2678, %v2821
  %v2823 = vpop.f32.mrb[0].mxu0
  %2824 = vmatprep.mubr.f32.mxu0 %v2577
  %2825 = vmatmul.mubr.f32.gmra.mrb[0].mxu0 %v2576
  %v2826 = vpop.f32.mrb[0].mxu0
  %v2827 = vadd.f32 %v2683, %v2826
  %v2828 = vpop.f32.mrb[0].mxu0
  %2829 = vmatprep.mubr.f32.mxu0 %v2586
  %2830 = vmatmul.mubr.f32.gmra.mrb[0].mxu0 %v2585
  %v2831 = vpop.f32.mrb[0].mxu0
  %v2832 = vadd.f32 %v2688, %v2831
  %v2833 = vpop.f32.mrb[0].mxu0
  %2834 = vdwg.mxu0
  %2835 = vmatprep.subr.mxu0 0.0
  %2836 = vmatpush1.msra.mxu0 %v2115
  %2837 = vmatprep.subr.mxu0 0.0
  %2838 = vmatpush1.msra.mxu0 %v2117
  %2839 = vmatprep.subr.mxu0 0.0
  %2840 = vmatpush1.msra.mxu0 %v2119
  %2841 = vmatprep.subr.mxu0 0.0
  %2842 = vmatpush1.msra.mxu0 %v2121
  %2843 = vmatprep.subr.mxu0 0.0
  %2844 = vmatpush1.msra.mxu0 %v2123
  %2845 = vmatprep.subr.mxu0 0.0
  %2846 = vmatpush1.msra.mxu0 %v2125
  %2847 = vmatprep.subr.mxu0 0.0
  %2848 = vmatpush1.msra.mxu0 %v2127
  %2849 = vmatprep.subr.mxu0 0.0
  %2850 = vmatpush1.msra.mxu0 %v2129
  %2851 = vmatprep.subr.mxu0 0.0
  %2852 = vmatpush1.msra.mxu0 %v2131
  %2853 = vmatprep.subr.mxu0 0.0
  %2854 = vmatpush1.msra.mxu0 %v2133
  %2855 = vmatprep.subr.mxu0 0.0
  %2856 = vmatpush1.msra.mxu0 %v2135
  %2857 = vmatprep.subr.mxu0 0.0
  %2858 = vmatpush1.msra.mxu0 %v2137
  %2859 = vmatprep.subr.mxu0 0.0
  %2860 = vmatpush1.msra.mxu0 %v2139
  %2861 = vmatprep.subr.mxu0 0.0
  %2862 = vmatpush1.msra.mxu0 %v2141
  %2863 = vmatprep.subr.mxu0 0.0
  %2864 = vmatpush1.msra.mxu0 %v2143
  %2865 = vmatprep.subr.mxu0 0.0
  %2866 = vmatpush1.msra.mxu0 %v2145
  %2867 = vmatprep.subr.mxu0 0.0
  %2868 = vmatpush1.msra.mxu0 %v2163
  %2869 = vmatprep.subr.mxu0 0.0
  %2870 = vmatpush1.msra.mxu0 %v2165
  %2871 = vmatprep.subr.mxu0 0.0
  %2872 = vmatpush1.msra.mxu0 %v2167
  %2873 = vmatprep.subr.mxu0 0.0
  %2874 = vmatpush1.msra.mxu0 %v2169
  %2875 = vmatprep.subr.mxu0 0.0
  %2876 = vmatpush1.msra.mxu0 %v2171
  %2877 = vmatprep.subr.mxu0 0.0
  %2878 = vmatpush1.msra.mxu0 %v2173
  %2879 = vmatprep.subr.mxu0 0.0
  %2880 = vmatpush1.msra.mxu0 %v2175
  %2881 = vmatprep.subr.mxu0 0.0
  %2882 = vmatpush1.msra.mxu0 %v2177
  %2883 = vmatprep.subr.mxu0 0.0
  %2884 = vmatpush1.msra.mxu0 %v2179
  %2885 = vmatprep.subr.mxu0 0.0
  %2886 = vmatpush1.msra.mxu0 %v2181
  %2887 = vmatprep.subr.mxu0 0.0
  %2888 = vmatpush1.msra.mxu0 %v2183
  %2889 = vmatprep.subr.mxu0 0.0
  %2890 = vmatpush1.msra.mxu0 %v2185
  %2891 = vmatprep.subr.mxu0 0.0
  %2892 = vmatpush1.msra.mxu0 %v2187
  %2893 = vmatprep.subr.mxu0 0.0
  %2894 = vmatpush1.msra.mxu0 %v2189
  %2895 = vmatprep.subr.mxu0 0.0
  %2896 = vmatpush1.msra.mxu0 %v2191
  %2897 = vmatprep.subr.mxu0 0.0
  %2898 = vmatpush1.msra.mxu0 %v2193
  %2899 = vmatprep.mubr.f32.mxu0 %v2453
  %2900 = vmatmul.mubr.f32.gmra.mrb[0].mxu0 %v2452
  %v2901 = vpop.f32.mrb[0].mxu0
  %v2902 = vadd.f32 %v2757, %v2901
  %v2903 = vpop.f32.mrb[0].mxu0
  %2904 = vmatprep.mubr.f32.mxu0 %v2462
  %2905 = vmatmul.mubr.f32.gmra.mrb[0].mxu0 %v2461
  %v2906 = vpop.f32.mrb[0].mxu0
  %v2907 = vadd.f32 %v2762, %v2906
  %v2908 = vpop.f32.mrb[0].mxu0
  %2909 = vmatprep.mubr.f32.mxu0 %v2471
  %2910 = vmatmul.mubr.f32.gmra.mrb[0].mxu0 %v2470
  %v2911 = vpop.f32.mrb[0].mxu0
  %v2912 = vadd.f32 %v2767, %v2911
  %v2913 = vpop.f32.mrb[0].mxu0
  %2914 = vmatprep.mubr.f32.mxu0 %v2480
  %2915 = vmatmul.mubr.f32.gmra.mrb[0].mxu0 %v2479
  %v2916 = vpop.f32.mrb[0].mxu0
  %v2917 = vadd.f32 %v2772, %v2916
  %v2918 = vpop.f32.mrb[0].mxu0
  %2919 = vmatprep.mubr.f32.mxu0 %v2489
  %2920 = vmatmul.mubr.f32.gmra.mrb[0].mxu0 %v2488
  %v2921 = vpop.f32.mrb[0].mxu0
  %v2922 = vadd.f32 %v2777, %v2921
  %v2923 = vpop.f32.mrb[0].mxu0
  %2924 = vmatprep.mubr.f32.mxu0 %v2498
  %2925 = vmatmul.mubr.f32.gmra.mrb[0].mxu0 %v2497
  %v2926 = vpop.f32.mrb[0].mxu0
  %v2927 = vadd.f32 %v2782, %v2926
  %v2928 = vpop.f32.mrb[0].mxu0
  %2929 = vmatprep.mubr.f32.mxu0 %v2507
  %2930 = vmatmul.mubr.f32.gmra.mrb[0].mxu0 %v2506
  %v2931 = vpop.f32.mrb[0].mxu0
  %v2932 = vadd.f32 %v2787, %v2931
  %v2933 = vpop.f32.mrb[0].mxu0
  %2934 = vmatprep.mubr.f32.mxu0 %v2516
  %2935 = vmatmul.mubr.f32.gmra.mrb[0].mxu0 %v2515
  %v2936 = vpop.f32.mrb[0].mxu0
  %v2937 = vadd.f32 %v2792, %v2936
  %v2938 = vpop.f32.mrb[0].mxu0
  %2939 = vmatprep.mubr.f32.mxu0 %v2525
  %2940 = vmatmul.mubr.f32.gmra.mrb[0].mxu0 %v2524
  %v2941 = vpop.f32.mrb[0].mxu0
  %v2942 = vadd.f32 %v2797, %v2941
  %v2943 = vpop.f32.mrb[0].mxu0
  %2944 = vmatprep.mubr.f32.mxu0 %v2534
  %2945 = vmatmul.mubr.f32.gmra.mrb[0].mxu0 %v2533
  %v2946 = vpop.f32.mrb[0].mxu0
  %v2947 = vadd.f32 %v2802, %v2946
  %v2948 = vpop.f32.mrb[0].mxu0
  %2949 = vmatprep.mubr.f32.mxu0 %v2543
  %2950 = vmatmul.mubr.f32.gmra.mrb[0].mxu0 %v2542
  %v2951 = vpop.f32.mrb[0].mxu0
  %v2952 = vadd.f32 %v2807, %v2951
  %v2953 = vpop.f32.mrb[0].mxu0
  %2954 = vmatprep.mubr.f32.mxu0 %v2552
  %2955 = vmatmul.mubr.f32.gmra.mrb[0].mxu0 %v2551
  %v2956 = vpop.f32.mrb[0].mxu0
  %v2957 = vadd.f32 %v2812, %v2956
  %v2958 = vpop.f32.mrb[0].mxu0
  %2959 = vmatprep.mubr.f32.mxu0 %v2561
  %2960 = vmatmul.mubr.f32.gmra.mrb[0].mxu0 %v2560
  %v2961 = vpop.f32.mrb[0].mxu0
  %v2962 = vadd.f32 %v2817, %v2961
  %v2963 = vpop.f32.mrb[0].mxu0
  %2964 = vmatprep.mubr.f32.mxu0 %v2570
  %2965 = vmatmul.mubr.f32.gmra.mrb[0].mxu0 %v2569
  %v2966 = vpop.f32.mrb[0].mxu0
  %v2967 = vadd.f32 %v2822, %v2966
  %v2968 = vpop.f32.mrb[0].mxu0
  %2969 = vmatprep.mubr.f32.mxu0 %v2579
  %2970 = vmatmul.mubr.f32.gmra.mrb[0].mxu0 %v2578
  %v2971 = vpop.f32.mrb[0].mxu0
  %v2972 = vadd.f32 %v2827, %v2971
  %v2973 = vpop.f32.mrb[0].mxu0
  %2974 = vmatprep.mubr.f32.mxu0 %v2588
  %2975 = vmatmul.mubr.f32.gmra.mrb[0].mxu0 %v2587
  %v2976 = vpop.f32.mrb[0].mxu0
  %v2977 = vadd.f32 %v2832, %v2976
  %v2978 = vpop.f32.mrb[0].mxu0
  %2979 = vdwg.mxu0
  %2980 = vmatprep.subr.mxu0 0.0
  %2981 = vmatpush1.msra.mxu0 %v2211
  %2982 = vmatprep.subr.mxu0 0.0
  %2983 = vmatpush1.msra.mxu0 %v2213
  %2984 = vmatprep.subr.mxu0 0.0
  %2985 = vmatpush1.msra.mxu0 %v2215
  %2986 = vmatprep.subr.mxu0 0.0
  %2987 = vmatpush1.msra.mxu0 %v2217
  %2988 = vmatprep.subr.mxu0 0.0
  %2989 = vmatpush1.msra.mxu0 %v2219
  %2990 = vmatprep.subr.mxu0 0.0
  %2991 = vmatpush1.msra.mxu0 %v2221
  %2992 = vmatprep.subr.mxu0 0.0
  %2993 = vmatpush1.msra.mxu0 %v2223
  %2994 = vmatprep.subr.mxu0 0.0
  %2995 = vmatpush1.msra.mxu0 %v2225
  %2996 = vmatprep.subr.mxu0 0.0
  %2997 = vmatpush1.msra.mxu0 %v2227
  %2998 = vmatprep.subr.mxu0 0.0
  %2999 = vmatpush1.msra.mxu0 %v2229
  %3000 = vmatprep.subr.mxu0 0.0
  %3001 = vmatpush1.msra.mxu0 %v2231
  %3002 = vmatprep.subr.mxu0 0.0
  %3003 = vmatpush1.msra.mxu0 %v2233
  %3004 = vmatprep.subr.mxu0 0.0
  %3005 = vmatpush1.msra.mxu0 %v2235
  %3006 = vmatprep.subr.mxu0 0.0
  %3007 = vmatpush1.msra.mxu0 %v2237
  %3008 = vmatprep.subr.mxu0 0.0
  %3009 = vmatpush1.msra.mxu0 %v2239
  %3010 = vmatprep.subr.mxu0 0.0
  %3011 = vmatpush1.msra.mxu0 %v2241
  %3012 = vmatprep.subr.mxu0 0.0
  %3013 = vmatpush1.msra.mxu0 %v2259
  %3014 = vmatprep.subr.mxu0 0.0
  %3015 = vmatpush1.msra.mxu0 %v2261
  %3016 = vmatprep.subr.mxu0 0.0
  %3017 = vmatpush1.msra.mxu0 %v2263
  %3018 = vmatprep.subr.mxu0 0.0
  %3019 = vmatpush1.msra.mxu0 %v2265
  %3020 = vmatprep.subr.mxu0 0.0
  %3021 = vmatpush1.msra.mxu0 %v2267
  %3022 = vmatprep.subr.mxu0 0.0
  %3023 = vmatpush1.msra.mxu0 %v2269
  %3024 = vmatprep.subr.mxu0 0.0
  %3025 = vmatpush1.msra.mxu0 %v2271
  %3026 = vmatprep.subr.mxu0 0.0
  %3027 = vmatpush1.msra.mxu0 %v2273
  %3028 = vmatprep.subr.mxu0 0.0
  %3029 = vmatpush1.msra.mxu0 %v2275
  %3030 = vmatprep.subr.mxu0 0.0
  %3031 = vmatpush1.msra.mxu0 %v2277
  %3032 = vmatprep.subr.mxu0 0.0
  %3033 = vmatpush1.msra.mxu0 %v2279
  %3034 = vmatprep.subr.mxu0 0.0
  %3035 = vmatpush1.msra.mxu0 %v2281
  %3036 = vmatprep.subr.mxu0 0.0
  %3037 = vmatpush1.msra.mxu0 %v2283
  %3038 = vmatprep.subr.mxu0 0.0
  %3039 = vmatpush1.msra.mxu0 %v2285
  %3040 = vmatprep.subr.mxu0 0.0
  %3041 = vmatpush1.msra.mxu0 %v2287
  %3042 = vmatprep.subr.mxu0 0.0
  %3043 = vmatpush1.msra.mxu0 %v2289
  %3044 = vmatprep.mubr.f32.mxu0 %v2455
  %3045 = vmatmul.mubr.f32.gmra.mrb[0].mxu0 %v2454
  %v3046 = vpop.f32.mrb[0].mxu0
  %v3047 = vadd.f32 %v2902, %v3046
  %v3048 = vpop.f32.mrb[0].mxu0
  %3049 = vmatprep.mubr.f32.mxu0 %v2464
  %3050 = vmatmul.mubr.f32.gmra.mrb[0].mxu0 %v2463
  %v3051 = vpop.f32.mrb[0].mxu0
  %v3052 = vadd.f32 %v2907, %v3051
  %v3053 = vpop.f32.mrb[0].mxu0
  %3054 = vmatprep.mubr.f32.mxu0 %v2473
  %3055 = vmatmul.mubr.f32.gmra.mrb[0].mxu0 %v2472
  %v3056 = vpop.f32.mrb[0].mxu0
  %v3057 = vadd.f32 %v2912, %v3056
  %v3058 = vpop.f32.mrb[0].mxu0
  %3059 = vmatprep.mubr.f32.mxu0 %v2482
  %3060 = vmatmul.mubr.f32.gmra.mrb[0].mxu0 %v2481
  %v3061 = vpop.f32.mrb[0].mxu0
  %v3062 = vadd.f32 %v2917, %v3061
  %v3063 = vpop.f32.mrb[0].mxu0
  %3064 = vmatprep.mubr.f32.mxu0 %v2491
  %3065 = vmatmul.mubr.f32.gmra.mrb[0].mxu0 %v2490
  %v3066 = vpop.f32.mrb[0].mxu0
  %v3067 = vadd.f32 %v2922, %v3066
  %v3068 = vpop.f32.mrb[0].mxu0
  %3069 = vmatprep.mubr.f32.mxu0 %v2500
  %3070 = vmatmul.mubr.f32.gmra.mrb[0].mxu0 %v2499
  %v3071 = vpop.f32.mrb[0].mxu0
  %v3072 = vadd.f32 %v2927, %v3071
  %v3073 = vpop.f32.mrb[0].mxu0
  %3074 = vmatprep.mubr.f32.mxu0 %v2509
  %3075 = vmatmul.mubr.f32.gmra.mrb[0].mxu0 %v2508
  %v3076 = vpop.f32.mrb[0].mxu0
  %v3077 = vadd.f32 %v2932, %v3076
  %v3078 = vpop.f32.mrb[0].mxu0
  %3079 = vmatprep.mubr.f32.mxu0 %v2518
  %3080 = vmatmul.mubr.f32.gmra.mrb[0].mxu0 %v2517
  %v3081 = vpop.f32.mrb[0].mxu0
  %v3082 = vadd.f32 %v2937, %v3081
  %v3083 = vpop.f32.mrb[0].mxu0
  %3084 = vmatprep.mubr.f32.mxu0 %v2527
  %3085 = vmatmul.mubr.f32.gmra.mrb[0].mxu0 %v2526
  %v3086 = vpop.f32.mrb[0].mxu0
  %v3087 = vadd.f32 %v2942, %v3086
  %v3088 = vpop.f32.mrb[0].mxu0
  %3089 = vmatprep.mubr.f32.mxu0 %v2536
  %3090 = vmatmul.mubr.f32.gmra.mrb[0].mxu0 %v2535
  %v3091 = vpop.f32.mrb[0].mxu0
  %v3092 = vadd.f32 %v2947, %v3091
  %v3093 = vpop.f32.mrb[0].mxu0
  %3094 = vmatprep.mubr.f32.mxu0 %v2545
  %3095 = vmatmul.mubr.f32.gmra.mrb[0].mxu0 %v2544
  %v3096 = vpop.f32.mrb[0].mxu0
  %v3097 = vadd.f32 %v2952, %v3096
  %v3098 = vpop.f32.mrb[0].mxu0
  %3099 = vmatprep.mubr.f32.mxu0 %v2554
  %3100 = vmatmul.mubr.f32.gmra.mrb[0].mxu0 %v2553
  %v3101 = vpop.f32.mrb[0].mxu0
  %v3102 = vadd.f32 %v2957, %v3101
  %v3103 = vpop.f32.mrb[0].mxu0
  %3104 = vmatprep.mubr.f32.mxu0 %v2563
  %3105 = vmatmul.mubr.f32.gmra.mrb[0].mxu0 %v2562
  %v3106 = vpop.f32.mrb[0].mxu0
  %v3107 = vadd.f32 %v2962, %v3106
  %v3108 = vpop.f32.mrb[0].mxu0
  %3109 = vmatprep.mubr.f32.mxu0 %v2572
  %3110 = vmatmul.mubr.f32.gmra.mrb[0].mxu0 %v2571
  %v3111 = vpop.f32.mrb[0].mxu0
  %v3112 = vadd.f32 %v2967, %v3111
  %v3113 = vpop.f32.mrb[0].mxu0
  %3114 = vmatprep.mubr.f32.mxu0 %v2581
  %3115 = vmatmul.mubr.f32.gmra.mrb[0].mxu0 %v2580
  %v3116 = vpop.f32.mrb[0].mxu0
  %v3117 = vadd.f32 %v2972, %v3116
  %v3118 = vpop.f32.mrb[0].mxu0
  %3119 = vmatprep.mubr.f32.mxu0 %v2590
  %3120 = vmatmul.mubr.f32.gmra.mrb[0].mxu0 %v2589
  %v3121 = vpop.f32.mrb[0].mxu0
  %v3122 = vadd.f32 %v2977, %v3121
  %v3123 = vpop.f32.mrb[0].mxu0
  %3124 = vdwg.mxu0
  %3125 = vmatprep.subr.mxu0 0.0
  %3126 = vmatpush1.msra.mxu0 %v2307
  %3127 = vmatprep.subr.mxu0 0.0
  %3128 = vmatpush1.msra.mxu0 %v2309
  %3129 = vmatprep.subr.mxu0 0.0
  %3130 = vmatpush1.msra.mxu0 %v2311
  %3131 = vmatprep.subr.mxu0 0.0
  %3132 = vmatpush1.msra.mxu0 %v2313
  %3133 = vmatprep.subr.mxu0 0.0
  %3134 = vmatpush1.msra.mxu0 %v2315
  %3135 = vmatprep.subr.mxu0 0.0
  %3136 = vmatpush1.msra.mxu0 %v2317
  %3137 = vmatprep.subr.mxu0 0.0
  %3138 = vmatpush1.msra.mxu0 %v2319
  %3139 = vmatprep.subr.mxu0 0.0
  %3140 = vmatpush1.msra.mxu0 %v2321
  %3141 = vmatprep.subr.mxu0 0.0
  %3142 = vmatpush1.msra.mxu0 %v2323
  %3143 = vmatprep.subr.mxu0 0.0
  %3144 = vmatpush1.msra.mxu0 %v2325
  %3145 = vmatprep.subr.mxu0 0.0
  %3146 = vmatpush1.msra.mxu0 %v2327
  %3147 = vmatprep.subr.mxu0 0.0
  %3148 = vmatpush1.msra.mxu0 %v2329
  %3149 = vmatprep.subr.mxu0 0.0
  %3150 = vmatpush1.msra.mxu0 %v2331
  %3151 = vmatprep.subr.mxu0 0.0
  %3152 = vmatpush1.msra.mxu0 %v2333
  %3153 = vmatprep.subr.mxu0 0.0
  %3154 = vmatpush1.msra.mxu0 %v2335
  %3155 = vmatprep.subr.mxu0 0.0
  %3156 = vmatpush1.msra.mxu0 %v2337
  %3157 = vmatprep.subr.mxu0 0.0
  %3158 = vmatpush1.msra.mxu0 %v2355
  %3159 = vmatprep.subr.mxu0 0.0
  %3160 = vmatpush1.msra.mxu0 %v2357
  %3161 = vmatprep.subr.mxu0 0.0
  %3162 = vmatpush1.msra.mxu0 %v2359
  %3163 = vmatprep.subr.mxu0 0.0
  %3164 = vmatpush1.msra.mxu0 %v2361
  %3165 = vmatprep.subr.mxu0 0.0
  %3166 = vmatpush1.msra.mxu0 %v2363
  %3167 = vmatprep.subr.mxu0 0.0
  %3168 = vmatpush1.msra.mxu0 %v2365
  %3169 = vmatprep.subr.mxu0 0.0
  %3170 = vmatpush1.msra.mxu0 %v2367
  %3171 = vmatprep.subr.mxu0 0.0
  %3172 = vmatpush1.msra.mxu0 %v2369
  %3173 = vmatprep.subr.mxu0 0.0
  %3174 = vmatpush1.msra.mxu0 %v2371
  %3175 = vmatprep.subr.mxu0 0.0
  %3176 = vmatpush1.msra.mxu0 %v2373
  %3177 = vmatprep.subr.mxu0 0.0
  %3178 = vmatpush1.msra.mxu0 %v2375
  %3179 = vmatprep.subr.mxu0 0.0
  %3180 = vmatpush1.msra.mxu0 %v2377
  %3181 = vmatprep.subr.mxu0 0.0
  %3182 = vmatpush1.msra.mxu0 %v2379
  %3183 = vmatprep.subr.mxu0 0.0
  %3184 = vmatpush1.msra.mxu0 %v2381
  %3185 = vmatprep.subr.mxu0 0.0
  %3186 = vmatpush1.msra.mxu0 %v2383
  %3187 = vmatprep.subr.mxu0 0.0
  %3188 = vmatpush1.msra.mxu0 %v2385
  %3189 = vmatprep.mubr.f32.mxu0 %v2457
  %3190 = vmatmul.mubr.f32.gmra.mrb[0].mxu0 %v2456
  %v3191 = vpop.f32.mrb[0].mxu0
  %v3192 = vadd.f32 %v3047, %v3191
  %v3193 = vpop.f32.mrb[0].mxu0
  %3194 = vmatprep.mubr.f32.mxu0 %v2466
  %3195 = vmatmul.mubr.f32.gmra.mrb[0].mxu0 %v2465
  %v3196 = vpop.f32.mrb[0].mxu0
  %v3197 = vadd.f32 %v3052, %v3196
  %v3198 = vpop.f32.mrb[0].mxu0
  %3199 = vmatprep.mubr.f32.mxu0 %v2475
  %3200 = vmatmul.mubr.f32.gmra.mrb[0].mxu0 %v2474
  %v3201 = vpop.f32.mrb[0].mxu0
  %v3202 = vadd.f32 %v3057, %v3201
  %v3203 = vpop.f32.mrb[0].mxu0
  %3204 = vmatprep.mubr.f32.mxu0 %v2484
  %3205 = vmatmul.mubr.f32.gmra.mrb[0].mxu0 %v2483
  %v3206 = vpop.f32.mrb[0].mxu0
  %v3207 = vadd.f32 %v3062, %v3206
  %v3208 = vpop.f32.mrb[0].mxu0
  %3209 = vmatprep.mubr.f32.mxu0 %v2493
  %3210 = vmatmul.mubr.f32.gmra.mrb[0].mxu0 %v2492
  %v3211 = vpop.f32.mrb[0].mxu0
  %v3212 = vadd.f32 %v3067, %v3211
  %v3213 = vpop.f32.mrb[0].mxu0
  %3214 = vmatprep.mubr.f32.mxu0 %v2502
  %3215 = vmatmul.mubr.f32.gmra.mrb[0].mxu0 %v2501
  %v3216 = vpop.f32.mrb[0].mxu0
  %v3217 = vadd.f32 %v3072, %v3216
  %v3218 = vpop.f32.mrb[0].mxu0
  %3219 = vmatprep.mubr.f32.mxu0 %v2511
  %3220 = vmatmul.mubr.f32.gmra.mrb[0].mxu0 %v2510
  %v3221 = vpop.f32.mrb[0].mxu0
  %v3222 = vadd.f32 %v3077, %v3221
  %v3223 = vpop.f32.mrb[0].mxu0
  %3224 = vmatprep.mubr.f32.mxu0 %v2520
  %3225 = vmatmul.mubr.f32.gmra.mrb[0].mxu0 %v2519
  %v3226 = vpop.f32.mrb[0].mxu0
  %v3227 = vadd.f32 %v3082, %v3226
  %v3228 = vpop.f32.mrb[0].mxu0
  %3229 = vmatprep.mubr.f32.mxu0 %v2529
  %3230 = vmatmul.mubr.f32.gmra.mrb[0].mxu0 %v2528
  %v3231 = vpop.f32.mrb[0].mxu0
  %v3232 = vadd.f32 %v3087, %v3231
  %v3233 = vpop.f32.mrb[0].mxu0
  %3234 = vmatprep.mubr.f32.mxu0 %v2538
  %3235 = vmatmul.mubr.f32.gmra.mrb[0].mxu0 %v2537
  %v3236 = vpop.f32.mrb[0].mxu0
  %v3237 = vadd.f32 %v3092, %v3236
  %v3238 = vpop.f32.mrb[0].mxu0
  %3239 = vmatprep.mubr.f32.mxu0 %v2547
  %3240 = vmatmul.mubr.f32.gmra.mrb[0].mxu0 %v2546
  %v3241 = vpop.f32.mrb[0].mxu0
  %v3242 = vadd.f32 %v3097, %v3241
  %v3243 = vpop.f32.mrb[0].mxu0
  %3244 = vmatprep.mubr.f32.mxu0 %v2556
  %3245 = vmatmul.mubr.f32.gmra.mrb[0].mxu0 %v2555
  %v3246 = vpop.f32.mrb[0].mxu0
  %v3247 = vadd.f32 %v3102, %v3246
  %v3248 = vpop.f32.mrb[0].mxu0
  %3249 = vmatprep.mubr.f32.mxu0 %v2565
  %3250 = vmatmul.mubr.f32.gmra.mrb[0].mxu0 %v2564
  %v3251 = vpop.f32.mrb[0].mxu0
  %v3252 = vadd.f32 %v3107, %v3251
  %v3253 = vpop.f32.mrb[0].mxu0
  %3254 = vmatprep.mubr.f32.mxu0 %v2574
  %3255 = vmatmul.mubr.f32.gmra.mrb[0].mxu0 %v2573
  %v3256 = vpop.f32.mrb[0].mxu0
  %v3257 = vadd.f32 %v3112, %v3256
  %v3258 = vpop.f32.mrb[0].mxu0
  %3259 = vmatprep.mubr.f32.mxu0 %v2583
  %3260 = vmatmul.mubr.f32.gmra.mrb[0].mxu0 %v2582
  %v3261 = vpop.f32.mrb[0].mxu0
  %v3262 = vadd.f32 %v3117, %v3261
  %v3263 = vpop.f32.mrb[0].mxu0
  %3264 = vmatprep.mubr.f32.mxu0 %v2592
  %3265 = vmatmul.mubr.f32.gmra.mrb[0].mxu0 %v2591
  %v3266 = vpop.f32.mrb[0].mxu0
  %v3267 = vadd.f32 %v3122, %v3266
  %v3268 = vpop.f32.mrb[0].mxu0
  %3269 = vdwg.mxu0
  %3270 = vmatprep.subr.mxu0 0.0
  %3271 = vmatpush1.msra.mxu0 %v2403
  %3272 = vmatprep.subr.mxu0 0.0
  %3273 = vmatpush1.msra.mxu0 %v2405
  %3274 = vmatprep.subr.mxu0 0.0
  %3275 = vmatpush1.msra.mxu0 %v2407
  %3276 = vmatprep.subr.mxu0 0.0
  %3277 = vmatpush1.msra.mxu0 %v2409
  %3278 = vmatprep.subr.mxu0 0.0
  %3279 = vmatpush1.msra.mxu0 %v2411
  %3280 = vmatprep.subr.mxu0 0.0
  %3281 = vmatpush1.msra.mxu0 %v2413
  %3282 = vmatprep.subr.mxu0 0.0
  %3283 = vmatpush1.msra.mxu0 %v2415
  %3284 = vmatprep.subr.mxu0 0.0
  %3285 = vmatpush1.msra.mxu0 %v2417
  %3286 = vmatprep.subr.mxu0 0.0
  %3287 = vmatpush1.msra.mxu0 %v2419
  %3288 = vmatprep.subr.mxu0 0.0
  %3289 = vmatpush1.msra.mxu0 %v2421
  %3290 = vmatprep.subr.mxu0 0.0
  %3291 = vmatpush1.msra.mxu0 %v2423
  %3292 = vmatprep.subr.mxu0 0.0
  %3293 = vmatpush1.msra.mxu0 %v2425
  %3294 = vmatprep.subr.mxu0 0.0
  %3295 = vmatpush1.msra.mxu0 %v2427
  %3296 = vmatprep.subr.mxu0 0.0
  %3297 = vmatpush1.msra.mxu0 %v2429
  %3298 = vmatprep.subr.mxu0 0.0
  %3299 = vmatpush1.msra.mxu0 %v2431
  %3300 = vmatprep.subr.mxu0 0.0
  %3301 = vmatpush1.msra.mxu0 %v2433
  %3302 = vmatprep.subr.mxu0 0.0
  %3303 = vmatpush1.msra.mxu0 0.0
  %3304 = vmatprep.subr.mxu0 0.0
  %3305 = vmatpush1.msra.mxu0 0.0
  %3306 = vmatprep.subr.mxu0 0.0
  %3307 = vmatpush1.msra.mxu0 0.0
  %3308 = vmatprep.subr.mxu0 0.0
  %3309 = vmatpush1.msra.mxu0 0.0
  %3310 = vmatprep.subr.mxu0 0.0
  %3311 = vmatpush1.msra.mxu0 0.0
  %3312 = vmatprep.subr.mxu0 0.0
  %3313 = vmatpush1.msra.mxu0 0.0
  %3314 = vmatprep.subr.mxu0 0.0
  %3315 = vmatpush1.msra.mxu0 0.0
  %3316 = vmatprep.subr.mxu0 0.0
  %3317 = vmatpush1.msra.mxu0 0.0
  %3318 = vmatprep.subr.mxu0 0.0
  %3319 = vmatpush1.msra.mxu0 0.0
  %3320 = vmatprep.subr.mxu0 0.0
  %3321 = vmatpush1.msra.mxu0 0.0
  %3322 = vmatprep.subr.mxu0 0.0
  %3323 = vmatpush1.msra.mxu0 0.0
  %3324 = vmatprep.subr.mxu0 0.0
  %3325 = vmatpush1.msra.mxu0 0.0
  %3326 = vmatprep.subr.mxu0 0.0
  %3327 = vmatpush1.msra.mxu0 0.0
  %3328 = vmatprep.subr.mxu0 0.0
  %3329 = vmatpush1.msra.mxu0 0.0
  %3330 = vmatprep.subr.mxu0 0.0
  %3331 = vmatpush1.msra.mxu0 0.0
  %3332 = vmatprep.subr.mxu0 0.0
  %3333 = vmatpush1.msra.mxu0 0.0
  %3334 = vmatprep.mubr.f32.mxu0 0.0
  %3335 = vmatmul.mubr.f32.gmra.mrb[0].mxu0 %v2458
  %v3336 = vpop.f32.mrb[0].mxu0
  %v3337 = vadd.f32 %v3192, %v3336
  %v3338 = vpop.f32.mrb[0].mxu0
  %3339 = vmatprep.mubr.f32.mxu0 0.0
  %3340 = vmatmul.mubr.f32.gmra.mrb[0].mxu0 %v2467
  %v3341 = vpop.f32.mrb[0].mxu0
  %v3342 = vadd.f32 %v3197, %v3341
  %v3343 = vpop.f32.mrb[0].mxu0
  %3344 = vmatprep.mubr.f32.mxu0 0.0
  %3345 = vmatmul.mubr.f32.gmra.mrb[0].mxu0 %v2476
  %v3346 = vpop.f32.mrb[0].mxu0
  %v3347 = vadd.f32 %v3202, %v3346
  %v3348 = vpop.f32.mrb[0].mxu0
  %3349 = vmatprep.mubr.f32.mxu0 0.0
  %3350 = vmatmul.mubr.f32.gmra.mrb[0].mxu0 %v2485
  %v3351 = vpop.f32.mrb[0].mxu0
  %v3352 = vadd.f32 %v3207, %v3351
  %v3353 = vpop.f32.mrb[0].mxu0
  %3354 = vmatprep.mubr.f32.mxu0 0.0
  %3355 = vmatmul.mubr.f32.gmra.mrb[0].mxu0 %v2494
  %v3356 = vpop.f32.mrb[0].mxu0
  %v3357 = vadd.f32 %v3212, %v3356
  %v3358 = vpop.f32.mrb[0].mxu0
  %3359 = vmatprep.mubr.f32.mxu0 0.0
  %3360 = vmatmul.mubr.f32.gmra.mrb[0].mxu0 %v2503
  %v3361 = vpop.f32.mrb[0].mxu0
  %v3362 = vadd.f32 %v3217, %v3361
  %v3363 = vpop.f32.mrb[0].mxu0
  %3364 = vmatprep.mubr.f32.mxu0 0.0
  %3365 = vmatmul.mubr.f32.gmra.mrb[0].mxu0 %v2512
  %v3366 = vpop.f32.mrb[0].mxu0
  %v3367 = vadd.f32 %v3222, %v3366
  %v3368 = vpop.f32.mrb[0].mxu0
  %3369 = vmatprep.mubr.f32.mxu0 0.0
  %3370 = vmatmul.mubr.f32.gmra.mrb[0].mxu0 %v2521
  %v3371 = vpop.f32.mrb[0].mxu0
  %v3372 = vadd.f32 %v3227, %v3371
  %v3373 = vpop.f32.mrb[0].mxu0
  %3374 = vmatprep.mubr.f32.mxu0 0.0
  %3375 = vmatmul.mubr.f32.gmra.mrb[0].mxu0 %v2530
  %v3376 = vpop.f32.mrb[0].mxu0
  %v3377 = vadd.f32 %v3232, %v3376
  %v3378 = vpop.f32.mrb[0].mxu0
  %3379 = vmatprep.mubr.f32.mxu0 0.0
  %3380 = vmatmul.mubr.f32.gmra.mrb[0].mxu0 %v2539
  %v3381 = vpop.f32.mrb[0].mxu0
  %v3382 = vadd.f32 %v3237, %v3381
  %v3383 = vpop.f32.mrb[0].mxu0
  %3384 = vmatprep.mubr.f32.mxu0 0.0
  %3385 = vmatmul.mubr.f32.gmra.mrb[0].mxu0 %v2548
  %v3386 = vpop.f32.mrb[0].mxu0
  %v3387 = vadd.f32 %v3242, %v3386
  %v3388 = vpop.f32.mrb[0].mxu0
  %3389 = vmatprep.mubr.f32.mxu0 0.0
  %3390 = vmatmul.mubr.f32.gmra.mrb[0].mxu0 %v2557
  %v3391 = vpop.f32.mrb[0].mxu0
  %v3392 = vadd.f32 %v3247, %v3391
  %v3393 = vpop.f32.mrb[0].mxu0
  %3394 = vmatprep.mubr.f32.mxu0 0.0
  %3395 = vmatmul.mubr.f32.gmra.mrb[0].mxu0 %v2566
  %v3396 = vpop.f32.mrb[0].mxu0
  %v3397 = vadd.f32 %v3252, %v3396
  %v3398 = vpop.f32.mrb[0].mxu0
  %3399 = vmatprep.mubr.f32.mxu0 0.0
  %3400 = vmatmul.mubr.f32.gmra.mrb[0].mxu0 %v2575
  %v3401 = vpop.f32.mrb[0].mxu0
  %v3402 = vadd.f32 %v3257, %v3401
  %v3403 = vpop.f32.mrb[0].mxu0
  %3404 = vmatprep.mubr.f32.mxu0 0.0
  %3405 = vmatmul.mubr.f32.gmra.mrb[0].mxu0 %v2584
  %v3406 = vpop.f32.mrb[0].mxu0
  %v3407 = vadd.f32 %v3262, %v3406
  %v3408 = vpop.f32.mrb[0].mxu0
  %3409 = vmatprep.mubr.f32.mxu0 0.0
  %3410 = vmatmul.mubr.f32.gmra.mrb[0].mxu0 %v2593
  %v3411 = vpop.f32.mrb[0].mxu0
  %v3412 = vadd.f32 %v3267, %v3411
  %v3413 = vpop.f32.mrb[0].mxu0
  %3414 = vdwg.mxu0
  %v3415 = vmax.f32 %v3337, 0.0
  %v3416 = vmax.f32 %v3342, 0.0
  %v3417 = vmax.f32 %v3347, 0.0
  %v3418 = vmax.f32 %v3352, 0.0
  %v3419 = vmax.f32 %v3357, 0.0
  %v3420 = vmax.f32 %v3362, 0.0
  %v3421 = vmax.f32 %v3367, 0.0
  %v3422 = vmax.f32 %v3372, 0.0
  %v3423 = vmax.f32 %v3377, 0.0
  %v3424 = vmax.f32 %v3382, 0.0
  %v3425 = vmax.f32 %v3387, 0.0
  %v3426 = vmax.f32 %v3392, 0.0
  %v3427 = vmax.f32 %v3397, 0.0
  %v3428 = vmax.f32 %v3402, 0.0
  %v3429 = vmax.f32 %v3407, 0.0
  %v3430 = vmax.f32 %v3412, 0.0
  %v3431 = vld [vmem:[%s10] sm:$0xff]
  %v3432 = vld [vmem:[%s10 + $0x8] sm:$0xff]
  %v3433 = vld [vmem:[%s10 + $0x10] sm:$0xff]
  %vm3434 = vcmask 195584
  %v3436 = vsel %vm3434, %v3415, 0
  %v3439 = vsel %vm3434, %v3416, 0
  %v3442 = vsel %vm3434, %v3417, 0
  %v3445 = vsel %vm3434, %v3418, 0
  %v3448 = vsel %vm3434, %v3419, 0
  %v3451 = vsel %vm3434, %v3420, 0
  %v3454 = vsel %vm3434, %v3421, 0
  %v3457 = vsel %vm3434, %v3422, 0
  %v3460 = vsel %vm3434, %v3423, 0
  %v3463 = vsel %vm3434, %v3424, 0
  %v3466 = vsel %vm3434, %v3425, 0
  %v3469 = vsel %vm3434, %v3426, 0
  %v3472 = vsel %vm3434, %v3427, 0
  %v3475 = vsel %vm3434, %v3428, 0
  %v3478 = vsel %vm3434, %v3429, 0
  %v3481 = vsel %vm3434, %v3430, 0
  %3483 = vmatprep.subr.mxu0 0.0
  %3484 = vmatpush1.msra.mxu0 %v3431
  %3485 = vmatprep.subr.mxu0 0.0
  %3486 = vmatpush1.msra.mxu0 %v3432
  %3487 = vmatprep.subr.mxu0 0.0
  %3488 = vmatpush1.msra.mxu0 %v3433
  %3489 = vmatprep.subr.mxu0 0.0
  %3490 = vmatpush1.msra.mxu0 0.0
  %3491 = vmatprep.subr.mxu0 0.0
  %3492 = vmatpush1.msra.mxu0 0.0
  %3493 = vmatprep.subr.mxu0 0.0
  %3494 = vmatpush1.msra.mxu0 0.0
  %3495 = vmatprep.subr.mxu0 0.0
  %3496 = vmatpush1.msra.mxu0 0.0
  %3497 = vmatprep.subr.mxu0 0.0
  %3498 = vmatpush1.msra.mxu0 0.0
  %3499 = vmatprep.subr.mxu0 0.0
  %3500 = vmatpush1.msra.mxu0 0.0
  %3501 = vmatprep.subr.mxu0 0.0
  %3502 = vmatpush1.msra.mxu0 0.0
  %3503 = vmatprep.subr.mxu0 0.0
  %3504 = vmatpush1.msra.mxu0 0.0
  %3505 = vmatprep.subr.mxu0 0.0
  %3506 = vmatpush1.msra.mxu0 0.0
  %3507 = vmatprep.subr.mxu0 0.0
  %3508 = vmatpush1.msra.mxu0 0.0
  %3509 = vmatprep.subr.mxu0 0.0
  %3510 = vmatpush1.msra.mxu0 0.0
  %3511 = vmatprep.subr.mxu0 0.0
  %3512 = vmatpush1.msra.mxu0 0.0
  %3513 = vmatprep.subr.mxu0 0.0
  %3514 = vmatpush1.msra.mxu0 0.0
  %3515 = vmatprep.subr.mxu0 0.0
  %3516 = vmatpush1.msra.mxu0 0.0
  %3517 = vmatprep.subr.mxu0 0.0
  %3518 = vmatpush1.msra.mxu0 0.0
  %3519 = vmatprep.subr.mxu0 0.0
  %3520 = vmatpush1.msra.mxu0 0.0
  %3521 = vmatprep.subr.mxu0 0.0
  %3522 = vmatpush1.msra.mxu0 0.0
  %3523 = vmatprep.subr.mxu0 0.0
  %3524 = vmatpush1.msra.mxu0 0.0
  %3525 = vmatprep.subr.mxu0 0.0
  %3526 = vmatpush1.msra.mxu0 0.0
  %3527 = vmatprep.subr.mxu0 0.0
  %3528 = vmatpush1.msra.mxu0 0.0
  %3529 = vmatprep.subr.mxu0 0.0
  %3530 = vmatpush1.msra.mxu0 0.0
  %3531 = vmatprep.subr.mxu0 0.0
  %3532 = vmatpush1.msra.mxu0 0.0
  %3533 = vmatprep.subr.mxu0 0.0
  %3534 = vmatpush1.msra.mxu0 0.0
  %3535 = vmatprep.subr.mxu0 0.0
  %3536 = vmatpush1.msra.mxu0 0.0
  %3537 = vmatprep.subr.mxu0 0.0
  %3538 = vmatpush1.msra.mxu0 0.0
  %3539 = vmatprep.subr.mxu0 0.0
  %3540 = vmatpush1.msra.mxu0 0.0
  %3541 = vmatprep.subr.mxu0 0.0
  %3542 = vmatpush1.msra.mxu0 0.0
  %3543 = vmatprep.subr.mxu0 0.0
  %3544 = vmatpush1.msra.mxu0 0.0
  %3545 = vmatprep.subr.mxu0 0.0
  %3546 = vmatpush1.msra.mxu0 0.0
  %3547 = vmatprep.mubr.f32.mxu0 0.0
  %3548 = vmatmul.mubr.f32.gmra.mrb[0].mxu0 %v3436
  %v3549 = vpop.f32.mrb[0].mxu0
  %v3550 = vadd.f32 0.0, %v3549
  %v3551 = vpop.f32.mrb[0].mxu0
  %3552 = vmatprep.mubr.f32.mxu0 0.0
  %3553 = vmatmul.mubr.f32.gmra.mrb[0].mxu0 %v3439
  %v3554 = vpop.f32.mrb[0].mxu0
  %v3555 = vadd.f32 0.0, %v3554
  %v3556 = vpop.f32.mrb[0].mxu0
  %3557 = vmatprep.mubr.f32.mxu0 0.0
  %3558 = vmatmul.mubr.f32.gmra.mrb[0].mxu0 %v3442
  %v3559 = vpop.f32.mrb[0].mxu0
  %v3560 = vadd.f32 0.0, %v3559
  %v3561 = vpop.f32.mrb[0].mxu0
  %3562 = vmatprep.mubr.f32.mxu0 0.0
  %3563 = vmatmul.mubr.f32.gmra.mrb[0].mxu0 %v3445
  %v3564 = vpop.f32.mrb[0].mxu0
  %v3565 = vadd.f32 0.0, %v3564
  %v3566 = vpop.f32.mrb[0].mxu0
  %3567 = vmatprep.mubr.f32.mxu0 0.0
  %3568 = vmatmul.mubr.f32.gmra.mrb[0].mxu0 %v3448
  %v3569 = vpop.f32.mrb[0].mxu0
  %v3570 = vadd.f32 0.0, %v3569
  %v3571 = vpop.f32.mrb[0].mxu0
  %3572 = vmatprep.mubr.f32.mxu0 0.0
  %3573 = vmatmul.mubr.f32.gmra.mrb[0].mxu0 %v3451
  %v3574 = vpop.f32.mrb[0].mxu0
  %v3575 = vadd.f32 0.0, %v3574
  %v3576 = vpop.f32.mrb[0].mxu0
  %3577 = vmatprep.mubr.f32.mxu0 0.0
  %3578 = vmatmul.mubr.f32.gmra.mrb[0].mxu0 %v3454
  %v3579 = vpop.f32.mrb[0].mxu0
  %v3580 = vadd.f32 0.0, %v3579
  %v3581 = vpop.f32.mrb[0].mxu0
  %3582 = vmatprep.mubr.f32.mxu0 0.0
  %3583 = vmatmul.mubr.f32.gmra.mrb[0].mxu0 %v3457
  %v3584 = vpop.f32.mrb[0].mxu0
  %v3585 = vadd.f32 0.0, %v3584
  %v3586 = vpop.f32.mrb[0].mxu0
  %3587 = vmatprep.mubr.f32.mxu0 0.0
  %3588 = vmatmul.mubr.f32.gmra.mrb[0].mxu0 %v3460
  %v3589 = vpop.f32.mrb[0].mxu0
  %v3590 = vadd.f32 0.0, %v3589
  %v3591 = vpop.f32.mrb[0].mxu0
  %3592 = vmatprep.mubr.f32.mxu0 0.0
  %3593 = vmatmul.mubr.f32.gmra.mrb[0].mxu0 %v3463
  %v3594 = vpop.f32.mrb[0].mxu0
  %v3595 = vadd.f32 0.0, %v3594
  %v3596 = vpop.f32.mrb[0].mxu0
  %3597 = vmatprep.mubr.f32.mxu0 0.0
  %3598 = vmatmul.mubr.f32.gmra.mrb[0].mxu0 %v3466
  %v3599 = vpop.f32.mrb[0].mxu0
  %v3600 = vadd.f32 0.0, %v3599
  %v3601 = vpop.f32.mrb[0].mxu0
  %3602 = vmatprep.mubr.f32.mxu0 0.0
  %3603 = vmatmul.mubr.f32.gmra.mrb[0].mxu0 %v3469
  %v3604 = vpop.f32.mrb[0].mxu0
  %v3605 = vadd.f32 0.0, %v3604
  %v3606 = vpop.f32.mrb[0].mxu0
  %3607 = vmatprep.mubr.f32.mxu0 0.0
  %3608 = vmatmul.mubr.f32.gmra.mrb[0].mxu0 %v3472
  %v3609 = vpop.f32.mrb[0].mxu0
  %v3610 = vadd.f32 0.0, %v3609
  %v3611 = vpop.f32.mrb[0].mxu0
  %3612 = vmatprep.mubr.f32.mxu0 0.0
  %3613 = vmatmul.mubr.f32.gmra.mrb[0].mxu0 %v3475
  %v3614 = vpop.f32.mrb[0].mxu0
  %v3615 = vadd.f32 0.0, %v3614
  %v3616 = vpop.f32.mrb[0].mxu0
  %3617 = vmatprep.mubr.f32.mxu0 0.0
  %3618 = vmatmul.mubr.f32.gmra.mrb[0].mxu0 %v3478
  %v3619 = vpop.f32.mrb[0].mxu0
  %v3620 = vadd.f32 0.0, %v3619
  %v3621 = vpop.f32.mrb[0].mxu0
  %3622 = vmatprep.mubr.f32.mxu0 0.0
  %3623 = vmatmul.mubr.f32.gmra.mrb[0].mxu0 %v3481
  %v3624 = vpop.f32.mrb[0].mxu0
  %v3625 = vadd.f32 0.0, %v3624
  %v3626 = vpop.f32.mrb[0].mxu0
  %3627 = vdwg.mxu0
  %vm3628 = vcmask 31744
  %3629 = vst.msk [vmem:[%s11] sm:$0xff] %vm3628, %v3550
  %3630 = vst.msk [vmem:[%s11 + $0x8] sm:$0xff] %vm3628, %v3555
  %3631 = vst.msk [vmem:[%s11 + $0x10] sm:$0xff] %vm3628, %v3560
  %3632 = vst.msk [vmem:[%s11 + $0x18] sm:$0xff] %vm3628, %v3565
  %3633 = vst.msk [vmem:[%s11 + $0x20] sm:$0xff] %vm3628, %v3570
  %3634 = vst.msk [vmem:[%s11 + $0x28] sm:$0xff] %vm3628, %v3575
  %3635 = vst.msk [vmem:[%s11 + $0x30] sm:$0xff] %vm3628, %v3580
  %3636 = vst.msk [vmem:[%s11 + $0x38] sm:$0xff] %vm3628, %v3585
  %3637 = vst.msk [vmem:[%s11 + $0x40] sm:$0xff] %vm3628, %v3590
  %3638 = vst.msk [vmem:[%s11 + $0x48] sm:$0xff] %vm3628, %v3595
  %3639 = vst.msk [vmem:[%s11 + $0x50] sm:$0xff] %vm3628, %v3600
  %3640 = vst.msk [vmem:[%s11 + $0x58] sm:$0xff] %vm3628, %v3605
  %3641 = vst.msk [vmem:[%s11 + $0x60] sm:$0xff] %vm3628, %v3610
  %3642 = vst.msk [vmem:[%s11 + $0x68] sm:$0xff] %vm3628, %v3615
  %3643 = vst.msk [vmem:[%s11 + $0x70] sm:$0xff] %vm3628, %v3620
  %3644 = vst.msk [vmem:[%s11 + $0x78] sm:$0xff] %vm3628, %v3625
  // Predicated region
  $region46: #{forward.1} parent=0 // pred_check
    _
  $region47: #{forward.1} parent=0 // pred_check_branch
    %3646 = sbr.rel (0) target = $region49
  $region48: #{forward.1} parent=0 // pred_region
    _
  $region49: #{forward.1} parent=0 // pred_fallthru
    _
  // Predicated region
  $region50: #{forward.1} parent=0 // pred_check
    _
  $region51: #{forward.1} parent=0 // pred_check_branch
    %3648 = sbr.rel (0) target = $region53
  $region52: #{forward.1} parent=0 // pred_region
    _
  $region53: #{forward.1} parent=0 // pred_fallthru
    _

</llo_original>
